<compile_context>
chip_gen: v7x
topology: tpu7x:2x2x1
jax: 0.10.0
libtpu: 0.0.40
codegen_flags: <defaults>
</compile_context>

<pallas_src>
import jax
import jax.numpy as jnp
from jax.experimental import pallas as pl
from jax.experimental.pallas import tpu as pltpu

# ----------------------- scaled-down ViT config -----------------------------
IMG = 32            # image spatial size   (ViT-B/16 uses 224)
PATCH = 8           # patch size           (ViT-B/16 uses 16)
C_IN = 3
PDIM = C_IN * PATCH * PATCH            # 192
HIDDEN = 128        # token dim, lane-dense (ViT-B/16 uses 768)
HEADS = 4           # attention heads       (ViT-B/16 uses 12)
HEAD_DIM = HIDDEN // HEADS             # 32
MLP = 256           # MLP hidden dim        (ViT-B/16 uses 3072)
DEPTH = 2           # encoder layers        (ViT-B/16 uses 12)
N_PATCH = (IMG // PATCH) ** 2          # 16
SEQ = N_PATCH + 1                      # 16 patch tokens + 1 class token -> 17
HEAD_HIDDEN = 512                      # custom head hidden (as in the module)
NUM_CLASSES = 1
LN_EPS = 1e-6
BATCH = 2

VMEM_SPEC = pl.BlockSpec(memory_space=pltpu.MemorySpace.VMEM)


# ------------------------------ helpers -------------------------------------
def _layernorm(x, g, b):
    mu = jnp.mean(x, axis=-1, keepdims=True)
    var = jnp.mean((x - mu) ** 2, axis=-1, keepdims=True)
    return (x - mu) * jax.lax.rsqrt(var + LN_EPS) * g + b


def _softmax_last(x):
    x = x - jnp.max(x, axis=-1, keepdims=True)
    e = jnp.exp(x)
    return e * pl.reciprocal(jnp.sum(e, axis=-1, keepdims=True), approx=True)


def _gelu_tanh(x):
    # TODO(synk): torch nn.GELU is erf-exact; tanh approximation used here (EUP-friendly).
    c = 0.7978845608028654  # sqrt(2/pi)
    return 0.5 * x * (1.0 + jnp.tanh(c * (x + 0.044715 * x * x * x)))


def _stable_sigmoid(x):
    # sigmoid(x) == 0.5 * (tanh(x/2) + 1), numerically stable for any x.
    return 0.5 * (jnp.tanh(0.5 * x) + 1.0)


# --------------------------- fused forward kernel ----------------------------
def vit_fused_kernel(patches_ref, patch_w_ref, seq_const_ref,
                     wqkv_ref, bqkv_ref, wo_ref, w1_ref, b1_ref, w2_ref,
                     blk_vec_ref, lnf_ref, hw1_ref, head_vec_ref, o_ref):
    f32, bf16 = jnp.float32, jnp.bfloat16

    # ---- patch embedding: ONE (B*Np, C*P*P)@(C*P*P, H) matmul.
    #      Conv bias is folded into seq_const on the host. ----
    emb = jnp.dot(patches_ref[...], patch_w_ref[...],
                  preferred_element_type=f32)                       # (B*Np, H) f32

    # ---- sequence assembly: cls token sits at the 8-aligned row N_PATCH of each
    #      per-batch slab, so the big patch slab stays at sublane offset 0.
    #      seq_const already holds pos_emb (+ cls token + patch bias). ----
    zrow = jnp.zeros((1, HIDDEN), f32)
    pieces = []
    for b in range(BATCH):
        pieces.append(emb[b * N_PATCH:(b + 1) * N_PATCH, :])
        pieces.append(zrow)                                         # cls slot
    x = jnp.concatenate(pieces, axis=0) + seq_const_ref[...]        # (B*SEQ, H) f32

    # ---- encoder blocks (statically unrolled; every weight VMEM resident) ----
    # TODO(synk): at real ViT-B/16 scale (HIDDEN=768, DEPTH=12, ~170 MB bf16)
    #             switch to a DEPTH grid axis with per-layer weight BlockSpecs
    #             (weights stream/double-buffer; retile against v7x 64 MiB VMEM).
    for d in range(DEPTH):
        vec = blk_vec_ref[d]                                        # (8, H) packed LN/bias slab
        ln1_g, ln1_b = vec[0:1, :], vec[1:2, :]
        ln2_g, ln2_b = vec[2:3, :], vec[3:4, :]
        bo, b2 = vec[4:5, :], vec[5:6, :]

        # -------- pre-LN multi-head self-attention --------
        xn = _layernorm(x, ln1_g, ln1_b).astype(bf16)               # (B*S, H)
        # fused lane-dense QKV projection: (34,128)@(128,384); columns are
        # [Q|K|V], each head-major; 1/sqrt(head_dim) folded into the Q third.
        qkv = (jnp.dot(xn, wqkv_ref[d], preferred_element_type=f32)
               + bqkv_ref[d])                                       # (B*S, 3H) f32

        ctx_rows = []
        for b in range(BATCH):
            r0 = b * SEQ
            q_b = qkv[r0:r0 + SEQ, 0 * HIDDEN:1 * HIDDEN]
            k_b = qkv[r0:r0 + SEQ, 1 * HIDDEN:2 * HIDDEN]
            v_b = qkv[r0:r0 + SEQ, 2 * HIDDEN:3 * HIDDEN]
            heads = []
            for h in range(HEADS):
                c0 = h * HEAD_DIM
                qh = q_b[:, c0:c0 + HEAD_DIM].astype(bf16)          # (S, Dh)
                kh = k_b[:, c0:c0 + HEAD_DIM].astype(bf16)
                vh = v_b[:, c0:c0 + HEAD_DIM].astype(bf16)
                s = jnp.einsum('qd,kd->qk', qh, kh,
                               preferred_element_type=f32)          # (S, S) f32
                p = _softmax_last(s)
                heads.append(jnp.dot(p.astype(bf16), vh,
                                     preferred_element_type=f32))   # (S, Dh)
            ctx_rows.append(jnp.concatenate(heads, axis=-1))        # (S, H) lane concat
        ctx = jnp.concatenate(ctx_rows, axis=0).astype(bf16)        # (B*S, H)

        # head merge folded into ONE (B*S,128)@(128,128) output projection
        # (wo rows are head-major on the host, matching the lane concat above).
        x = x + jnp.dot(ctx, wo_ref[d], preferred_element_type=f32) + bo

        # -------- pre-LN MLP (plain 2-D matmuls) --------
        xn = _layernorm(x, ln2_g, ln2_b).astype(bf16)               # (B*S, H)
        h1 = (jnp.dot(xn, w1_ref[d], preferred_element_type=f32)
              + b1_ref[d])                                          # (B*S, MLP)
        h1 = _gelu_tanh(h1).astype(bf16)
        x = x + jnp.dot(h1, w2_ref[d], preferred_element_type=f32) + b2

    # ---- final LayerNorm on class tokens + Linear -> ReLU -> Linear -> Sigmoid ----
    cls = jnp.concatenate(
        [x[b * SEQ + N_PATCH:b * SEQ + N_PATCH + 1, :] for b in range(BATCH)],
        axis=0)                                                     # (B, H)
    cls = _layernorm(cls, lnf_ref[0:1, :], lnf_ref[1:2, :]).astype(jnp.bfloat16)
    h = (jnp.dot(cls, hw1_ref[...], preferred_element_type=f32)
         + head_vec_ref[0:1, :])                                    # (B, 512)
    h = jnp.maximum(h, 0.0)
    # (B,512)@(512,1) as a VPU multiply+reduce (avoid an N=1 MXU matmul).
    logits = (jnp.sum(h * head_vec_ref[1:2, :], axis=-1, keepdims=True)
              + head_vec_ref[2:3, 0:1])                             # (B, 1)
    o_ref[...] = _stable_sigmoid(logits)


# ---------------------------- pallas wrapper ---------------------------------
def _cost_estimate(args):
    mm = lambda m, k, n: 2 * m * k * n
    blk = (mm(BATCH * SEQ, HIDDEN, 3 * HIDDEN)
           + BATCH * HEADS * (mm(SEQ, HEAD_DIM, SEQ) + mm(SEQ, SEQ, HEAD_DIM))
           + mm(BATCH * SEQ, HIDDEN, HIDDEN)
           + mm(BATCH * SEQ, HIDDEN, MLP)
           + mm(BATCH * SEQ, MLP, HIDDEN))
    flops = (mm(BATCH * N_PATCH, PDIM, HIDDEN) + DEPTH * blk
             + mm(BATCH, HIDDEN, HEAD_HIDDEN) + 2 * BATCH * HEAD_HIDDEN)
    transcendentals = (DEPTH * BATCH * HEADS * SEQ * SEQ   # softmax exp
                       + DEPTH * BATCH * SEQ * MLP         # gelu tanh
                       + BATCH)                            # sigmoid tanh
    bytes_accessed = sum(int(a.size) * int(a.dtype.itemsize) for a in args)
    bytes_accessed += BATCH * NUM_CLASSES * 4
    return pl.CostEstimate(flops=int(flops), transcendentals=int(transcendentals),
                           bytes_accessed=int(bytes_accessed))


def cataract_forward(x, params):
    """x: (B, C, H, W) float32 (NCHW, like PyTorch). Returns (B, NUM_CLASSES) float32."""
    B = x.shape[0]
    assert B == BATCH, (B, BATCH)
    nh = IMG // PATCH
    # Patchify (layout plumbing only): flatten each patch in (C, ph, pw) order
    # to match nn.Conv2d(kernel=P, stride=P) weight layout; cast to bf16 on host.
    p = x.reshape(B, C_IN, nh, PATCH, nh, PATCH)
    p = p.transpose(0, 2, 4, 1, 3, 5).reshape(B * N_PATCH, PDIM).astype(jnp.bfloat16)

    args = (p, params['patch_w'], params['seq_const'],
            params['wqkv'], params['bqkv'], params['wo'],
            params['w1'], params['b1'], params['w2'],
            params['blk_vec'], params['ln_f'],
            params['head_w1'], params['head_vec'])

    # TODO(synk): on v7x, add grid=(BATCH,) with dimension_semantics=("parallel",)
    #             (or a core_map over a 2-core mesh) to use the second TensorCore.
    return pl.pallas_call(
        vit_fused_kernel,
        out_shape=jax.ShapeDtypeStruct((B, NUM_CLASSES), jnp.float32),
        in_specs=[VMEM_SPEC] * len(args),
        out_specs=VMEM_SPEC,
        cost_estimate=_cost_estimate(args),
    )(*args)


# --------------------------- deterministic params ----------------------------
def init_params(key):
    ks = iter(jax.random.split(key, 32))
    f32, bf16 = jnp.float32, jnp.bfloat16

    def nrm(shape, scale=0.02):
        return scale * jax.random.normal(next(ks), shape, dtype=f32)

    attn_scale = 1.0 / float(HEAD_DIM) ** 0.5

    # ---- patch embedding (conv-as-matmul) + token / positional constants ----
    patch_w = nrm((PDIM, HIDDEN)).astype(bf16)
    patch_b = nrm((HIDDEN,))
    cls_token = nrm((1, HIDDEN))
    pos_torch = nrm((SEQ, HIDDEN))                       # torch order: row 0 = cls token
    # host relayout: move the cls position to the 8-aligned token index N_PATCH
    pos = jnp.concatenate([pos_torch[1:], pos_torch[0:1]], axis=0)
    seq_one = pos.at[:N_PATCH, :].add(patch_b[None, :]).at[N_PATCH, :].add(cls_token[0])
    seq_const = jnp.tile(seq_one[None], (BATCH, 1, 1)).reshape(BATCH * SEQ, HIDDEN)

    # ---- transformer blocks: Q/K/V packed head-major along columns; attention
    #      scale folded into the Q weight/bias on the host. ----
    wq = nrm((DEPTH, HIDDEN, HIDDEN)) * attn_scale
    wk = nrm((DEPTH, HIDDEN, HIDDEN))
    wv = nrm((DEPTH, HIDDEN, HIDDEN))
    wqkv = jnp.concatenate([wq, wk, wv], axis=-1).astype(bf16)       # (D, H, 3H)
    bq = nrm((DEPTH, 1, HIDDEN)) * attn_scale
    bk = nrm((DEPTH, 1, HIDDEN))
    bv = nrm((DEPTH, 1, HIDDEN))
    bqkv = jnp.concatenate([bq, bk, bv], axis=-1)                    # (D, 1, 3H) f32

    wo = nrm((DEPTH, HIDDEN, HIDDEN)).astype(bf16)    # rows head-major (matches ctx lane concat)
    w1 = nrm((DEPTH, HIDDEN, MLP)).astype(bf16)
    b1 = nrm((DEPTH, 1, MLP))
    w2 = nrm((DEPTH, MLP, HIDDEN)).astype(bf16)

    ones_h = jnp.ones((DEPTH, 1, HIDDEN), f32)
    blk_vec = jnp.concatenate([
        ones_h, nrm((DEPTH, 1, HIDDEN)),        # ln1 gamma, beta
        ones_h, nrm((DEPTH, 1, HIDDEN)),        # ln2 gamma, beta
        nrm((DEPTH, 1, HIDDEN)),                # attention out-proj bias
        nrm((DEPTH, 1, HIDDEN)),                # MLP output bias
        jnp.zeros((DEPTH, 2, HIDDEN), f32),     # pad to one (8,128) sublane tile
    ], axis=1)                                   # (D, 8, H)

    # ---- final LN + custom classification head ----
    ln_f = jnp.concatenate([jnp.ones((1, HIDDEN), f32), nrm((1, HIDDEN))], axis=0)  # (2, H)
    head_w1 = nrm((HIDDEN, HEAD_HIDDEN)).astype(bf16)
    head_b1 = nrm((HEAD_HIDDEN,))
    head_w2_row = nrm((HEAD_HIDDEN,))            # row form of the (512, 1) weight
    head_b2 = nrm(())
    head_vec = jnp.stack([head_b1, head_w2_row,
                          jnp.full((HEAD_HIDDEN,), head_b2)], axis=0)  # (3, 512)

    return dict(patch_w=patch_w, seq_const=seq_const,
                wqkv=wqkv, bqkv=bqkv, wo=wo, w1=w1, b1=b1, w2=w2,
                blk_vec=blk_vec, ln_f=ln_f,
                head_w1=head_w1, head_vec=head_vec)


# --------------------------------- main --------------------------------------
if __name__ == "__main__":
    key = jax.random.PRNGKey(0)
    k_x, k_p = jax.random.split(key)
    x = jax.random.normal(k_x, (BATCH, C_IN, IMG, IMG), dtype=jnp.float32)
    params = init_params(k_p)

    fwd = jax.jit(cataract_forward)
    out = jax.block_until_ready(fwd(x, params))

    assert out.shape == (BATCH, NUM_CLASSES), out.shape
    assert out.dtype == jnp.float32
    # sigmoid output must be strictly inside (0, 1)
    assert bool(jnp.all((out > 0.0) & (out < 1.0)))
    print("KERNEL_OK")
</pallas_src>

<mosaic_0001>
module attributes {stable_mosaic.version = 11 : i64} {
  func.func @vit_fused_kernel(%arg0: memref<32x192xbf16, #tpu.memory_space<vmem>>, %arg1: memref<192x128xbf16, #tpu.memory_space<vmem>>, %arg2: memref<34x128xf32, #tpu.memory_space<vmem>>, %arg3: memref<2x128x384xbf16, #tpu.memory_space<vmem>>, %arg4: memref<2x1x384xf32, #tpu.memory_space<vmem>>, %arg5: memref<2x128x128xbf16, #tpu.memory_space<vmem>>, %arg6: memref<2x128x256xbf16, #tpu.memory_space<vmem>>, %arg7: memref<2x1x256xf32, #tpu.memory_space<vmem>>, %arg8: memref<2x256x128xbf16, #tpu.memory_space<vmem>>, %arg9: memref<2x8x128xf32, #tpu.memory_space<vmem>>, %arg10: memref<2x128xf32, #tpu.memory_space<vmem>>, %arg11: memref<128x512xbf16, #tpu.memory_space<vmem>>, %arg12: memref<3x512xf32, #tpu.memory_space<vmem>>, %arg13: memref<2x1xf32, #tpu.memory_space<vmem>>) attributes {dimension_semantics = [], scalar_prefetch = 0 : i64, scratch_operands = 0 : i64, tpu.core_type = #tpu.core_type<tc>} {
    %c0 = arith.constant 0 : index
    %c0_0 = arith.constant 0 : index
    %0 = vector.load %arg0[%c0, %c0_0] : memref<32x192xbf16, #tpu.memory_space<vmem>>, vector<32x192xbf16>
    %c0_1 = arith.constant 0 : index
    %c0_2 = arith.constant 0 : index
    %1 = vector.load %arg1[%c0_1, %c0_2] : memref<192x128xbf16, #tpu.memory_space<vmem>>, vector<192x128xbf16>
    %cst = arith.constant dense<0.000000e+00> : vector<32x128xf32>
    %2 = tpu.matmul %0, %1, %cst {dimension_numbers = #tpu.dot_dimension_numbers<[1], [0], [0], [1], [0, 0, 1, 1], [], []>} : vector<32x192xbf16>, vector<192x128xbf16>, vector<32x128xf32> -> vector<32x128xf32>
    %cst_3 = arith.constant 0.000000e+00 : f32
    %3 = vector.broadcast %cst_3 : f32 to vector<1x128xf32>
    %4 = vector.extract_strided_slice %2 {offsets = [0, 0], sizes = [16, 128], strides = [1, 1]} : vector<32x128xf32> to vector<16x128xf32>
    %5 = vector.extract_strided_slice %2 {offsets = [16, 0], sizes = [16, 128], strides = [1, 1]} : vector<32x128xf32> to vector<16x128xf32>
    %6 = tpu.concatenate %4, %3, %5, %3 in 0 : vector<16x128xf32>, vector<1x128xf32>, vector<16x128xf32>, vector<1x128xf32> -> vector<34x128xf32>
    %c0_4 = arith.constant 0 : index
    %c0_5 = arith.constant 0 : index
    %7 = vector.load %arg2[%c0_4, %c0_5] : memref<34x128xf32, #tpu.memory_space<vmem>>, vector<34x128xf32>
    %8 = arith.addf %6, %7 : vector<34x128xf32>
    %c0_6 = arith.constant 0 : index
    %c0_7 = arith.constant 0 : index
    %c0_8 = arith.constant 0 : index
    %9 = vector.load %arg9[%c0_6, %c0_7, %c0_8] : memref<2x8x128xf32, #tpu.memory_space<vmem>>, vector<1x8x128xf32>
    %10 = vector.shape_cast %9 : vector<1x8x128xf32> to vector<8x128xf32>
    %11 = vector.extract_strided_slice %10 {offsets = [0, 0], sizes = [1, 128], strides = [1, 1]} : vector<8x128xf32> to vector<1x128xf32>
    %12 = vector.extract_strided_slice %10 {offsets = [1, 0], sizes = [1, 128], strides = [1, 1]} : vector<8x128xf32> to vector<1x128xf32>
    %13 = vector.extract_strided_slice %10 {offsets = [2, 0], sizes = [1, 128], strides = [1, 1]} : vector<8x128xf32> to vector<1x128xf32>
    %14 = vector.extract_strided_slice %10 {offsets = [3, 0], sizes = [1, 128], strides = [1, 1]} : vector<8x128xf32> to vector<1x128xf32>
    %15 = vector.extract_strided_slice %10 {offsets = [4, 0], sizes = [1, 128], strides = [1, 1]} : vector<8x128xf32> to vector<1x128xf32>
    %16 = vector.extract_strided_slice %10 {offsets = [5, 0], sizes = [1, 128], strides = [1, 1]} : vector<8x128xf32> to vector<1x128xf32>
    %cst_9 = arith.constant dense<0.000000e+00> : vector<34xf32>
    %17 = vector.multi_reduction <add>, %8, %cst_9 [1] : vector<34x128xf32> to vector<34xf32>
    %18 = vector.shape_cast %17 : vector<34xf32> to vector<34x1xf32>
    %cst_10 = arith.constant 1.280000e+02 : f32
    %19 = vector.broadcast %cst_10 : f32 to vector<34x1xf32>
    %20 = arith.divf %18, %19 : vector<34x1xf32>
    %21 = vector.broadcast %20 : vector<34x1xf32> to vector<34x128xf32>
    %22 = arith.subf %8, %21 : vector<34x128xf32>
    %23 = arith.mulf %22, %22 : vector<34x128xf32>
    %cst_11 = arith.constant dense<0.000000e+00> : vector<34xf32>
    %24 = vector.multi_reduction <add>, %23, %cst_11 [1] : vector<34x128xf32> to vector<34xf32>
    %25 = vector.shape_cast %24 : vector<34xf32> to vector<34x1xf32>
    %cst_12 = arith.constant 1.280000e+02 : f32
    %26 = vector.broadcast %cst_12 : f32 to vector<34x1xf32>
    %27 = arith.divf %25, %26 : vector<34x1xf32>
    %28 = vector.broadcast %20 : vector<34x1xf32> to vector<34x128xf32>
    %29 = arith.subf %8, %28 : vector<34x128xf32>
    %cst_13 = arith.constant 9.99999997E-7 : f32
    %30 = vector.broadcast %cst_13 : f32 to vector<34x1xf32>
    %31 = arith.addf %27, %30 : vector<34x1xf32>
    %32 = math.rsqrt %31 : vector<34x1xf32>
    %33 = vector.broadcast %32 : vector<34x1xf32> to vector<34x128xf32>
    %34 = arith.mulf %29, %33 : vector<34x128xf32>
    %35 = vector.broadcast %11 : vector<1x128xf32> to vector<34x128xf32>
    %36 = arith.mulf %34, %35 : vector<34x128xf32>
    %37 = vector.broadcast %12 : vector<1x128xf32> to vector<34x128xf32>
    %38 = arith.addf %36, %37 : vector<34x128xf32>
    %39 = arith.truncf %38 : vector<34x128xf32> to vector<34x128xbf16>
    %c0_14 = arith.constant 0 : index
    %c0_15 = arith.constant 0 : index
    %c0_16 = arith.constant 0 : index
    %40 = vector.load %arg3[%c0_14, %c0_15, %c0_16] : memref<2x128x384xbf16, #tpu.memory_space<vmem>>, vector<1x128x384xbf16>
    %41 = vector.shape_cast %40 : vector<1x128x384xbf16> to vector<128x384xbf16>
    %cst_17 = arith.constant dense<0.000000e+00> : vector<34x384xf32>
    %42 = tpu.matmul %39, %41, %cst_17 {dimension_numbers = #tpu.dot_dimension_numbers<[1], [0], [0], [1], [0, 0, 1, 1], [], []>} : vector<34x128xbf16>, vector<128x384xbf16>, vector<34x384xf32> -> vector<34x384xf32>
    %c0_18 = arith.constant 0 : index
    %c0_19 = arith.constant 0 : index
    %c0_20 = arith.constant 0 : index
    %43 = vector.load %arg4[%c0_18, %c0_19, %c0_20] : memref<2x1x384xf32, #tpu.memory_space<vmem>>, vector<1x1x384xf32>
    %44 = vector.shape_cast %43 : vector<1x1x384xf32> to vector<1x384xf32>
    %45 = vector.broadcast %44 : vector<1x384xf32> to vector<34x384xf32>
    %46 = arith.addf %42, %45 : vector<34x384xf32>
    %47 = vector.extract_strided_slice %46 {offsets = [0, 0], sizes = [17, 128], strides = [1, 1]} : vector<34x384xf32> to vector<17x128xf32>
    %48 = vector.extract_strided_slice %46 {offsets = [0, 128], sizes = [17, 128], strides = [1, 1]} : vector<34x384xf32> to vector<17x128xf32>
    %49 = vector.extract_strided_slice %46 {offsets = [0, 256], sizes = [17, 128], strides = [1, 1]} : vector<34x384xf32> to vector<17x128xf32>
    %50 = vector.extract_strided_slice %47 {offsets = [0, 0], sizes = [17, 32], strides = [1, 1]} : vector<17x128xf32> to vector<17x32xf32>
    %51 = arith.truncf %50 : vector<17x32xf32> to vector<17x32xbf16>
    %52 = vector.extract_strided_slice %48 {offsets = [0, 0], sizes = [17, 32], strides = [1, 1]} : vector<17x128xf32> to vector<17x32xf32>
    %53 = arith.truncf %52 : vector<17x32xf32> to vector<17x32xbf16>
    %54 = vector.extract_strided_slice %49 {offsets = [0, 0], sizes = [17, 32], strides = [1, 1]} : vector<17x128xf32> to vector<17x32xf32>
    %55 = arith.truncf %54 : vector<17x32xf32> to vector<17x32xbf16>
    "tpu.trace_start"() <{level = 10 : i32, message = "qd,kd->qk"}> : () -> ()
    %cst_21 = arith.constant dense<0.000000e+00> : vector<17x17xf32>
    %56 = tpu.matmul %51, %53, %cst_21 {dimension_numbers = #tpu.dot_dimension_numbers<[1], [1], [0], [0], [0, 0, 1, 0], [], []>} : vector<17x32xbf16>, vector<17x32xbf16>, vector<17x17xf32> -> vector<17x17xf32>
    "tpu.trace_stop"() : () -> ()
    %cst_22 = arith.constant dense<0xFF800000> : vector<17xf32>
    %57 = vector.multi_reduction <maximumf>, %56, %cst_22 [1] : vector<17x17xf32> to vector<17xf32>
    %58 = vector.shape_cast %57 : vector<17xf32> to vector<17x1xf32>
    %59 = vector.broadcast %58 : vector<17x1xf32> to vector<17x17xf32>
    %60 = arith.subf %56, %59 : vector<17x17xf32>
    %61 = math.exp %60 : vector<17x17xf32>
    %cst_23 = arith.constant dense<0.000000e+00> : vector<17xf32>
    %62 = vector.multi_reduction <add>, %61, %cst_23 [1] : vector<17x17xf32> to vector<17xf32>
    %63 = vector.shape_cast %62 : vector<17xf32> to vector<17x1xf32>
    %64 = tpu.reciprocal %63 {approx = true} : vector<17x1xf32> -> vector<17x1xf32>
    %65 = vector.broadcast %64 : vector<17x1xf32> to vector<17x17xf32>
    %66 = arith.mulf %61, %65 : vector<17x17xf32>
    %67 = arith.truncf %66 : vector<17x17xf32> to vector<17x17xbf16>
    %cst_24 = arith.constant dense<0.000000e+00> : vector<17x32xf32>
    %68 = tpu.matmul %67, %55, %cst_24 {dimension_numbers = #tpu.dot_dimension_numbers<[1], [0], [0], [1], [0, 0, 1, 1], [], []>} : vector<17x17xbf16>, vector<17x32xbf16>, vector<17x32xf32> -> vector<17x32xf32>
    %69 = vector.extract_strided_slice %47 {offsets = [0, 32], sizes = [17, 32], strides = [1, 1]} : vector<17x128xf32> to vector<17x32xf32>
    %70 = arith.truncf %69 : vector<17x32xf32> to vector<17x32xbf16>
    %71 = vector.extract_strided_slice %48 {offsets = [0, 32], sizes = [17, 32], strides = [1, 1]} : vector<17x128xf32> to vector<17x32xf32>
    %72 = arith.truncf %71 : vector<17x32xf32> to vector<17x32xbf16>
    %73 = vector.extract_strided_slice %49 {offsets = [0, 32], sizes = [17, 32], strides = [1, 1]} : vector<17x128xf32> to vector<17x32xf32>
    %74 = arith.truncf %73 : vector<17x32xf32> to vector<17x32xbf16>
    "tpu.trace_start"() <{level = 10 : i32, message = "qd,kd->qk"}> : () -> ()
    %cst_25 = arith.constant dense<0.000000e+00> : vector<17x17xf32>
    %75 = tpu.matmul %70, %72, %cst_25 {dimension_numbers = #tpu.dot_dimension_numbers<[1], [1], [0], [0], [0, 0, 1, 0], [], []>} : vector<17x32xbf16>, vector<17x32xbf16>, vector<17x17xf32> -> vector<17x17xf32>
    "tpu.trace_stop"() : () -> ()
    %cst_26 = arith.constant dense<0xFF800000> : vector<17xf32>
    %76 = vector.multi_reduction <maximumf>, %75, %cst_26 [1] : vector<17x17xf32> to vector<17xf32>
    %77 = vector.shape_cast %76 : vector<17xf32> to vector<17x1xf32>
    %78 = vector.broadcast %77 : vector<17x1xf32> to vector<17x17xf32>
    %79 = arith.subf %75, %78 : vector<17x17xf32>
    %80 = math.exp %79 : vector<17x17xf32>
    %cst_27 = arith.constant dense<0.000000e+00> : vector<17xf32>
    %81 = vector.multi_reduction <add>, %80, %cst_27 [1] : vector<17x17xf32> to vector<17xf32>
    %82 = vector.shape_cast %81 : vector<17xf32> to vector<17x1xf32>
    %83 = tpu.reciprocal %82 {approx = true} : vector<17x1xf32> -> vector<17x1xf32>
    %84 = vector.broadcast %83 : vector<17x1xf32> to vector<17x17xf32>
    %85 = arith.mulf %80, %84 : vector<17x17xf32>
    %86 = arith.truncf %85 : vector<17x17xf32> to vector<17x17xbf16>
    %cst_28 = arith.constant dense<0.000000e+00> : vector<17x32xf32>
    %87 = tpu.matmul %86, %74, %cst_28 {dimension_numbers = #tpu.dot_dimension_numbers<[1], [0], [0], [1], [0, 0, 1, 1], [], []>} : vector<17x17xbf16>, vector<17x32xbf16>, vector<17x32xf32> -> vector<17x32xf32>
    %88 = vector.extract_strided_slice %47 {offsets = [0, 64], sizes = [17, 32], strides = [1, 1]} : vector<17x128xf32> to vector<17x32xf32>
    %89 = arith.truncf %88 : vector<17x32xf32> to vector<17x32xbf16>
    %90 = vector.extract_strided_slice %48 {offsets = [0, 64], sizes = [17, 32], strides = [1, 1]} : vector<17x128xf32> to vector<17x32xf32>
    %91 = arith.truncf %90 : vector<17x32xf32> to vector<17x32xbf16>
    %92 = vector.extract_strided_slice %49 {offsets = [0, 64], sizes = [17, 32], strides = [1, 1]} : vector<17x128xf32> to vector<17x32xf32>
    %93 = arith.truncf %92 : vector<17x32xf32> to vector<17x32xbf16>
    "tpu.trace_start"() <{level = 10 : i32, message = "qd,kd->qk"}> : () -> ()
    %cst_29 = arith.constant dense<0.000000e+00> : vector<17x17xf32>
    %94 = tpu.matmul %89, %91, %cst_29 {dimension_numbers = #tpu.dot_dimension_numbers<[1], [1], [0], [0], [0, 0, 1, 0], [], []>} : vector<17x32xbf16>, vector<17x32xbf16>, vector<17x17xf32> -> vector<17x17xf32>
    "tpu.trace_stop"() : () -> ()
    %cst_30 = arith.constant dense<0xFF800000> : vector<17xf32>
    %95 = vector.multi_reduction <maximumf>, %94, %cst_30 [1] : vector<17x17xf32> to vector<17xf32>
    %96 = vector.shape_cast %95 : vector<17xf32> to vector<17x1xf32>
    %97 = vector.broadcast %96 : vector<17x1xf32> to vector<17x17xf32>
    %98 = arith.subf %94, %97 : vector<17x17xf32>
    %99 = math.exp %98 : vector<17x17xf32>
    %cst_31 = arith.constant dense<0.000000e+00> : vector<17xf32>
    %100 = vector.multi_reduction <add>, %99, %cst_31 [1] : vector<17x17xf32> to vector<17xf32>
    %101 = vector.shape_cast %100 : vector<17xf32> to vector<17x1xf32>
    %102 = tpu.reciprocal %101 {approx = true} : vector<17x1xf32> -> vector<17x1xf32>
    %103 = vector.broadcast %102 : vector<17x1xf32> to vector<17x17xf32>
    %104 = arith.mulf %99, %103 : vector<17x17xf32>
    %105 = arith.truncf %104 : vector<17x17xf32> to vector<17x17xbf16>
    %cst_32 = arith.constant dense<0.000000e+00> : vector<17x32xf32>
    %106 = tpu.matmul %105, %93, %cst_32 {dimension_numbers = #tpu.dot_dimension_numbers<[1], [0], [0], [1], [0, 0, 1, 1], [], []>} : vector<17x17xbf16>, vector<17x32xbf16>, vector<17x32xf32> -> vector<17x32xf32>
    %107 = vector.extract_strided_slice %47 {offsets = [0, 96], sizes = [17, 32], strides = [1, 1]} : vector<17x128xf32> to vector<17x32xf32>
    %108 = arith.truncf %107 : vector<17x32xf32> to vector<17x32xbf16>
    %109 = vector.extract_strided_slice %48 {offsets = [0, 96], sizes = [17, 32], strides = [1, 1]} : vector<17x128xf32> to vector<17x32xf32>
    %110 = arith.truncf %109 : vector<17x32xf32> to vector<17x32xbf16>
    %111 = vector.extract_strided_slice %49 {offsets = [0, 96], sizes = [17, 32], strides = [1, 1]} : vector<17x128xf32> to vector<17x32xf32>
    %112 = arith.truncf %111 : vector<17x32xf32> to vector<17x32xbf16>
    "tpu.trace_start"() <{level = 10 : i32, message = "qd,kd->qk"}> : () -> ()
    %cst_33 = arith.constant dense<0.000000e+00> : vector<17x17xf32>
    %113 = tpu.matmul %108, %110, %cst_33 {dimension_numbers = #tpu.dot_dimension_numbers<[1], [1], [0], [0], [0, 0, 1, 0], [], []>} : vector<17x32xbf16>, vector<17x32xbf16>, vector<17x17xf32> -> vector<17x17xf32>
    "tpu.trace_stop"() : () -> ()
    %cst_34 = arith.constant dense<0xFF800000> : vector<17xf32>
    %114 = vector.multi_reduction <maximumf>, %113, %cst_34 [1] : vector<17x17xf32> to vector<17xf32>
    %115 = vector.shape_cast %114 : vector<17xf32> to vector<17x1xf32>
    %116 = vector.broadcast %115 : vector<17x1xf32> to vector<17x17xf32>
    %117 = arith.subf %113, %116 : vector<17x17xf32>
    %118 = math.exp %117 : vector<17x17xf32>
    %cst_35 = arith.constant dense<0.000000e+00> : vector<17xf32>
    %119 = vector.multi_reduction <add>, %118, %cst_35 [1] : vector<17x17xf32> to vector<17xf32>
    %120 = vector.shape_cast %119 : vector<17xf32> to vector<17x1xf32>
    %121 = tpu.reciprocal %120 {approx = true} : vector<17x1xf32> -> vector<17x1xf32>
    %122 = vector.broadcast %121 : vector<17x1xf32> to vector<17x17xf32>
    %123 = arith.mulf %118, %122 : vector<17x17xf32>
    %124 = arith.truncf %123 : vector<17x17xf32> to vector<17x17xbf16>
    %cst_36 = arith.constant dense<0.000000e+00> : vector<17x32xf32>
    %125 = tpu.matmul %124, %112, %cst_36 {dimension_numbers = #tpu.dot_dimension_numbers<[1], [0], [0], [1], [0, 0, 1, 1], [], []>} : vector<17x17xbf16>, vector<17x32xbf16>, vector<17x32xf32> -> vector<17x32xf32>
    %126 = tpu.concatenate %68, %87, %106, %125 in 1 : vector<17x32xf32>, vector<17x32xf32>, vector<17x32xf32>, vector<17x32xf32> -> vector<17x128xf32>
    %127 = vector.extract_strided_slice %46 {offsets = [17, 0], sizes = [17, 128], strides = [1, 1]} : vector<34x384xf32> to vector<17x128xf32>
    %128 = vector.extract_strided_slice %46 {offsets = [17, 128], sizes = [17, 128], strides = [1, 1]} : vector<34x384xf32> to vector<17x128xf32>
    %129 = vector.extract_strided_slice %46 {offsets = [17, 256], sizes = [17, 128], strides = [1, 1]} : vector<34x384xf32> to vector<17x128xf32>
    %130 = vector.extract_strided_slice %127 {offsets = [0, 0], sizes = [17, 32], strides = [1, 1]} : vector<17x128xf32> to vector<17x32xf32>
    %131 = arith.truncf %130 : vector<17x32xf32> to vector<17x32xbf16>
    %132 = vector.extract_strided_slice %128 {offsets = [0, 0], sizes = [17, 32], strides = [1, 1]} : vector<17x128xf32> to vector<17x32xf32>
    %133 = arith.truncf %132 : vector<17x32xf32> to vector<17x32xbf16>
    %134 = vector.extract_strided_slice %129 {offsets = [0, 0], sizes = [17, 32], strides = [1, 1]} : vector<17x128xf32> to vector<17x32xf32>
    %135 = arith.truncf %134 : vector<17x32xf32> to vector<17x32xbf16>
    "tpu.trace_start"() <{level = 10 : i32, message = "qd,kd->qk"}> : () -> ()
    %cst_37 = arith.constant dense<0.000000e+00> : vector<17x17xf32>
    %136 = tpu.matmul %131, %133, %cst_37 {dimension_numbers = #tpu.dot_dimension_numbers<[1], [1], [0], [0], [0, 0, 1, 0], [], []>} : vector<17x32xbf16>, vector<17x32xbf16>, vector<17x17xf32> -> vector<17x17xf32>
    "tpu.trace_stop"() : () -> ()
    %cst_38 = arith.constant dense<0xFF800000> : vector<17xf32>
    %137 = vector.multi_reduction <maximumf>, %136, %cst_38 [1] : vector<17x17xf32> to vector<17xf32>
    %138 = vector.shape_cast %137 : vector<17xf32> to vector<17x1xf32>
    %139 = vector.broadcast %138 : vector<17x1xf32> to vector<17x17xf32>
    %140 = arith.subf %136, %139 : vector<17x17xf32>
    %141 = math.exp %140 : vector<17x17xf32>
    %cst_39 = arith.constant dense<0.000000e+00> : vector<17xf32>
    %142 = vector.multi_reduction <add>, %141, %cst_39 [1] : vector<17x17xf32> to vector<17xf32>
    %143 = vector.shape_cast %142 : vector<17xf32> to vector<17x1xf32>
    %144 = tpu.reciprocal %143 {approx = true} : vector<17x1xf32> -> vector<17x1xf32>
    %145 = vector.broadcast %144 : vector<17x1xf32> to vector<17x17xf32>
    %146 = arith.mulf %141, %145 : vector<17x17xf32>
    %147 = arith.truncf %146 : vector<17x17xf32> to vector<17x17xbf16>
    %cst_40 = arith.constant dense<0.000000e+00> : vector<17x32xf32>
    %148 = tpu.matmul %147, %135, %cst_40 {dimension_numbers = #tpu.dot_dimension_numbers<[1], [0], [0], [1], [0, 0, 1, 1], [], []>} : vector<17x17xbf16>, vector<17x32xbf16>, vector<17x32xf32> -> vector<17x32xf32>
    %149 = vector.extract_strided_slice %127 {offsets = [0, 32], sizes = [17, 32], strides = [1, 1]} : vector<17x128xf32> to vector<17x32xf32>
    %150 = arith.truncf %149 : vector<17x32xf32> to vector<17x32xbf16>
    %151 = vector.extract_strided_slice %128 {offsets = [0, 32], sizes = [17, 32], strides = [1, 1]} : vector<17x128xf32> to vector<17x32xf32>
    %152 = arith.truncf %151 : vector<17x32xf32> to vector<17x32xbf16>
    %153 = vector.extract_strided_slice %129 {offsets = [0, 32], sizes = [17, 32], strides = [1, 1]} : vector<17x128xf32> to vector<17x32xf32>
    %154 = arith.truncf %153 : vector<17x32xf32> to vector<17x32xbf16>
    "tpu.trace_start"() <{level = 10 : i32, message = "qd,kd->qk"}> : () -> ()
    %cst_41 = arith.constant dense<0.000000e+00> : vector<17x17xf32>
    %155 = tpu.matmul %150, %152, %cst_41 {dimension_numbers = #tpu.dot_dimension_numbers<[1], [1], [0], [0], [0, 0, 1, 0], [], []>} : vector<17x32xbf16>, vector<17x32xbf16>, vector<17x17xf32> -> vector<17x17xf32>
    "tpu.trace_stop"() : () -> ()
    %cst_42 = arith.constant dense<0xFF800000> : vector<17xf32>
    %156 = vector.multi_reduction <maximumf>, %155, %cst_42 [1] : vector<17x17xf32> to vector<17xf32>
    %157 = vector.shape_cast %156 : vector<17xf32> to vector<17x1xf32>
    %158 = vector.broadcast %157 : vector<17x1xf32> to vector<17x17xf32>
    %159 = arith.subf %155, %158 : vector<17x17xf32>
    %160 = math.exp %159 : vector<17x17xf32>
    %cst_43 = arith.constant dense<0.000000e+00> : vector<17xf32>
    %161 = vector.multi_reduction <add>, %160, %cst_43 [1] : vector<17x17xf32> to vector<17xf32>
    %162 = vector.shape_cast %161 : vector<17xf32> to vector<17x1xf32>
    %163 = tpu.reciprocal %162 {approx = true} : vector<17x1xf32> -> vector<17x1xf32>
    %164 = vector.broadcast %163 : vector<17x1xf32> to vector<17x17xf32>
    %165 = arith.mulf %160, %164 : vector<17x17xf32>
    %166 = arith.truncf %165 : vector<17x17xf32> to vector<17x17xbf16>
    %cst_44 = arith.constant dense<0.000000e+00> : vector<17x32xf32>
    %167 = tpu.matmul %166, %154, %cst_44 {dimension_numbers = #tpu.dot_dimension_numbers<[1], [0], [0], [1], [0, 0, 1, 1], [], []>} : vector<17x17xbf16>, vector<17x32xbf16>, vector<17x32xf32> -> vector<17x32xf32>
    %168 = vector.extract_strided_slice %127 {offsets = [0, 64], sizes = [17, 32], strides = [1, 1]} : vector<17x128xf32> to vector<17x32xf32>
    %169 = arith.truncf %168 : vector<17x32xf32> to vector<17x32xbf16>
    %170 = vector.extract_strided_slice %128 {offsets = [0, 64], sizes = [17, 32], strides = [1, 1]} : vector<17x128xf32> to vector<17x32xf32>
    %171 = arith.truncf %170 : vector<17x32xf32> to vector<17x32xbf16>
    %172 = vector.extract_strided_slice %129 {offsets = [0, 64], sizes = [17, 32], strides = [1, 1]} : vector<17x128xf32> to vector<17x32xf32>
    %173 = arith.truncf %172 : vector<17x32xf32> to vector<17x32xbf16>
    "tpu.trace_start"() <{level = 10 : i32, message = "qd,kd->qk"}> : () -> ()
    %cst_45 = arith.constant dense<0.000000e+00> : vector<17x17xf32>
    %174 = tpu.matmul %169, %171, %cst_45 {dimension_numbers = #tpu.dot_dimension_numbers<[1], [1], [0], [0], [0, 0, 1, 0], [], []>} : vector<17x32xbf16>, vector<17x32xbf16>, vector<17x17xf32> -> vector<17x17xf32>
    "tpu.trace_stop"() : () -> ()
    %cst_46 = arith.constant dense<0xFF800000> : vector<17xf32>
    %175 = vector.multi_reduction <maximumf>, %174, %cst_46 [1] : vector<17x17xf32> to vector<17xf32>
    %176 = vector.shape_cast %175 : vector<17xf32> to vector<17x1xf32>
    %177 = vector.broadcast %176 : vector<17x1xf32> to vector<17x17xf32>
    %178 = arith.subf %174, %177 : vector<17x17xf32>
    %179 = math.exp %178 : vector<17x17xf32>
    %cst_47 = arith.constant dense<0.000000e+00> : vector<17xf32>
    %180 = vector.multi_reduction <add>, %179, %cst_47 [1] : vector<17x17xf32> to vector<17xf32>
    %181 = vector.shape_cast %180 : vector<17xf32> to vector<17x1xf32>
    %182 = tpu.reciprocal %181 {approx = true} : vector<17x1xf32> -> vector<17x1xf32>
    %183 = vector.broadcast %182 : vector<17x1xf32> to vector<17x17xf32>
    %184 = arith.mulf %179, %183 : vector<17x17xf32>
    %185 = arith.truncf %184 : vector<17x17xf32> to vector<17x17xbf16>
    %cst_48 = arith.constant dense<0.000000e+00> : vector<17x32xf32>
    %186 = tpu.matmul %185, %173, %cst_48 {dimension_numbers = #tpu.dot_dimension_numbers<[1], [0], [0], [1], [0, 0, 1, 1], [], []>} : vector<17x17xbf16>, vector<17x32xbf16>, vector<17x32xf32> -> vector<17x32xf32>
    %187 = vector.extract_strided_slice %127 {offsets = [0, 96], sizes = [17, 32], strides = [1, 1]} : vector<17x128xf32> to vector<17x32xf32>
    %188 = arith.truncf %187 : vector<17x32xf32> to vector<17x32xbf16>
    %189 = vector.extract_strided_slice %128 {offsets = [0, 96], sizes = [17, 32], strides = [1, 1]} : vector<17x128xf32> to vector<17x32xf32>
    %190 = arith.truncf %189 : vector<17x32xf32> to vector<17x32xbf16>
    %191 = vector.extract_strided_slice %129 {offsets = [0, 96], sizes = [17, 32], strides = [1, 1]} : vector<17x128xf32> to vector<17x32xf32>
    %192 = arith.truncf %191 : vector<17x32xf32> to vector<17x32xbf16>
    "tpu.trace_start"() <{level = 10 : i32, message = "qd,kd->qk"}> : () -> ()
    %cst_49 = arith.constant dense<0.000000e+00> : vector<17x17xf32>
    %193 = tpu.matmul %188, %190, %cst_49 {dimension_numbers = #tpu.dot_dimension_numbers<[1], [1], [0], [0], [0, 0, 1, 0], [], []>} : vector<17x32xbf16>, vector<17x32xbf16>, vector<17x17xf32> -> vector<17x17xf32>
    "tpu.trace_stop"() : () -> ()
    %cst_50 = arith.constant dense<0xFF800000> : vector<17xf32>
    %194 = vector.multi_reduction <maximumf>, %193, %cst_50 [1] : vector<17x17xf32> to vector<17xf32>
    %195 = vector.shape_cast %194 : vector<17xf32> to vector<17x1xf32>
    %196 = vector.broadcast %195 : vector<17x1xf32> to vector<17x17xf32>
    %197 = arith.subf %193, %196 : vector<17x17xf32>
    %198 = math.exp %197 : vector<17x17xf32>
    %cst_51 = arith.constant dense<0.000000e+00> : vector<17xf32>
    %199 = vector.multi_reduction <add>, %198, %cst_51 [1] : vector<17x17xf32> to vector<17xf32>
    %200 = vector.shape_cast %199 : vector<17xf32> to vector<17x1xf32>
    %201 = tpu.reciprocal %200 {approx = true} : vector<17x1xf32> -> vector<17x1xf32>
    %202 = vector.broadcast %201 : vector<17x1xf32> to vector<17x17xf32>
    %203 = arith.mulf %198, %202 : vector<17x17xf32>
    %204 = arith.truncf %203 : vector<17x17xf32> to vector<17x17xbf16>
    %cst_52 = arith.constant dense<0.000000e+00> : vector<17x32xf32>
    %205 = tpu.matmul %204, %192, %cst_52 {dimension_numbers = #tpu.dot_dimension_numbers<[1], [0], [0], [1], [0, 0, 1, 1], [], []>} : vector<17x17xbf16>, vector<17x32xbf16>, vector<17x32xf32> -> vector<17x32xf32>
    %206 = tpu.concatenate %148, %167, %186, %205 in 1 : vector<17x32xf32>, vector<17x32xf32>, vector<17x32xf32>, vector<17x32xf32> -> vector<17x128xf32>
    %207 = tpu.concatenate %126, %206 in 0 : vector<17x128xf32>, vector<17x128xf32> -> vector<34x128xf32>
    %208 = arith.truncf %207 : vector<34x128xf32> to vector<34x128xbf16>
    %c0_53 = arith.constant 0 : index
    %c0_54 = arith.constant 0 : index
    %c0_55 = arith.constant 0 : index
    %209 = vector.load %arg5[%c0_53, %c0_54, %c0_55] : memref<2x128x128xbf16, #tpu.memory_space<vmem>>, vector<1x128x128xbf16>
    %210 = vector.shape_cast %209 : vector<1x128x128xbf16> to vector<128x128xbf16>
    %cst_56 = arith.constant dense<0.000000e+00> : vector<34x128xf32>
    %211 = tpu.matmul %208, %210, %cst_56 {dimension_numbers = #tpu.dot_dimension_numbers<[1], [0], [0], [1], [0, 0, 1, 1], [], []>} : vector<34x128xbf16>, vector<128x128xbf16>, vector<34x128xf32> -> vector<34x128xf32>
    %212 = arith.addf %8, %211 : vector<34x128xf32>
    %213 = vector.broadcast %15 : vector<1x128xf32> to vector<34x128xf32>
    %214 = arith.addf %212, %213 : vector<34x128xf32>
    %cst_57 = arith.constant dense<0.000000e+00> : vector<34xf32>
    %215 = vector.multi_reduction <add>, %214, %cst_57 [1] : vector<34x128xf32> to vector<34xf32>
    %216 = vector.shape_cast %215 : vector<34xf32> to vector<34x1xf32>
    %cst_58 = arith.constant 1.280000e+02 : f32
    %217 = vector.broadcast %cst_58 : f32 to vector<34x1xf32>
    %218 = arith.divf %216, %217 : vector<34x1xf32>
    %219 = vector.broadcast %218 : vector<34x1xf32> to vector<34x128xf32>
    %220 = arith.subf %214, %219 : vector<34x128xf32>
    %221 = arith.mulf %220, %220 : vector<34x128xf32>
    %cst_59 = arith.constant dense<0.000000e+00> : vector<34xf32>
    %222 = vector.multi_reduction <add>, %221, %cst_59 [1] : vector<34x128xf32> to vector<34xf32>
    %223 = vector.shape_cast %222 : vector<34xf32> to vector<34x1xf32>
    %cst_60 = arith.constant 1.280000e+02 : f32
    %224 = vector.broadcast %cst_60 : f32 to vector<34x1xf32>
    %225 = arith.divf %223, %224 : vector<34x1xf32>
    %226 = vector.broadcast %218 : vector<34x1xf32> to vector<34x128xf32>
    %227 = arith.subf %214, %226 : vector<34x128xf32>
    %cst_61 = arith.constant 9.99999997E-7 : f32
    %228 = vector.broadcast %cst_61 : f32 to vector<34x1xf32>
    %229 = arith.addf %225, %228 : vector<34x1xf32>
    %230 = math.rsqrt %229 : vector<34x1xf32>
    %231 = vector.broadcast %230 : vector<34x1xf32> to vector<34x128xf32>
    %232 = arith.mulf %227, %231 : vector<34x128xf32>
    %233 = vector.broadcast %13 : vector<1x128xf32> to vector<34x128xf32>
    %234 = arith.mulf %232, %233 : vector<34x128xf32>
    %235 = vector.broadcast %14 : vector<1x128xf32> to vector<34x128xf32>
    %236 = arith.addf %234, %235 : vector<34x128xf32>
    %237 = arith.truncf %236 : vector<34x128xf32> to vector<34x128xbf16>
    %c0_62 = arith.constant 0 : index
    %c0_63 = arith.constant 0 : index
    %c0_64 = arith.constant 0 : index
    %238 = vector.load %arg6[%c0_62, %c0_63, %c0_64] : memref<2x128x256xbf16, #tpu.memory_space<vmem>>, vector<1x128x256xbf16>
    %239 = vector.shape_cast %238 : vector<1x128x256xbf16> to vector<128x256xbf16>
    %cst_65 = arith.constant dense<0.000000e+00> : vector<34x256xf32>
    %240 = tpu.matmul %237, %239, %cst_65 {dimension_numbers = #tpu.dot_dimension_numbers<[1], [0], [0], [1], [0, 0, 1, 1], [], []>} : vector<34x128xbf16>, vector<128x256xbf16>, vector<34x256xf32> -> vector<34x256xf32>
    %c0_66 = arith.constant 0 : index
    %c0_67 = arith.constant 0 : index
    %c0_68 = arith.constant 0 : index
    %241 = vector.load %arg7[%c0_66, %c0_67, %c0_68] : memref<2x1x256xf32, #tpu.memory_space<vmem>>, vector<1x1x256xf32>
    %242 = vector.shape_cast %241 : vector<1x1x256xf32> to vector<1x256xf32>
    %243 = vector.broadcast %242 : vector<1x256xf32> to vector<34x256xf32>
    %244 = arith.addf %240, %243 : vector<34x256xf32>
    %cst_69 = arith.constant 5.000000e-01 : f32
    %245 = vector.broadcast %cst_69 : f32 to vector<34x256xf32>
    %246 = arith.mulf %245, %244 : vector<34x256xf32>
    %cst_70 = arith.constant 4.471500e-02 : f32
    %247 = vector.broadcast %cst_70 : f32 to vector<34x256xf32>
    %248 = arith.mulf %247, %244 : vector<34x256xf32>
    %249 = arith.mulf %248, %244 : vector<34x256xf32>
    %250 = arith.mulf %249, %244 : vector<34x256xf32>
    %251 = arith.addf %244, %250 : vector<34x256xf32>
    %cst_71 = arith.constant 0.797884583 : f32
    %252 = vector.broadcast %cst_71 : f32 to vector<34x256xf32>
    %253 = arith.mulf %252, %251 : vector<34x256xf32>
    %254 = math.tanh %253 : vector<34x256xf32>
    %cst_72 = arith.constant 1.000000e+00 : f32
    %255 = vector.broadcast %cst_72 : f32 to vector<34x256xf32>
    %256 = arith.addf %255, %254 : vector<34x256xf32>
    %257 = arith.mulf %246, %256 : vector<34x256xf32>
    %258 = arith.truncf %257 : vector<34x256xf32> to vector<34x256xbf16>
    %c0_73 = arith.constant 0 : index
    %c0_74 = arith.constant 0 : index
    %c0_75 = arith.constant 0 : index
    %259 = vector.load %arg8[%c0_73, %c0_74, %c0_75] : memref<2x256x128xbf16, #tpu.memory_space<vmem>>, vector<1x256x128xbf16>
    %260 = vector.shape_cast %259 : vector<1x256x128xbf16> to vector<256x128xbf16>
    %cst_76 = arith.constant dense<0.000000e+00> : vector<34x128xf32>
    %261 = tpu.matmul %258, %260, %cst_76 {dimension_numbers = #tpu.dot_dimension_numbers<[1], [0], [0], [1], [0, 0, 1, 1], [], []>} : vector<34x256xbf16>, vector<256x128xbf16>, vector<34x128xf32> -> vector<34x128xf32>
    %262 = arith.addf %214, %261 : vector<34x128xf32>
    %263 = vector.broadcast %16 : vector<1x128xf32> to vector<34x128xf32>
    %264 = arith.addf %262, %263 : vector<34x128xf32>
    %c1 = arith.constant 1 : index
    %c0_77 = arith.constant 0 : index
    %c0_78 = arith.constant 0 : index
    %265 = vector.load %arg9[%c1, %c0_77, %c0_78] : memref<2x8x128xf32, #tpu.memory_space<vmem>>, vector<1x8x128xf32>
    %266 = vector.shape_cast %265 : vector<1x8x128xf32> to vector<8x128xf32>
    %267 = vector.extract_strided_slice %266 {offsets = [0, 0], sizes = [1, 128], strides = [1, 1]} : vector<8x128xf32> to vector<1x128xf32>
    %268 = vector.extract_strided_slice %266 {offsets = [1, 0], sizes = [1, 128], strides = [1, 1]} : vector<8x128xf32> to vector<1x128xf32>
    %269 = vector.extract_strided_slice %266 {offsets = [2, 0], sizes = [1, 128], strides = [1, 1]} : vector<8x128xf32> to vector<1x128xf32>
    %270 = vector.extract_strided_slice %266 {offsets = [3, 0], sizes = [1, 128], strides = [1, 1]} : vector<8x128xf32> to vector<1x128xf32>
    %271 = vector.extract_strided_slice %266 {offsets = [4, 0], sizes = [1, 128], strides = [1, 1]} : vector<8x128xf32> to vector<1x128xf32>
    %272 = vector.extract_strided_slice %266 {offsets = [5, 0], sizes = [1, 128], strides = [1, 1]} : vector<8x128xf32> to vector<1x128xf32>
    %cst_79 = arith.constant dense<0.000000e+00> : vector<34xf32>
    %273 = vector.multi_reduction <add>, %264, %cst_79 [1] : vector<34x128xf32> to vector<34xf32>
    %274 = vector.shape_cast %273 : vector<34xf32> to vector<34x1xf32>
    %cst_80 = arith.constant 1.280000e+02 : f32
    %275 = vector.broadcast %cst_80 : f32 to vector<34x1xf32>
    %276 = arith.divf %274, %275 : vector<34x1xf32>
    %277 = vector.broadcast %276 : vector<34x1xf32> to vector<34x128xf32>
    %278 = arith.subf %264, %277 : vector<34x128xf32>
    %279 = arith.mulf %278, %278 : vector<34x128xf32>
    %cst_81 = arith.constant dense<0.000000e+00> : vector<34xf32>
    %280 = vector.multi_reduction <add>, %279, %cst_81 [1] : vector<34x128xf32> to vector<34xf32>
    %281 = vector.shape_cast %280 : vector<34xf32> to vector<34x1xf32>
    %cst_82 = arith.constant 1.280000e+02 : f32
    %282 = vector.broadcast %cst_82 : f32 to vector<34x1xf32>
    %283 = arith.divf %281, %282 : vector<34x1xf32>
    %284 = vector.broadcast %276 : vector<34x1xf32> to vector<34x128xf32>
    %285 = arith.subf %264, %284 : vector<34x128xf32>
    %cst_83 = arith.constant 9.99999997E-7 : f32
    %286 = vector.broadcast %cst_83 : f32 to vector<34x1xf32>
    %287 = arith.addf %283, %286 : vector<34x1xf32>
    %288 = math.rsqrt %287 : vector<34x1xf32>
    %289 = vector.broadcast %288 : vector<34x1xf32> to vector<34x128xf32>
    %290 = arith.mulf %285, %289 : vector<34x128xf32>
    %291 = vector.broadcast %267 : vector<1x128xf32> to vector<34x128xf32>
    %292 = arith.mulf %290, %291 : vector<34x128xf32>
    %293 = vector.broadcast %268 : vector<1x128xf32> to vector<34x128xf32>
    %294 = arith.addf %292, %293 : vector<34x128xf32>
    %295 = arith.truncf %294 : vector<34x128xf32> to vector<34x128xbf16>
    %c1_84 = arith.constant 1 : index
    %c0_85 = arith.constant 0 : index
    %c0_86 = arith.constant 0 : index
    %296 = vector.load %arg3[%c1_84, %c0_85, %c0_86] : memref<2x128x384xbf16, #tpu.memory_space<vmem>>, vector<1x128x384xbf16>
    %297 = vector.shape_cast %296 : vector<1x128x384xbf16> to vector<128x384xbf16>
    %cst_87 = arith.constant dense<0.000000e+00> : vector<34x384xf32>
    %298 = tpu.matmul %295, %297, %cst_87 {dimension_numbers = #tpu.dot_dimension_numbers<[1], [0], [0], [1], [0, 0, 1, 1], [], []>} : vector<34x128xbf16>, vector<128x384xbf16>, vector<34x384xf32> -> vector<34x384xf32>
    %c1_88 = arith.constant 1 : index
    %c0_89 = arith.constant 0 : index
    %c0_90 = arith.constant 0 : index
    %299 = vector.load %arg4[%c1_88, %c0_89, %c0_90] : memref<2x1x384xf32, #tpu.memory_space<vmem>>, vector<1x1x384xf32>
    %300 = vector.shape_cast %299 : vector<1x1x384xf32> to vector<1x384xf32>
    %301 = vector.broadcast %300 : vector<1x384xf32> to vector<34x384xf32>
    %302 = arith.addf %298, %301 : vector<34x384xf32>
    %303 = vector.extract_strided_slice %302 {offsets = [0, 0], sizes = [17, 128], strides = [1, 1]} : vector<34x384xf32> to vector<17x128xf32>
    %304 = vector.extract_strided_slice %302 {offsets = [0, 128], sizes = [17, 128], strides = [1, 1]} : vector<34x384xf32> to vector<17x128xf32>
    %305 = vector.extract_strided_slice %302 {offsets = [0, 256], sizes = [17, 128], strides = [1, 1]} : vector<34x384xf32> to vector<17x128xf32>
    %306 = vector.extract_strided_slice %303 {offsets = [0, 0], sizes = [17, 32], strides = [1, 1]} : vector<17x128xf32> to vector<17x32xf32>
    %307 = arith.truncf %306 : vector<17x32xf32> to vector<17x32xbf16>
    %308 = vector.extract_strided_slice %304 {offsets = [0, 0], sizes = [17, 32], strides = [1, 1]} : vector<17x128xf32> to vector<17x32xf32>
    %309 = arith.truncf %308 : vector<17x32xf32> to vector<17x32xbf16>
    %310 = vector.extract_strided_slice %305 {offsets = [0, 0], sizes = [17, 32], strides = [1, 1]} : vector<17x128xf32> to vector<17x32xf32>
    %311 = arith.truncf %310 : vector<17x32xf32> to vector<17x32xbf16>
    "tpu.trace_start"() <{level = 10 : i32, message = "qd,kd->qk"}> : () -> ()
    %cst_91 = arith.constant dense<0.000000e+00> : vector<17x17xf32>
    %312 = tpu.matmul %307, %309, %cst_91 {dimension_numbers = #tpu.dot_dimension_numbers<[1], [1], [0], [0], [0, 0, 1, 0], [], []>} : vector<17x32xbf16>, vector<17x32xbf16>, vector<17x17xf32> -> vector<17x17xf32>
    "tpu.trace_stop"() : () -> ()
    %cst_92 = arith.constant dense<0xFF800000> : vector<17xf32>
    %313 = vector.multi_reduction <maximumf>, %312, %cst_92 [1] : vector<17x17xf32> to vector<17xf32>
    %314 = vector.shape_cast %313 : vector<17xf32> to vector<17x1xf32>
    %315 = vector.broadcast %314 : vector<17x1xf32> to vector<17x17xf32>
    %316 = arith.subf %312, %315 : vector<17x17xf32>
    %317 = math.exp %316 : vector<17x17xf32>
    %cst_93 = arith.constant dense<0.000000e+00> : vector<17xf32>
    %318 = vector.multi_reduction <add>, %317, %cst_93 [1] : vector<17x17xf32> to vector<17xf32>
    %319 = vector.shape_cast %318 : vector<17xf32> to vector<17x1xf32>
    %320 = tpu.reciprocal %319 {approx = true} : vector<17x1xf32> -> vector<17x1xf32>
    %321 = vector.broadcast %320 : vector<17x1xf32> to vector<17x17xf32>
    %322 = arith.mulf %317, %321 : vector<17x17xf32>
    %323 = arith.truncf %322 : vector<17x17xf32> to vector<17x17xbf16>
    %cst_94 = arith.constant dense<0.000000e+00> : vector<17x32xf32>
    %324 = tpu.matmul %323, %311, %cst_94 {dimension_numbers = #tpu.dot_dimension_numbers<[1], [0], [0], [1], [0, 0, 1, 1], [], []>} : vector<17x17xbf16>, vector<17x32xbf16>, vector<17x32xf32> -> vector<17x32xf32>
    %325 = vector.extract_strided_slice %303 {offsets = [0, 32], sizes = [17, 32], strides = [1, 1]} : vector<17x128xf32> to vector<17x32xf32>
    %326 = arith.truncf %325 : vector<17x32xf32> to vector<17x32xbf16>
    %327 = vector.extract_strided_slice %304 {offsets = [0, 32], sizes = [17, 32], strides = [1, 1]} : vector<17x128xf32> to vector<17x32xf32>
    %328 = arith.truncf %327 : vector<17x32xf32> to vector<17x32xbf16>
    %329 = vector.extract_strided_slice %305 {offsets = [0, 32], sizes = [17, 32], strides = [1, 1]} : vector<17x128xf32> to vector<17x32xf32>
    %330 = arith.truncf %329 : vector<17x32xf32> to vector<17x32xbf16>
    "tpu.trace_start"() <{level = 10 : i32, message = "qd,kd->qk"}> : () -> ()
    %cst_95 = arith.constant dense<0.000000e+00> : vector<17x17xf32>
    %331 = tpu.matmul %326, %328, %cst_95 {dimension_numbers = #tpu.dot_dimension_numbers<[1], [1], [0], [0], [0, 0, 1, 0], [], []>} : vector<17x32xbf16>, vector<17x32xbf16>, vector<17x17xf32> -> vector<17x17xf32>
    "tpu.trace_stop"() : () -> ()
    %cst_96 = arith.constant dense<0xFF800000> : vector<17xf32>
    %332 = vector.multi_reduction <maximumf>, %331, %cst_96 [1] : vector<17x17xf32> to vector<17xf32>
    %333 = vector.shape_cast %332 : vector<17xf32> to vector<17x1xf32>
    %334 = vector.broadcast %333 : vector<17x1xf32> to vector<17x17xf32>
    %335 = arith.subf %331, %334 : vector<17x17xf32>
    %336 = math.exp %335 : vector<17x17xf32>
    %cst_97 = arith.constant dense<0.000000e+00> : vector<17xf32>
    %337 = vector.multi_reduction <add>, %336, %cst_97 [1] : vector<17x17xf32> to vector<17xf32>
    %338 = vector.shape_cast %337 : vector<17xf32> to vector<17x1xf32>
    %339 = tpu.reciprocal %338 {approx = true} : vector<17x1xf32> -> vector<17x1xf32>
    %340 = vector.broadcast %339 : vector<17x1xf32> to vector<17x17xf32>
    %341 = arith.mulf %336, %340 : vector<17x17xf32>
    %342 = arith.truncf %341 : vector<17x17xf32> to vector<17x17xbf16>
    %cst_98 = arith.constant dense<0.000000e+00> : vector<17x32xf32>
    %343 = tpu.matmul %342, %330, %cst_98 {dimension_numbers = #tpu.dot_dimension_numbers<[1], [0], [0], [1], [0, 0, 1, 1], [], []>} : vector<17x17xbf16>, vector<17x32xbf16>, vector<17x32xf32> -> vector<17x32xf32>
    %344 = vector.extract_strided_slice %303 {offsets = [0, 64], sizes = [17, 32], strides = [1, 1]} : vector<17x128xf32> to vector<17x32xf32>
    %345 = arith.truncf %344 : vector<17x32xf32> to vector<17x32xbf16>
    %346 = vector.extract_strided_slice %304 {offsets = [0, 64], sizes = [17, 32], strides = [1, 1]} : vector<17x128xf32> to vector<17x32xf32>
    %347 = arith.truncf %346 : vector<17x32xf32> to vector<17x32xbf16>
    %348 = vector.extract_strided_slice %305 {offsets = [0, 64], sizes = [17, 32], strides = [1, 1]} : vector<17x128xf32> to vector<17x32xf32>
    %349 = arith.truncf %348 : vector<17x32xf32> to vector<17x32xbf16>
    "tpu.trace_start"() <{level = 10 : i32, message = "qd,kd->qk"}> : () -> ()
    %cst_99 = arith.constant dense<0.000000e+00> : vector<17x17xf32>
    %350 = tpu.matmul %345, %347, %cst_99 {dimension_numbers = #tpu.dot_dimension_numbers<[1], [1], [0], [0], [0, 0, 1, 0], [], []>} : vector<17x32xbf16>, vector<17x32xbf16>, vector<17x17xf32> -> vector<17x17xf32>
    "tpu.trace_stop"() : () -> ()
    %cst_100 = arith.constant dense<0xFF800000> : vector<17xf32>
    %351 = vector.multi_reduction <maximumf>, %350, %cst_100 [1] : vector<17x17xf32> to vector<17xf32>
    %352 = vector.shape_cast %351 : vector<17xf32> to vector<17x1xf32>
    %353 = vector.broadcast %352 : vector<17x1xf32> to vector<17x17xf32>
    %354 = arith.subf %350, %353 : vector<17x17xf32>
    %355 = math.exp %354 : vector<17x17xf32>
    %cst_101 = arith.constant dense<0.000000e+00> : vector<17xf32>
    %356 = vector.multi_reduction <add>, %355, %cst_101 [1] : vector<17x17xf32> to vector<17xf32>
    %357 = vector.shape_cast %356 : vector<17xf32> to vector<17x1xf32>
    %358 = tpu.reciprocal %357 {approx = true} : vector<17x1xf32> -> vector<17x1xf32>
    %359 = vector.broadcast %358 : vector<17x1xf32> to vector<17x17xf32>
    %360 = arith.mulf %355, %359 : vector<17x17xf32>
    %361 = arith.truncf %360 : vector<17x17xf32> to vector<17x17xbf16>
    %cst_102 = arith.constant dense<0.000000e+00> : vector<17x32xf32>
    %362 = tpu.matmul %361, %349, %cst_102 {dimension_numbers = #tpu.dot_dimension_numbers<[1], [0], [0], [1], [0, 0, 1, 1], [], []>} : vector<17x17xbf16>, vector<17x32xbf16>, vector<17x32xf32> -> vector<17x32xf32>
    %363 = vector.extract_strided_slice %303 {offsets = [0, 96], sizes = [17, 32], strides = [1, 1]} : vector<17x128xf32> to vector<17x32xf32>
    %364 = arith.truncf %363 : vector<17x32xf32> to vector<17x32xbf16>
    %365 = vector.extract_strided_slice %304 {offsets = [0, 96], sizes = [17, 32], strides = [1, 1]} : vector<17x128xf32> to vector<17x32xf32>
    %366 = arith.truncf %365 : vector<17x32xf32> to vector<17x32xbf16>
    %367 = vector.extract_strided_slice %305 {offsets = [0, 96], sizes = [17, 32], strides = [1, 1]} : vector<17x128xf32> to vector<17x32xf32>
    %368 = arith.truncf %367 : vector<17x32xf32> to vector<17x32xbf16>
    "tpu.trace_start"() <{level = 10 : i32, message = "qd,kd->qk"}> : () -> ()
    %cst_103 = arith.constant dense<0.000000e+00> : vector<17x17xf32>
    %369 = tpu.matmul %364, %366, %cst_103 {dimension_numbers = #tpu.dot_dimension_numbers<[1], [1], [0], [0], [0, 0, 1, 0], [], []>} : vector<17x32xbf16>, vector<17x32xbf16>, vector<17x17xf32> -> vector<17x17xf32>
    "tpu.trace_stop"() : () -> ()
    %cst_104 = arith.constant dense<0xFF800000> : vector<17xf32>
    %370 = vector.multi_reduction <maximumf>, %369, %cst_104 [1] : vector<17x17xf32> to vector<17xf32>
    %371 = vector.shape_cast %370 : vector<17xf32> to vector<17x1xf32>
    %372 = vector.broadcast %371 : vector<17x1xf32> to vector<17x17xf32>
    %373 = arith.subf %369, %372 : vector<17x17xf32>
    %374 = math.exp %373 : vector<17x17xf32>
    %cst_105 = arith.constant dense<0.000000e+00> : vector<17xf32>
    %375 = vector.multi_reduction <add>, %374, %cst_105 [1] : vector<17x17xf32> to vector<17xf32>
    %376 = vector.shape_cast %375 : vector<17xf32> to vector<17x1xf32>
    %377 = tpu.reciprocal %376 {approx = true} : vector<17x1xf32> -> vector<17x1xf32>
    %378 = vector.broadcast %377 : vector<17x1xf32> to vector<17x17xf32>
    %379 = arith.mulf %374, %378 : vector<17x17xf32>
    %380 = arith.truncf %379 : vector<17x17xf32> to vector<17x17xbf16>
    %cst_106 = arith.constant dense<0.000000e+00> : vector<17x32xf32>
    %381 = tpu.matmul %380, %368, %cst_106 {dimension_numbers = #tpu.dot_dimension_numbers<[1], [0], [0], [1], [0, 0, 1, 1], [], []>} : vector<17x17xbf16>, vector<17x32xbf16>, vector<17x32xf32> -> vector<17x32xf32>
    %382 = tpu.concatenate %324, %343, %362, %381 in 1 : vector<17x32xf32>, vector<17x32xf32>, vector<17x32xf32>, vector<17x32xf32> -> vector<17x128xf32>
    %383 = vector.extract_strided_slice %302 {offsets = [17, 0], sizes = [17, 128], strides = [1, 1]} : vector<34x384xf32> to vector<17x128xf32>
    %384 = vector.extract_strided_slice %302 {offsets = [17, 128], sizes = [17, 128], strides = [1, 1]} : vector<34x384xf32> to vector<17x128xf32>
    %385 = vector.extract_strided_slice %302 {offsets = [17, 256], sizes = [17, 128], strides = [1, 1]} : vector<34x384xf32> to vector<17x128xf32>
    %386 = vector.extract_strided_slice %383 {offsets = [0, 0], sizes = [17, 32], strides = [1, 1]} : vector<17x128xf32> to vector<17x32xf32>
    %387 = arith.truncf %386 : vector<17x32xf32> to vector<17x32xbf16>
    %388 = vector.extract_strided_slice %384 {offsets = [0, 0], sizes = [17, 32], strides = [1, 1]} : vector<17x128xf32> to vector<17x32xf32>
    %389 = arith.truncf %388 : vector<17x32xf32> to vector<17x32xbf16>
    %390 = vector.extract_strided_slice %385 {offsets = [0, 0], sizes = [17, 32], strides = [1, 1]} : vector<17x128xf32> to vector<17x32xf32>
    %391 = arith.truncf %390 : vector<17x32xf32> to vector<17x32xbf16>
    "tpu.trace_start"() <{level = 10 : i32, message = "qd,kd->qk"}> : () -> ()
    %cst_107 = arith.constant dense<0.000000e+00> : vector<17x17xf32>
    %392 = tpu.matmul %387, %389, %cst_107 {dimension_numbers = #tpu.dot_dimension_numbers<[1], [1], [0], [0], [0, 0, 1, 0], [], []>} : vector<17x32xbf16>, vector<17x32xbf16>, vector<17x17xf32> -> vector<17x17xf32>
    "tpu.trace_stop"() : () -> ()
    %cst_108 = arith.constant dense<0xFF800000> : vector<17xf32>
    %393 = vector.multi_reduction <maximumf>, %392, %cst_108 [1] : vector<17x17xf32> to vector<17xf32>
    %394 = vector.shape_cast %393 : vector<17xf32> to vector<17x1xf32>
    %395 = vector.broadcast %394 : vector<17x1xf32> to vector<17x17xf32>
    %396 = arith.subf %392, %395 : vector<17x17xf32>
    %397 = math.exp %396 : vector<17x17xf32>
    %cst_109 = arith.constant dense<0.000000e+00> : vector<17xf32>
    %398 = vector.multi_reduction <add>, %397, %cst_109 [1] : vector<17x17xf32> to vector<17xf32>
    %399 = vector.shape_cast %398 : vector<17xf32> to vector<17x1xf32>
    %400 = tpu.reciprocal %399 {approx = true} : vector<17x1xf32> -> vector<17x1xf32>
    %401 = vector.broadcast %400 : vector<17x1xf32> to vector<17x17xf32>
    %402 = arith.mulf %397, %401 : vector<17x17xf32>
    %403 = arith.truncf %402 : vector<17x17xf32> to vector<17x17xbf16>
    %cst_110 = arith.constant dense<0.000000e+00> : vector<17x32xf32>
    %404 = tpu.matmul %403, %391, %cst_110 {dimension_numbers = #tpu.dot_dimension_numbers<[1], [0], [0], [1], [0, 0, 1, 1], [], []>} : vector<17x17xbf16>, vector<17x32xbf16>, vector<17x32xf32> -> vector<17x32xf32>
    %405 = vector.extract_strided_slice %383 {offsets = [0, 32], sizes = [17, 32], strides = [1, 1]} : vector<17x128xf32> to vector<17x32xf32>
    %406 = arith.truncf %405 : vector<17x32xf32> to vector<17x32xbf16>
    %407 = vector.extract_strided_slice %384 {offsets = [0, 32], sizes = [17, 32], strides = [1, 1]} : vector<17x128xf32> to vector<17x32xf32>
    %408 = arith.truncf %407 : vector<17x32xf32> to vector<17x32xbf16>
    %409 = vector.extract_strided_slice %385 {offsets = [0, 32], sizes = [17, 32], strides = [1, 1]} : vector<17x128xf32> to vector<17x32xf32>
    %410 = arith.truncf %409 : vector<17x32xf32> to vector<17x32xbf16>
    "tpu.trace_start"() <{level = 10 : i32, message = "qd,kd->qk"}> : () -> ()
    %cst_111 = arith.constant dense<0.000000e+00> : vector<17x17xf32>
    %411 = tpu.matmul %406, %408, %cst_111 {dimension_numbers = #tpu.dot_dimension_numbers<[1], [1], [0], [0], [0, 0, 1, 0], [], []>} : vector<17x32xbf16>, vector<17x32xbf16>, vector<17x17xf32> -> vector<17x17xf32>
    "tpu.trace_stop"() : () -> ()
    %cst_112 = arith.constant dense<0xFF800000> : vector<17xf32>
    %412 = vector.multi_reduction <maximumf>, %411, %cst_112 [1] : vector<17x17xf32> to vector<17xf32>
    %413 = vector.shape_cast %412 : vector<17xf32> to vector<17x1xf32>
    %414 = vector.broadcast %413 : vector<17x1xf32> to vector<17x17xf32>
    %415 = arith.subf %411, %414 : vector<17x17xf32>
    %416 = math.exp %415 : vector<17x17xf32>
    %cst_113 = arith.constant dense<0.000000e+00> : vector<17xf32>
    %417 = vector.multi_reduction <add>, %416, %cst_113 [1] : vector<17x17xf32> to vector<17xf32>
    %418 = vector.shape_cast %417 : vector<17xf32> to vector<17x1xf32>
    %419 = tpu.reciprocal %418 {approx = true} : vector<17x1xf32> -> vector<17x1xf32>
    %420 = vector.broadcast %419 : vector<17x1xf32> to vector<17x17xf32>
    %421 = arith.mulf %416, %420 : vector<17x17xf32>
    %422 = arith.truncf %421 : vector<17x17xf32> to vector<17x17xbf16>
    %cst_114 = arith.constant dense<0.000000e+00> : vector<17x32xf32>
    %423 = tpu.matmul %422, %410, %cst_114 {dimension_numbers = #tpu.dot_dimension_numbers<[1], [0], [0], [1], [0, 0, 1, 1], [], []>} : vector<17x17xbf16>, vector<17x32xbf16>, vector<17x32xf32> -> vector<17x32xf32>
    %424 = vector.extract_strided_slice %383 {offsets = [0, 64], sizes = [17, 32], strides = [1, 1]} : vector<17x128xf32> to vector<17x32xf32>
    %425 = arith.truncf %424 : vector<17x32xf32> to vector<17x32xbf16>
    %426 = vector.extract_strided_slice %384 {offsets = [0, 64], sizes = [17, 32], strides = [1, 1]} : vector<17x128xf32> to vector<17x32xf32>
    %427 = arith.truncf %426 : vector<17x32xf32> to vector<17x32xbf16>
    %428 = vector.extract_strided_slice %385 {offsets = [0, 64], sizes = [17, 32], strides = [1, 1]} : vector<17x128xf32> to vector<17x32xf32>
    %429 = arith.truncf %428 : vector<17x32xf32> to vector<17x32xbf16>
    "tpu.trace_start"() <{level = 10 : i32, message = "qd,kd->qk"}> : () -> ()
    %cst_115 = arith.constant dense<0.000000e+00> : vector<17x17xf32>
    %430 = tpu.matmul %425, %427, %cst_115 {dimension_numbers = #tpu.dot_dimension_numbers<[1], [1], [0], [0], [0, 0, 1, 0], [], []>} : vector<17x32xbf16>, vector<17x32xbf16>, vector<17x17xf32> -> vector<17x17xf32>
    "tpu.trace_stop"() : () -> ()
    %cst_116 = arith.constant dense<0xFF800000> : vector<17xf32>
    %431 = vector.multi_reduction <maximumf>, %430, %cst_116 [1] : vector<17x17xf32> to vector<17xf32>
    %432 = vector.shape_cast %431 : vector<17xf32> to vector<17x1xf32>
    %433 = vector.broadcast %432 : vector<17x1xf32> to vector<17x17xf32>
    %434 = arith.subf %430, %433 : vector<17x17xf32>
    %435 = math.exp %434 : vector<17x17xf32>
    %cst_117 = arith.constant dense<0.000000e+00> : vector<17xf32>
    %436 = vector.multi_reduction <add>, %435, %cst_117 [1] : vector<17x17xf32> to vector<17xf32>
    %437 = vector.shape_cast %436 : vector<17xf32> to vector<17x1xf32>
    %438 = tpu.reciprocal %437 {approx = true} : vector<17x1xf32> -> vector<17x1xf32>
    %439 = vector.broadcast %438 : vector<17x1xf32> to vector<17x17xf32>
    %440 = arith.mulf %435, %439 : vector<17x17xf32>
    %441 = arith.truncf %440 : vector<17x17xf32> to vector<17x17xbf16>
    %cst_118 = arith.constant dense<0.000000e+00> : vector<17x32xf32>
    %442 = tpu.matmul %441, %429, %cst_118 {dimension_numbers = #tpu.dot_dimension_numbers<[1], [0], [0], [1], [0, 0, 1, 1], [], []>} : vector<17x17xbf16>, vector<17x32xbf16>, vector<17x32xf32> -> vector<17x32xf32>
    %443 = vector.extract_strided_slice %383 {offsets = [0, 96], sizes = [17, 32], strides = [1, 1]} : vector<17x128xf32> to vector<17x32xf32>
    %444 = arith.truncf %443 : vector<17x32xf32> to vector<17x32xbf16>
    %445 = vector.extract_strided_slice %384 {offsets = [0, 96], sizes = [17, 32], strides = [1, 1]} : vector<17x128xf32> to vector<17x32xf32>
    %446 = arith.truncf %445 : vector<17x32xf32> to vector<17x32xbf16>
    %447 = vector.extract_strided_slice %385 {offsets = [0, 96], sizes = [17, 32], strides = [1, 1]} : vector<17x128xf32> to vector<17x32xf32>
    %448 = arith.truncf %447 : vector<17x32xf32> to vector<17x32xbf16>
    "tpu.trace_start"() <{level = 10 : i32, message = "qd,kd->qk"}> : () -> ()
    %cst_119 = arith.constant dense<0.000000e+00> : vector<17x17xf32>
    %449 = tpu.matmul %444, %446, %cst_119 {dimension_numbers = #tpu.dot_dimension_numbers<[1], [1], [0], [0], [0, 0, 1, 0], [], []>} : vector<17x32xbf16>, vector<17x32xbf16>, vector<17x17xf32> -> vector<17x17xf32>
    "tpu.trace_stop"() : () -> ()
    %cst_120 = arith.constant dense<0xFF800000> : vector<17xf32>
    %450 = vector.multi_reduction <maximumf>, %449, %cst_120 [1] : vector<17x17xf32> to vector<17xf32>
    %451 = vector.shape_cast %450 : vector<17xf32> to vector<17x1xf32>
    %452 = vector.broadcast %451 : vector<17x1xf32> to vector<17x17xf32>
    %453 = arith.subf %449, %452 : vector<17x17xf32>
    %454 = math.exp %453 : vector<17x17xf32>
    %cst_121 = arith.constant dense<0.000000e+00> : vector<17xf32>
    %455 = vector.multi_reduction <add>, %454, %cst_121 [1] : vector<17x17xf32> to vector<17xf32>
    %456 = vector.shape_cast %455 : vector<17xf32> to vector<17x1xf32>
    %457 = tpu.reciprocal %456 {approx = true} : vector<17x1xf32> -> vector<17x1xf32>
    %458 = vector.broadcast %457 : vector<17x1xf32> to vector<17x17xf32>
    %459 = arith.mulf %454, %458 : vector<17x17xf32>
    %460 = arith.truncf %459 : vector<17x17xf32> to vector<17x17xbf16>
    %cst_122 = arith.constant dense<0.000000e+00> : vector<17x32xf32>
    %461 = tpu.matmul %460, %448, %cst_122 {dimension_numbers = #tpu.dot_dimension_numbers<[1], [0], [0], [1], [0, 0, 1, 1], [], []>} : vector<17x17xbf16>, vector<17x32xbf16>, vector<17x32xf32> -> vector<17x32xf32>
    %462 = tpu.concatenate %404, %423, %442, %461 in 1 : vector<17x32xf32>, vector<17x32xf32>, vector<17x32xf32>, vector<17x32xf32> -> vector<17x128xf32>
    %463 = tpu.concatenate %382, %462 in 0 : vector<17x128xf32>, vector<17x128xf32> -> vector<34x128xf32>
    %464 = arith.truncf %463 : vector<34x128xf32> to vector<34x128xbf16>
    %c1_123 = arith.constant 1 : index
    %c0_124 = arith.constant 0 : index
    %c0_125 = arith.constant 0 : index
    %465 = vector.load %arg5[%c1_123, %c0_124, %c0_125] : memref<2x128x128xbf16, #tpu.memory_space<vmem>>, vector<1x128x128xbf16>
    %466 = vector.shape_cast %465 : vector<1x128x128xbf16> to vector<128x128xbf16>
    %cst_126 = arith.constant dense<0.000000e+00> : vector<34x128xf32>
    %467 = tpu.matmul %464, %466, %cst_126 {dimension_numbers = #tpu.dot_dimension_numbers<[1], [0], [0], [1], [0, 0, 1, 1], [], []>} : vector<34x128xbf16>, vector<128x128xbf16>, vector<34x128xf32> -> vector<34x128xf32>
    %468 = arith.addf %264, %467 : vector<34x128xf32>
    %469 = vector.broadcast %271 : vector<1x128xf32> to vector<34x128xf32>
    %470 = arith.addf %468, %469 : vector<34x128xf32>
    %cst_127 = arith.constant dense<0.000000e+00> : vector<34xf32>
    %471 = vector.multi_reduction <add>, %470, %cst_127 [1] : vector<34x128xf32> to vector<34xf32>
    %472 = vector.shape_cast %471 : vector<34xf32> to vector<34x1xf32>
    %cst_128 = arith.constant 1.280000e+02 : f32
    %473 = vector.broadcast %cst_128 : f32 to vector<34x1xf32>
    %474 = arith.divf %472, %473 : vector<34x1xf32>
    %475 = vector.broadcast %474 : vector<34x1xf32> to vector<34x128xf32>
    %476 = arith.subf %470, %475 : vector<34x128xf32>
    %477 = arith.mulf %476, %476 : vector<34x128xf32>
    %cst_129 = arith.constant dense<0.000000e+00> : vector<34xf32>
    %478 = vector.multi_reduction <add>, %477, %cst_129 [1] : vector<34x128xf32> to vector<34xf32>
    %479 = vector.shape_cast %478 : vector<34xf32> to vector<34x1xf32>
    %cst_130 = arith.constant 1.280000e+02 : f32
    %480 = vector.broadcast %cst_130 : f32 to vector<34x1xf32>
    %481 = arith.divf %479, %480 : vector<34x1xf32>
    %482 = vector.broadcast %474 : vector<34x1xf32> to vector<34x128xf32>
    %483 = arith.subf %470, %482 : vector<34x128xf32>
    %cst_131 = arith.constant 9.99999997E-7 : f32
    %484 = vector.broadcast %cst_131 : f32 to vector<34x1xf32>
    %485 = arith.addf %481, %484 : vector<34x1xf32>
    %486 = math.rsqrt %485 : vector<34x1xf32>
    %487 = vector.broadcast %486 : vector<34x1xf32> to vector<34x128xf32>
    %488 = arith.mulf %483, %487 : vector<34x128xf32>
    %489 = vector.broadcast %269 : vector<1x128xf32> to vector<34x128xf32>
    %490 = arith.mulf %488, %489 : vector<34x128xf32>
    %491 = vector.broadcast %270 : vector<1x128xf32> to vector<34x128xf32>
    %492 = arith.addf %490, %491 : vector<34x128xf32>
    %493 = arith.truncf %492 : vector<34x128xf32> to vector<34x128xbf16>
    %c1_132 = arith.constant 1 : index
    %c0_133 = arith.constant 0 : index
    %c0_134 = arith.constant 0 : index
    %494 = vector.load %arg6[%c1_132, %c0_133, %c0_134] : memref<2x128x256xbf16, #tpu.memory_space<vmem>>, vector<1x128x256xbf16>
    %495 = vector.shape_cast %494 : vector<1x128x256xbf16> to vector<128x256xbf16>
    %cst_135 = arith.constant dense<0.000000e+00> : vector<34x256xf32>
    %496 = tpu.matmul %493, %495, %cst_135 {dimension_numbers = #tpu.dot_dimension_numbers<[1], [0], [0], [1], [0, 0, 1, 1], [], []>} : vector<34x128xbf16>, vector<128x256xbf16>, vector<34x256xf32> -> vector<34x256xf32>
    %c1_136 = arith.constant 1 : index
    %c0_137 = arith.constant 0 : index
    %c0_138 = arith.constant 0 : index
    %497 = vector.load %arg7[%c1_136, %c0_137, %c0_138] : memref<2x1x256xf32, #tpu.memory_space<vmem>>, vector<1x1x256xf32>
    %498 = vector.shape_cast %497 : vector<1x1x256xf32> to vector<1x256xf32>
    %499 = vector.broadcast %498 : vector<1x256xf32> to vector<34x256xf32>
    %500 = arith.addf %496, %499 : vector<34x256xf32>
    %cst_139 = arith.constant 5.000000e-01 : f32
    %501 = vector.broadcast %cst_139 : f32 to vector<34x256xf32>
    %502 = arith.mulf %501, %500 : vector<34x256xf32>
    %cst_140 = arith.constant 4.471500e-02 : f32
    %503 = vector.broadcast %cst_140 : f32 to vector<34x256xf32>
    %504 = arith.mulf %503, %500 : vector<34x256xf32>
    %505 = arith.mulf %504, %500 : vector<34x256xf32>
    %506 = arith.mulf %505, %500 : vector<34x256xf32>
    %507 = arith.addf %500, %506 : vector<34x256xf32>
    %cst_141 = arith.constant 0.797884583 : f32
    %508 = vector.broadcast %cst_141 : f32 to vector<34x256xf32>
    %509 = arith.mulf %508, %507 : vector<34x256xf32>
    %510 = math.tanh %509 : vector<34x256xf32>
    %cst_142 = arith.constant 1.000000e+00 : f32
    %511 = vector.broadcast %cst_142 : f32 to vector<34x256xf32>
    %512 = arith.addf %511, %510 : vector<34x256xf32>
    %513 = arith.mulf %502, %512 : vector<34x256xf32>
    %514 = arith.truncf %513 : vector<34x256xf32> to vector<34x256xbf16>
    %c1_143 = arith.constant 1 : index
    %c0_144 = arith.constant 0 : index
    %c0_145 = arith.constant 0 : index
    %515 = vector.load %arg8[%c1_143, %c0_144, %c0_145] : memref<2x256x128xbf16, #tpu.memory_space<vmem>>, vector<1x256x128xbf16>
    %516 = vector.shape_cast %515 : vector<1x256x128xbf16> to vector<256x128xbf16>
    %cst_146 = arith.constant dense<0.000000e+00> : vector<34x128xf32>
    %517 = tpu.matmul %514, %516, %cst_146 {dimension_numbers = #tpu.dot_dimension_numbers<[1], [0], [0], [1], [0, 0, 1, 1], [], []>} : vector<34x256xbf16>, vector<256x128xbf16>, vector<34x128xf32> -> vector<34x128xf32>
    %518 = arith.addf %470, %517 : vector<34x128xf32>
    %519 = vector.broadcast %272 : vector<1x128xf32> to vector<34x128xf32>
    %520 = arith.addf %518, %519 : vector<34x128xf32>
    %521 = vector.extract_strided_slice %520 {offsets = [16, 0], sizes = [1, 128], strides = [1, 1]} : vector<34x128xf32> to vector<1x128xf32>
    %522 = vector.extract_strided_slice %520 {offsets = [33, 0], sizes = [1, 128], strides = [1, 1]} : vector<34x128xf32> to vector<1x128xf32>
    %523 = tpu.concatenate %521, %522 in 0 : vector<1x128xf32>, vector<1x128xf32> -> vector<2x128xf32>
    %c0_147 = arith.constant 0 : index
    %c0_148 = arith.constant 0 : index
    %524 = vector.load %arg10[%c0_147, %c0_148] : memref<2x128xf32, #tpu.memory_space<vmem>>, vector<1x128xf32>
    %c1_149 = arith.constant 1 : index
    %c0_150 = arith.constant 0 : index
    %525 = vector.load %arg10[%c1_149, %c0_150] : memref<2x128xf32, #tpu.memory_space<vmem>>, vector<1x128xf32>
    %cst_151 = arith.constant dense<0.000000e+00> : vector<2xf32>
    %526 = vector.multi_reduction <add>, %523, %cst_151 [1] : vector<2x128xf32> to vector<2xf32>
    %527 = vector.shape_cast %526 : vector<2xf32> to vector<2x1xf32>
    %cst_152 = arith.constant 1.280000e+02 : f32
    %528 = vector.broadcast %cst_152 : f32 to vector<2x1xf32>
    %529 = arith.divf %527, %528 : vector<2x1xf32>
    %530 = vector.broadcast %529 : vector<2x1xf32> to vector<2x128xf32>
    %531 = arith.subf %523, %530 : vector<2x128xf32>
    %532 = arith.mulf %531, %531 : vector<2x128xf32>
    %cst_153 = arith.constant dense<0.000000e+00> : vector<2xf32>
    %533 = vector.multi_reduction <add>, %532, %cst_153 [1] : vector<2x128xf32> to vector<2xf32>
    %534 = vector.shape_cast %533 : vector<2xf32> to vector<2x1xf32>
    %cst_154 = arith.constant 1.280000e+02 : f32
    %535 = vector.broadcast %cst_154 : f32 to vector<2x1xf32>
    %536 = arith.divf %534, %535 : vector<2x1xf32>
    %537 = vector.broadcast %529 : vector<2x1xf32> to vector<2x128xf32>
    %538 = arith.subf %523, %537 : vector<2x128xf32>
    %cst_155 = arith.constant 9.99999997E-7 : f32
    %539 = vector.broadcast %cst_155 : f32 to vector<2x1xf32>
    %540 = arith.addf %536, %539 : vector<2x1xf32>
    %541 = math.rsqrt %540 : vector<2x1xf32>
    %542 = vector.broadcast %541 : vector<2x1xf32> to vector<2x128xf32>
    %543 = arith.mulf %538, %542 : vector<2x128xf32>
    %544 = vector.broadcast %524 : vector<1x128xf32> to vector<2x128xf32>
    %545 = arith.mulf %543, %544 : vector<2x128xf32>
    %546 = vector.broadcast %525 : vector<1x128xf32> to vector<2x128xf32>
    %547 = arith.addf %545, %546 : vector<2x128xf32>
    %548 = arith.truncf %547 : vector<2x128xf32> to vector<2x128xbf16>
    %c0_156 = arith.constant 0 : index
    %c0_157 = arith.constant 0 : index
    %549 = vector.load %arg11[%c0_156, %c0_157] : memref<128x512xbf16, #tpu.memory_space<vmem>>, vector<128x512xbf16>
    %cst_158 = arith.constant dense<0.000000e+00> : vector<2x512xf32>
    %550 = tpu.matmul %548, %549, %cst_158 {dimension_numbers = #tpu.dot_dimension_numbers<[1], [0], [0], [1], [0, 0, 1, 1], [], []>} : vector<2x128xbf16>, vector<128x512xbf16>, vector<2x512xf32> -> vector<2x512xf32>
    %c0_159 = arith.constant 0 : index
    %c0_160 = arith.constant 0 : index
    %551 = vector.load %arg12[%c0_159, %c0_160] : memref<3x512xf32, #tpu.memory_space<vmem>>, vector<1x512xf32>
    %552 = vector.broadcast %551 : vector<1x512xf32> to vector<2x512xf32>
    %553 = arith.addf %550, %552 : vector<2x512xf32>
    %cst_161 = arith.constant 0.000000e+00 : f32
    %554 = vector.broadcast %cst_161 : f32 to vector<2x512xf32>
    %555 = arith.maximumf %553, %554 : vector<2x512xf32>
    %c1_162 = arith.constant 1 : index
    %c0_163 = arith.constant 0 : index
    %556 = vector.load %arg12[%c1_162, %c0_163] : memref<3x512xf32, #tpu.memory_space<vmem>>, vector<1x512xf32>
    %557 = vector.broadcast %556 : vector<1x512xf32> to vector<2x512xf32>
    %558 = arith.mulf %555, %557 : vector<2x512xf32>
    %cst_164 = arith.constant dense<0.000000e+00> : vector<2xf32>
    %559 = vector.multi_reduction <add>, %558, %cst_164 [1] : vector<2x512xf32> to vector<2xf32>
    %560 = vector.shape_cast %559 : vector<2xf32> to vector<2x1xf32>
    %c2 = arith.constant 2 : index
    %c0_165 = arith.constant 0 : index
    %561 = vector.load %arg12[%c2, %c0_165] : memref<3x512xf32, #tpu.memory_space<vmem>>, vector<1x1xf32>
    %562 = vector.broadcast %561 : vector<1x1xf32> to vector<2x1xf32>
    %563 = arith.addf %560, %562 : vector<2x1xf32>
    %cst_166 = arith.constant 5.000000e-01 : f32
    %564 = vector.broadcast %cst_166 : f32 to vector<2x1xf32>
    %565 = arith.mulf %564, %563 : vector<2x1xf32>
    %566 = math.tanh %565 : vector<2x1xf32>
    %cst_167 = arith.constant 1.000000e+00 : f32
    %567 = vector.broadcast %cst_167 : f32 to vector<2x1xf32>
    %568 = arith.addf %566, %567 : vector<2x1xf32>
    %cst_168 = arith.constant 5.000000e-01 : f32
    %569 = vector.broadcast %cst_168 : f32 to vector<2x1xf32>
    %570 = arith.mulf %569, %568 : vector<2x1xf32>
    %c0_169 = arith.constant 0 : index
    %c0_170 = arith.constant 0 : index
    %571 = vector.load %arg13[%c0_169, %c0_170] : memref<2x1xf32, #tpu.memory_space<vmem>>, vector<2x1xf32>
    tpu.vector_store %arg13[%c0_169, %c0_170], %570 {strides = array<i32>} : memref<2x1xf32, #tpu.memory_space<vmem>>, vector<2x1xf32>,
    return
  }
}

</mosaic_0001>

<llo_original>
// kernel: cataract_forward.1
$region0: #{cataract_forward.1}
  #allocation0 [shape = 'u32[]', space=smem, size = 0x4, offset = 0x4, fixed_abs, tag = 'smem constant byte address 0x4 - core index']
  #allocation1 [shape = 'u32[144,128]{1,0:T(1,128)}', space=vmem, size = 0x12000, scoped, tag = 'internal scratch']
  %s0 = inlined_call_operand.vmem [shape: bf16[32,192], index: 0, kind: input, shape index: {}]
  %s1 = inlined_call_operand.vmem [shape: bf16[192,128], index: 1, kind: input, shape index: {}]
  %s2 = inlined_call_operand.vmem [shape: f32[34,128], index: 2, kind: input, shape index: {}]
  %s3 = inlined_call_operand.vmem [shape: bf16[2,128,384], index: 3, kind: input, shape index: {}]
  %s4 = inlined_call_operand.vmem [shape: f32[2,1,384], index: 4, kind: input, shape index: {}]
  %s5 = inlined_call_operand.vmem [shape: bf16[2,128,128], index: 5, kind: input, shape index: {}]
  %s6 = inlined_call_operand.vmem [shape: bf16[2,128,256], index: 6, kind: input, shape index: {}]
  %s7 = inlined_call_operand.vmem [shape: f32[2,1,256], index: 7, kind: input, shape index: {}]
  %s8 = inlined_call_operand.vmem [shape: bf16[2,256,128], index: 8, kind: input, shape index: {}]
  %s9 = inlined_call_operand.vmem [shape: f32[2,8,128], index: 9, kind: input, shape index: {}]
  %s10 = inlined_call_operand.vmem [shape: f32[2,128], index: 10, kind: input, shape index: {}]
  %s11 = inlined_call_operand.vmem [shape: bf16[128,512], index: 11, kind: input, shape index: {}]
  %s12 = inlined_call_operand.vmem [shape: f32[3,512], index: 12, kind: input, shape index: {}]
  %s13 = inlined_call_operand.vmem [shape: f32[2,1], index: 13, kind: output, shape index: {}]
  %s14 = sld [smem:[#allocation0]]
  $region62: #{cataract_forward.1} parent=0
    _
  %s16 = ssub.s32 1, %s14
  %s17 = scalar_select 0, %s16, %s14
  // Predicated region
  $region2: #{cataract_forward.1} parent=0 // pred_check
    _
  $region3: #{cataract_forward.1} parent=0 // pred_check_branch
    %19 = sbr.rel (0) target = $region5
  $region4: #{cataract_forward.1} parent=0 // pred_region
    _
  $region5: #{cataract_forward.1} parent=0 // pred_fallthru
    _
  // Predicated region
  $region6: #{cataract_forward.1} parent=0 // pred_check
    _
  $region7: #{cataract_forward.1} parent=0 // pred_check_branch
    %21 = sbr.rel (0) target = $region9
  $region8: #{cataract_forward.1} parent=0 // pred_region
    _
  $region9: #{cataract_forward.1} parent=0 // pred_fallthru
    _
  // Predicated region
  $region10: #{cataract_forward.1} parent=0 // pred_check
    _
  $region11: #{cataract_forward.1} parent=0 // pred_check_branch
    %23 = sbr.rel (0) target = $region13
  $region12: #{cataract_forward.1} parent=0 // pred_region
    _
  $region13: #{cataract_forward.1} parent=0 // pred_fallthru
    _
  // Predicated region
  $region14: #{cataract_forward.1} parent=0 // pred_check
    _
  $region15: #{cataract_forward.1} parent=0 // pred_check_branch
    %25 = sbr.rel (0) target = $region17
  $region16: #{cataract_forward.1} parent=0 // pred_region
    _
  $region17: #{cataract_forward.1} parent=0 // pred_fallthru
    _
  // Predicated region
  $region18: #{cataract_forward.1} parent=0 // pred_check
    _
  $region19: #{cataract_forward.1} parent=0 // pred_check_branch
    %27 = sbr.rel (0) target = $region21
  $region20: #{cataract_forward.1} parent=0 // pred_region
    _
  $region21: #{cataract_forward.1} parent=0 // pred_fallthru
    _
  // Predicated region
  $region22: #{cataract_forward.1} parent=0 // pred_check
    _
  $region23: #{cataract_forward.1} parent=0 // pred_check_branch
    %29 = sbr.rel (0) target = $region25
  $region24: #{cataract_forward.1} parent=0 // pred_region
    _
  $region25: #{cataract_forward.1} parent=0 // pred_fallthru
    _
  // Predicated region
  $region26: #{cataract_forward.1} parent=0 // pred_check
    _
  $region27: #{cataract_forward.1} parent=0 // pred_check_branch
    %31 = sbr.rel (0) target = $region29
  $region28: #{cataract_forward.1} parent=0 // pred_region
    _
  $region29: #{cataract_forward.1} parent=0 // pred_fallthru
    _
  // Predicated region
  $region30: #{cataract_forward.1} parent=0 // pred_check
    _
  $region31: #{cataract_forward.1} parent=0 // pred_check_branch
    %33 = sbr.rel (0) target = $region33
  $region32: #{cataract_forward.1} parent=0 // pred_region
    _
  $region33: #{cataract_forward.1} parent=0 // pred_fallthru
    _
  // Predicated region
  $region34: #{cataract_forward.1} parent=0 // pred_check
    _
  $region35: #{cataract_forward.1} parent=0 // pred_check_branch
    %35 = sbr.rel (0) target = $region37
  $region36: #{cataract_forward.1} parent=0 // pred_region
    _
  $region37: #{cataract_forward.1} parent=0 // pred_fallthru
    _
  // Predicated region
  $region38: #{cataract_forward.1} parent=0 // pred_check
    _
  $region39: #{cataract_forward.1} parent=0 // pred_check_branch
    %37 = sbr.rel (0) target = $region41
  $region40: #{cataract_forward.1} parent=0 // pred_region
    _
  $region41: #{cataract_forward.1} parent=0 // pred_fallthru
    _
  // Predicated region
  $region42: #{cataract_forward.1} parent=0 // pred_check
    _
  $region43: #{cataract_forward.1} parent=0 // pred_check_branch
    %39 = sbr.rel (0) target = $region45
  $region44: #{cataract_forward.1} parent=0 // pred_region
    _
  $region45: #{cataract_forward.1} parent=0 // pred_fallthru
    _
  // Predicated region
  $region46: #{cataract_forward.1} parent=0 // pred_check
    _
  $region47: #{cataract_forward.1} parent=0 // pred_check_branch
    %41 = sbr.rel (0) target = $region49
  $region48: #{cataract_forward.1} parent=0 // pred_region
    _
  $region49: #{cataract_forward.1} parent=0 // pred_fallthru
    _
  // Predicated region
  $region50: #{cataract_forward.1} parent=0 // pred_check
    _
  $region51: #{cataract_forward.1} parent=0 // pred_check_branch
    %43 = sbr.rel (0) target = $region53
  $region52: #{cataract_forward.1} parent=0 // pred_region
    _
  $region53: #{cataract_forward.1} parent=0 // pred_fallthru
    _
  %v45 = vld [vmem:[%s0] sm:$0xff]
  %v46 = vld [vmem:[%s0 + $0x8] sm:$0xff]
  %v47 = vld [vmem:[%s0 + $0x10] sm:$0xff]
  %v48 = vld [vmem:[%s0 + $0x18] sm:$0xff]
  %v49 = vld [vmem:[%s1] sm:$0xf]
  %v50 = vld [vmem:[%s1 + $0x4] sm:$0xf]
  %v51 = vld [vmem:[%s1 + $0x8] sm:$0xf]
  %v52 = vld [vmem:[%s1 + $0xc] sm:$0xf]
  %v53 = vld [vmem:[%s1 + $0x10] sm:$0xf]
  %v54 = vld [vmem:[%s1 + $0x14] sm:$0xf]
  %v55 = vld [vmem:[%s1 + $0x18] sm:$0xf]
  %v56 = vld [vmem:[%s1 + $0x1c] sm:$0xf]
  %v57 = vld [vmem:[%s1 + $0x20] sm:$0xf]
  %v58 = vld [vmem:[%s1 + $0x24] sm:$0xf]
  %v59 = vld [vmem:[%s1 + $0x28] sm:$0xf]
  %v60 = vld [vmem:[%s1 + $0x2c] sm:$0xf]
  %v61 = vld [vmem:[%s1 + $0x30] sm:$0xf]
  %v62 = vld [vmem:[%s1 + $0x34] sm:$0xf]
  %v63 = vld [vmem:[%s1 + $0x38] sm:$0xf]
  %v64 = vld [vmem:[%s1 + $0x3c] sm:$0xf]
  %v65 = vld [vmem:[%s1 + $0x40] sm:$0xf]
  %v66 = vld [vmem:[%s1 + $0x44] sm:$0xf]
  %v67 = vld [vmem:[%s1 + $0x48] sm:$0xf]
  %v68 = vld [vmem:[%s1 + $0x4c] sm:$0xf]
  %v69 = vld [vmem:[%s1 + $0x50] sm:$0xf]
  %v70 = vld [vmem:[%s1 + $0x54] sm:$0xf]
  %v71 = vld [vmem:[%s1 + $0x58] sm:$0xf]
  %v72 = vld [vmem:[%s1 + $0x5c] sm:$0xf]
  %v77 = vunpack.c.l.b16 %v45
  %v78 = vunpack.c.h.b16 %v45
  %v79 = vunpack.c.l.b16 %v46
  %v80 = vunpack.c.h.b16 %v46
  %v81 = vunpack.c.l.b16 %v47
  %v82 = vunpack.c.h.b16 %v47
  %v83 = vunpack.c.l.b16 %v48
  %v84 = vunpack.c.h.b16 %v48
  %v85 = vpack.c.b16 %v79, %v77
  %v86 = vpack.c.b16 %v80, %v78
  %v87 = vpack.c.b16 %v83, %v81
  %v88 = vpack.c.b16 %v84, %v82
  %v115 = vunpack.c.l.b16 %v49
  %v116 = vunpack.c.l.b16 %v50
  %v117 = vunpack.c.l.b16 %v51
  %v118 = vunpack.c.l.b16 %v52
  %v119 = vunpack.c.l.b16 %v53
  %v120 = vunpack.c.l.b16 %v54
  %v121 = vunpack.c.l.b16 %v55
  %v122 = vunpack.c.l.b16 %v56
  %v123 = vunpack.c.l.b16 %v57
  %v124 = vunpack.c.l.b16 %v58
  %v125 = vunpack.c.l.b16 %v59
  %v126 = vunpack.c.l.b16 %v60
  %v127 = vunpack.c.l.b16 %v61
  %v128 = vunpack.c.l.b16 %v62
  %v129 = vunpack.c.l.b16 %v63
  %v130 = vunpack.c.l.b16 %v64
  %v131 = vunpack.c.l.b16 %v65
  %v132 = vunpack.c.l.b16 %v66
  %v133 = vunpack.c.l.b16 %v67
  %v134 = vunpack.c.l.b16 %v68
  %v135 = vunpack.c.l.b16 %v69
  %v136 = vunpack.c.l.b16 %v70
  %v137 = vunpack.c.l.b16 %v71
  %v138 = vunpack.c.l.b16 %v72
  %v139 = vpack.c.b16 %v116, %v115
  %v140 = vpack.c.b16 %v118, %v117
  %v141 = vpack.c.b16 %v120, %v119
  %v142 = vpack.c.b16 %v122, %v121
  %v143 = vpack.c.b16 %v124, %v123
  %v144 = vpack.c.b16 %v126, %v125
  %v145 = vpack.c.b16 %v128, %v127
  %v146 = vpack.c.b16 %v130, %v129
  %v147 = vpack.c.b16 %v132, %v131
  %v148 = vpack.c.b16 %v134, %v133
  %v149 = vpack.c.b16 %v136, %v135
  %v150 = vpack.c.b16 %v138, %v137
  %vm163 = vcmask 523264
  %v165 = vsel %vm163, %v86, 0
  %v168 = vsel %vm163, %v88, 0
  %170 = vmatprep.subr.bf16.mxu0 0
  %171 = vmatpush1.bf16.msra.mxu0 %v139
  %172 = vmatprep.subr.bf16.mxu0 0
  %173 = vmatpush1.bf16.msra.mxu0 %v140
  %174 = vmatprep.subr.bf16.mxu0 0
  %175 = vmatpush1.bf16.msra.mxu0 %v141
  %176 = vmatprep.subr.bf16.mxu0 0
  %177 = vmatpush1.bf16.msra.mxu0 %v142
  %178 = vmatprep.subr.bf16.mxu0 0
  %179 = vmatpush1.bf16.msra.mxu0 %v143
  %180 = vmatprep.subr.bf16.mxu0 0
  %181 = vmatpush1.bf16.msra.mxu0 %v144
  %182 = vmatprep.subr.bf16.mxu0 0
  %183 = vmatpush1.bf16.msra.mxu0 %v145
  %184 = vmatprep.subr.bf16.mxu0 0
  %185 = vmatpush1.bf16.msra.mxu0 %v146
  %186 = vmatprep.subr.bf16.mxu0 0
  %187 = vmatpush1.bf16.msra.mxu0 %v147
  %188 = vmatprep.subr.bf16.mxu0 0
  %189 = vmatpush1.bf16.msra.mxu0 %v148
  %190 = vmatprep.subr.bf16.mxu0 0
  %191 = vmatpush1.bf16.msra.mxu0 %v149
  %192 = vmatprep.subr.bf16.mxu0 0
  %193 = vmatpush1.bf16.msra.mxu0 %v150
  %194 = vmatprep.subr.bf16.mxu0 0
  %195 = vmatpush1.bf16.msra.mxu0 0
  %196 = vmatprep.subr.bf16.mxu0 0
  %197 = vmatpush1.bf16.msra.mxu0 0
  %198 = vmatprep.subr.bf16.mxu0 0
  %199 = vmatpush1.bf16.msra.mxu0 0
  %200 = vmatprep.subr.bf16.mxu0 0
  %201 = vmatpush1.bf16.msra.mxu0 0
  %202 = vmatprep.mubr.bf16.mxu0 %v165
  %203 = vmatmul.mubr.bf16.gmra.mrb[0].mxu0 %v85
  %v204 = vpop.f32.mrb[0].mxu0
  %v205 = vadd.f32 0.0, %v204
  %v206 = vpop.f32.mrb[0].mxu0
  %v207 = vpop.f32.mrb[0].mxu0
  %v208 = vadd.f32 0.0, %v207
  %v209 = vpop.f32.mrb[0].mxu0
  %210 = vmatprep.mubr.bf16.mxu0 %v168
  %211 = vmatmul.mubr.bf16.gmra.mrb[0].mxu0 %v87
  %v212 = vpop.f32.mrb[0].mxu0
  %v213 = vadd.f32 0.0, %v212
  %v214 = vpop.f32.mrb[0].mxu0
  %v215 = vpop.f32.mrb[0].mxu0
  %v216 = vadd.f32 0.0, %v215
  %v217 = vpop.f32.mrb[0].mxu0
  %218 = vdwg.mxu0
  %vm221 = vcmask 1040384
  %v222 = vrot.slane %v213, 7
  %v223 = vrot.slane %v216, 7
  %v224 = vsel %vm221, %v222, %v223
  %v228 = vsel %vm221, 0.0, %v222
  %v229 = vsel %vm221, %v223, 0.0
  %v230 = vld [vmem:[%s2] sm:$0xff]
  %v231 = vld [vmem:[%s2 + $0x8] sm:$0xff]
  %v232 = vld [vmem:[%s2 + $0x10] sm:$0xff]
  %v233 = vld [vmem:[%s2 + $0x18] sm:$0xff]
  %v234 = vld [vmem:[%s2 + $0x20] sm:$0x3]
  %v235 = vadd.f32 %v205, %v230
  %v236 = vadd.f32 %v208, %v231
  %v237 = vadd.f32 %v228, %v232
  %v238 = vadd.f32 %v224, %v233
  %v239 = vadd.f32 %v229, %v234
  %v240 = vld [vmem:[%s9] sm:$0xff]
  %241 = vadd.xlane.f32.xlu0 %v235
  %v242 = vpop.xlane.xlu0 %241
  %243 = vadd.xlane.f32.xlu0 %v236
  %v244 = vpop.xlane.xlu0 %243
  %245 = vadd.xlane.f32.xlu0 %v237
  %v246 = vpop.xlane.xlu0 %245
  %247 = vadd.xlane.f32.xlu0 %v238
  %v248 = vpop.xlane.xlu0 %247
  %vm249 = vcmask 1041408
  %v250 = vsel %vm249, %v239, 0.0
  %251 = vadd.xlane.f32.xlu0 %v250
  %v252 = vpop.xlane.xlu0 %251
  %v253 = vrcp.pop 128.0
  %v254 = vmul.f32 %v242, %v253
  %v255 = vmul.f32 %v244, %v253
  %v256 = vmul.f32 %v246, %v253
  %v257 = vmul.f32 %v248, %v253
  %v258 = vmul.f32 %v252, %v253
  %v259 = vsub.f32 %v235, %v254
  %v260 = vsub.f32 %v236, %v255
  %v261 = vsub.f32 %v237, %v256
  %v262 = vsub.f32 %v238, %v257
  %v263 = vsub.f32 %v239, %v258
  %v264 = vmul.f32 %v259, %v259
  %v265 = vmul.f32 %v260, %v260
  %v266 = vmul.f32 %v261, %v261
  %v267 = vmul.f32 %v262, %v262
  %v268 = vmul.f32 %v263, %v263
  %269 = vadd.xlane.f32.xlu0 %v264
  %v270 = vpop.xlane.xlu0 %269
  %271 = vadd.xlane.f32.xlu0 %v265
  %v272 = vpop.xlane.xlu0 %271
  %273 = vadd.xlane.f32.xlu0 %v266
  %v274 = vpop.xlane.xlu0 %273
  %275 = vadd.xlane.f32.xlu0 %v267
  %v276 = vpop.xlane.xlu0 %275
  %v277 = vsel %vm249, %v268, 0.0
  %278 = vadd.xlane.f32.xlu0 %v277
  %v279 = vpop.xlane.xlu0 %278
  %v280 = vmul.f32 %v270, %v253
  %v281 = vmul.f32 %v272, %v253
  %v282 = vmul.f32 %v274, %v253
  %v283 = vmul.f32 %v276, %v253
  %v284 = vmul.f32 %v279, %v253
  %v285 = vadd.f32 %v280, 1e-06
  %v286 = vadd.f32 %v281, 1e-06
  %v287 = vadd.f32 %v282, 1e-06
  %v288 = vadd.f32 %v283, 1e-06
  %v289 = vadd.f32 %v284, 1e-06
  %v290 = vrsqrt.pop %v285
  %v291 = vrsqrt.pop %v286
  %v292 = vrsqrt.pop %v287
  %v293 = vrsqrt.pop %v288
  %v294 = vrsqrt.pop %v289
  %v295 = vmul.f32 %v259, %v290
  %v296 = vmul.f32 %v260, %v291
  %v297 = vmul.f32 %v261, %v292
  %v298 = vmul.f32 %v262, %v293
  %v299 = vmul.f32 %v263, %v294
  %v300 = vlaneseq
  %v301 = vshrl.u32 %v300, 7
  %v302 = vsub.s32 0, %v301
  %v303 = vrot.slane %v240, %v302
  %v304 = vmul.f32 %v295, %v303
  %v305 = vmul.f32 %v296, %v303
  %v306 = vmul.f32 %v297, %v303
  %v307 = vmul.f32 %v298, %v303
  %v308 = vmul.f32 %v299, %v303
  %v309 = vlaneseq
  %v310 = vshrl.u32 %v309, 7
  %v311 = vsub.s32 1, %v310
  %v312 = vrot.slane %v240, %v311
  %v313 = vadd.f32 %v304, %v312
  %v314 = vadd.f32 %v305, %v312
  %v315 = vadd.f32 %v306, %v312
  %v316 = vadd.f32 %v307, %v312
  %v317 = vadd.f32 %v308, %v312
  %v318 = vpack.c.bf16 %v314, %v313
  %v319 = vpack.c.bf16 %v316, %v315
  %v320 = vpack.c.bf16 %v317, %v317
  %v321 = vld [vmem:[%s3] sm:$0xff]
  %v322 = vld [vmem:[%s3 + $0x8] sm:$0xf]
  %v323 = vld [vmem:[%s3 + $0xc] sm:$0xff]
  %v324 = vld [vmem:[%s3 + $0x14] sm:$0xf]
  %v325 = vld [vmem:[%s3 + $0x18] sm:$0xff]
  %v326 = vld [vmem:[%s3 + $0x20] sm:$0xf]
  %v327 = vld [vmem:[%s3 + $0x24] sm:$0xff]
  %v328 = vld [vmem:[%s3 + $0x2c] sm:$0xf]
  %v329 = vld [vmem:[%s3 + $0x30] sm:$0xff]
  %v330 = vld [vmem:[%s3 + $0x38] sm:$0xf]
  %v331 = vld [vmem:[%s3 + $0x3c] sm:$0xff]
  %v332 = vld [vmem:[%s3 + $0x44] sm:$0xf]
  %v333 = vld [vmem:[%s3 + $0x48] sm:$0xff]
  %v334 = vld [vmem:[%s3 + $0x50] sm:$0xf]
  %v335 = vld [vmem:[%s3 + $0x54] sm:$0xff]
  %v336 = vld [vmem:[%s3 + $0x5c] sm:$0xf]
  %v337 = vld [vmem:[%s3 + $0x60] sm:$0xff]
  %v338 = vld [vmem:[%s3 + $0x68] sm:$0xf]
  %v339 = vld [vmem:[%s3 + $0x6c] sm:$0xff]
  %v340 = vld [vmem:[%s3 + $0x74] sm:$0xf]
  %v341 = vld [vmem:[%s3 + $0x78] sm:$0xff]
  %v342 = vld [vmem:[%s3 + $0x80] sm:$0xf]
  %v343 = vld [vmem:[%s3 + $0x84] sm:$0xff]
  %v344 = vld [vmem:[%s3 + $0x8c] sm:$0xf]
  %v345 = vld [vmem:[%s3 + $0x90] sm:$0xff]
  %v346 = vld [vmem:[%s3 + $0x98] sm:$0xf]
  %v347 = vld [vmem:[%s3 + $0x9c] sm:$0xff]
  %v348 = vld [vmem:[%s3 + $0xa4] sm:$0xf]
  %v349 = vld [vmem:[%s3 + $0xa8] sm:$0xff]
  %v350 = vld [vmem:[%s3 + $0xb0] sm:$0xf]
  %v351 = vld [vmem:[%s3 + $0xb4] sm:$0xff]
  %v352 = vld [vmem:[%s3 + $0xbc] sm:$0xf]
  %v353 = vld [vmem:[%s4] sm:$0x7]
  %v355 = vlaneseq
  %v356 = vshrl.u32 %v355, 7
  %v357 = vsub.s32 0, %v356
  %v358 = vrot.slane %v353, %v357
  %v359 = vlaneseq
  %v360 = vshrl.u32 %v359, 7
  %v361 = vsub.s32 1, %v360
  %v362 = vrot.slane %v353, %v361
  %v363 = vlaneseq
  %v364 = vshrl.u32 %v363, 7
  %v365 = vsub.s32 2, %v364
  %v366 = vrot.slane %v353, %v365
  %v402 = vunpack.c.l.b16 %v321
  %v403 = vunpack.c.h.b16 %v321
  %v404 = vunpack.c.l.b16 %v322
  %v405 = vunpack.c.l.b16 %v323
  %v406 = vunpack.c.h.b16 %v323
  %v407 = vunpack.c.l.b16 %v324
  %v408 = vunpack.c.l.b16 %v325
  %v409 = vunpack.c.h.b16 %v325
  %v410 = vunpack.c.l.b16 %v326
  %v411 = vunpack.c.l.b16 %v327
  %v412 = vunpack.c.h.b16 %v327
  %v413 = vunpack.c.l.b16 %v328
  %v414 = vunpack.c.l.b16 %v329
  %v415 = vunpack.c.h.b16 %v329
  %v416 = vunpack.c.l.b16 %v330
  %v417 = vunpack.c.l.b16 %v331
  %v418 = vunpack.c.h.b16 %v331
  %v419 = vunpack.c.l.b16 %v332
  %v420 = vunpack.c.l.b16 %v333
  %v421 = vunpack.c.h.b16 %v333
  %v422 = vunpack.c.l.b16 %v334
  %v423 = vunpack.c.l.b16 %v335
  %v424 = vunpack.c.h.b16 %v335
  %v425 = vunpack.c.l.b16 %v336
  %v426 = vunpack.c.l.b16 %v337
  %v427 = vunpack.c.h.b16 %v337
  %v428 = vunpack.c.l.b16 %v338
  %v429 = vunpack.c.l.b16 %v339
  %v430 = vunpack.c.h.b16 %v339
  %v431 = vunpack.c.l.b16 %v340
  %v432 = vunpack.c.l.b16 %v341
  %v433 = vunpack.c.h.b16 %v341
  %v434 = vunpack.c.l.b16 %v342
  %v435 = vunpack.c.l.b16 %v343
  %v436 = vunpack.c.h.b16 %v343
  %v437 = vunpack.c.l.b16 %v344
  %v438 = vunpack.c.l.b16 %v345
  %v439 = vunpack.c.h.b16 %v345
  %v440 = vunpack.c.l.b16 %v346
  %v441 = vunpack.c.l.b16 %v347
  %v442 = vunpack.c.h.b16 %v347
  %v443 = vunpack.c.l.b16 %v348
  %v444 = vunpack.c.l.b16 %v349
  %v445 = vunpack.c.h.b16 %v349
  %v446 = vunpack.c.l.b16 %v350
  %v447 = vunpack.c.l.b16 %v351
  %v448 = vunpack.c.h.b16 %v351
  %v449 = vunpack.c.l.b16 %v352
  %v450 = vpack.c.b16 %v405, %v402
  %v451 = vpack.c.b16 %v406, %v403
  %v452 = vpack.c.b16 %v407, %v404
  %v453 = vpack.c.b16 %v411, %v408
  %v454 = vpack.c.b16 %v412, %v409
  %v455 = vpack.c.b16 %v413, %v410
  %v456 = vpack.c.b16 %v417, %v414
  %v457 = vpack.c.b16 %v418, %v415
  %v458 = vpack.c.b16 %v419, %v416
  %v459 = vpack.c.b16 %v423, %v420
  %v460 = vpack.c.b16 %v424, %v421
  %v461 = vpack.c.b16 %v425, %v422
  %v462 = vpack.c.b16 %v429, %v426
  %v463 = vpack.c.b16 %v430, %v427
  %v464 = vpack.c.b16 %v431, %v428
  %v465 = vpack.c.b16 %v435, %v432
  %v466 = vpack.c.b16 %v436, %v433
  %v467 = vpack.c.b16 %v437, %v434
  %v468 = vpack.c.b16 %v441, %v438
  %v469 = vpack.c.b16 %v442, %v439
  %v470 = vpack.c.b16 %v443, %v440
  %v471 = vpack.c.b16 %v447, %v444
  %v472 = vpack.c.b16 %v448, %v445
  %v473 = vpack.c.b16 %v449, %v446
  %498 = vmatprep.subr.bf16.mxu0 %v451
  %499 = vmatpush1.bf16.msra.mxu0 %v450
  %500 = vmatprep.subr.bf16.mxu0 %v454
  %501 = vmatpush1.bf16.msra.mxu0 %v453
  %502 = vmatprep.subr.bf16.mxu0 %v457
  %503 = vmatpush1.bf16.msra.mxu0 %v456
  %504 = vmatprep.subr.bf16.mxu0 %v460
  %505 = vmatpush1.bf16.msra.mxu0 %v459
  %506 = vmatprep.subr.bf16.mxu0 %v463
  %507 = vmatpush1.bf16.msra.mxu0 %v462
  %508 = vmatprep.subr.bf16.mxu0 %v466
  %509 = vmatpush1.bf16.msra.mxu0 %v465
  %510 = vmatprep.subr.bf16.mxu0 %v469
  %511 = vmatpush1.bf16.msra.mxu0 %v468
  %512 = vmatprep.subr.bf16.mxu0 %v472
  %513 = vmatpush1.bf16.msra.mxu0 %v471
  %514 = vmatprep.subr.bf16.mxu0 0
  %515 = vmatpush1.bf16.msra.mxu0 0
  %516 = vmatprep.subr.bf16.mxu0 0
  %517 = vmatpush1.bf16.msra.mxu0 0
  %518 = vmatprep.subr.bf16.mxu0 0
  %519 = vmatpush1.bf16.msra.mxu0 0
  %520 = vmatprep.subr.bf16.mxu0 0
  %521 = vmatpush1.bf16.msra.mxu0 0
  %522 = vmatprep.subr.bf16.mxu0 0
  %523 = vmatpush1.bf16.msra.mxu0 0
  %524 = vmatprep.subr.bf16.mxu0 0
  %525 = vmatpush1.bf16.msra.mxu0 0
  %526 = vmatprep.subr.bf16.mxu0 0
  %527 = vmatpush1.bf16.msra.mxu0 0
  %528 = vmatprep.subr.bf16.mxu0 0
  %529 = vmatpush1.bf16.msra.mxu0 0
  %530 = vmatprep.mubr.bf16.mxu0 0
  %531 = vmatmul.mubr.bf16.gmra.mrb[0].mxu0 %v318
  %v532 = vpop.f32.mrb[0].mxu0
  %v533 = vadd.f32 %v358, %v532
  %v534 = vpop.f32.mrb[0].mxu0
  %v535 = vadd.f32 %v362, %v534
  %v536 = vpop.f32.mrb[0].mxu0
  %v537 = vadd.f32 %v358, %v536
  %v538 = vpop.f32.mrb[0].mxu0
  %v539 = vadd.f32 %v362, %v538
  %540 = vmatprep.mubr.bf16.mxu0 0
  %541 = vmatmul.mubr.bf16.gmra.mrb[0].mxu0 %v319
  %v542 = vpop.f32.mrb[0].mxu0
  %v543 = vadd.f32 %v358, %v542
  %v544 = vpop.f32.mrb[0].mxu0
  %v545 = vadd.f32 %v362, %v544
  %v546 = vpop.f32.mrb[0].mxu0
  %v547 = vadd.f32 %v358, %v546
  %v548 = vpop.f32.mrb[0].mxu0
  %v549 = vadd.f32 %v362, %v548
  %550 = vmatprep.mubr.bf16.mxu0 0
  %551 = vmatmul.mubr.bf16.gmra.mrb[0].mxu0 %v320
  %v552 = vpop.f32.mrb[0].mxu0
  %v553 = vadd.f32 %v358, %v552
  %v554 = vpop.f32.mrb[0].mxu0
  %v555 = vadd.f32 %v362, %v554
  %v556 = vpop.f32.mrb[0].mxu0
  %v557 = vpop.f32.mrb[0].mxu0
  %558 = vdwg.mxu0
  %559 = vmatprep.subr.bf16.mxu0 0
  %560 = vmatpush1.bf16.msra.mxu0 %v452
  %561 = vmatprep.subr.bf16.mxu0 0
  %562 = vmatpush1.bf16.msra.mxu0 %v455
  %563 = vmatprep.subr.bf16.mxu0 0
  %564 = vmatpush1.bf16.msra.mxu0 %v458
  %565 = vmatprep.subr.bf16.mxu0 0
  %566 = vmatpush1.bf16.msra.mxu0 %v461
  %567 = vmatprep.subr.bf16.mxu0 0
  %568 = vmatpush1.bf16.msra.mxu0 %v464
  %569 = vmatprep.subr.bf16.mxu0 0
  %570 = vmatpush1.bf16.msra.mxu0 %v467
  %571 = vmatprep.subr.bf16.mxu0 0
  %572 = vmatpush1.bf16.msra.mxu0 %v470
  %573 = vmatprep.subr.bf16.mxu0 0
  %574 = vmatpush1.bf16.msra.mxu0 %v473
  %575 = vmatprep.subr.bf16.mxu0 0
  %576 = vmatpush1.bf16.msra.mxu0 0
  %577 = vmatprep.subr.bf16.mxu0 0
  %578 = vmatpush1.bf16.msra.mxu0 0
  %579 = vmatprep.subr.bf16.mxu0 0
  %580 = vmatpush1.bf16.msra.mxu0 0
  %581 = vmatprep.subr.bf16.mxu0 0
  %582 = vmatpush1.bf16.msra.mxu0 0
  %583 = vmatprep.subr.bf16.mxu0 0
  %584 = vmatpush1.bf16.msra.mxu0 0
  %585 = vmatprep.subr.bf16.mxu0 0
  %586 = vmatpush1.bf16.msra.mxu0 0
  %587 = vmatprep.subr.bf16.mxu0 0
  %588 = vmatpush1.bf16.msra.mxu0 0
  %589 = vmatprep.subr.bf16.mxu0 0
  %590 = vmatpush1.bf16.msra.mxu0 0
  %591 = vmatprep.mubr.bf16.mxu0 0
  %592 = vmatmul.mubr.bf16.gmra.mrb[0].mxu0 %v318
  %v593 = vpop.f32.mrb[0].mxu0
  %v594 = vadd.f32 %v366, %v593
  %v595 = vpop.f32.mrb[0].mxu0
  %v596 = vpop.f32.mrb[0].mxu0
  %v597 = vadd.f32 %v366, %v596
  %v598 = vpop.f32.mrb[0].mxu0
  %599 = vmatprep.mubr.bf16.mxu0 0
  %600 = vmatmul.mubr.bf16.gmra.mrb[0].mxu0 %v319
  %v601 = vpop.f32.mrb[0].mxu0
  %v602 = vadd.f32 %v366, %v601
  %v603 = vpop.f32.mrb[0].mxu0
  %v604 = vpop.f32.mrb[0].mxu0
  %v605 = vadd.f32 %v366, %v604
  %v606 = vpop.f32.mrb[0].mxu0
  %607 = vmatprep.mubr.bf16.mxu0 0
  %608 = vmatmul.mubr.bf16.gmra.mrb[0].mxu0 %v320
  %v609 = vpop.f32.mrb[0].mxu0
  %v610 = vadd.f32 %v366, %v609
  %v611 = vpop.f32.mrb[0].mxu0
  %v612 = vpop.f32.mrb[0].mxu0
  %v613 = vpop.f32.mrb[0].mxu0
  %614 = vdwg.mxu0
  %v615 = vpack.c.bf16 %v537, %v533
  %v616 = vpack.c.bf16 %v543, %v543
  %v617 = vpack.c.bf16 %v539, %v535
  %v618 = vpack.c.bf16 %v545, %v545
  %v619 = vpack.c.bf16 %v597, %v594
  %v620 = vpack.c.bf16 %v602, %v602
  %vm621 = vcmask 261120
  %v623 = vsel %vm621, %v615, 0
  %v626 = vsel %vm621, %v616, 0
  %v629 = vsel %vm621, %v617, 0
  %v632 = vsel %vm621, %v618, 0
  %634 = vmatprep.subr.bf16.mxu0 0
  %635 = vmatpush1.bf16.xpose.msra.mxu0 %v629
  %636 = vmatprep.subr.bf16.mxu0 0
  %637 = vmatpush1.bf16.xpose.msra.mxu0 %v632
  %638 = vmatprep.subr.bf16.mxu0 0
  %639 = vmatpush1.bf16.xpose.msra.mxu0 0
  %640 = vmatprep.subr.bf16.mxu0 0
  %641 = vmatpush1.bf16.xpose.msra.mxu0 0
  %642 = vmatprep.subr.bf16.mxu0 0
  %643 = vmatpush1.bf16.xpose.msra.mxu0 0
  %644 = vmatprep.subr.bf16.mxu0 0
  %645 = vmatpush1.bf16.xpose.msra.mxu0 0
  %646 = vmatprep.subr.bf16.mxu0 0
  %647 = vmatpush1.bf16.xpose.msra.mxu0 0
  %648 = vmatprep.subr.bf16.mxu0 0
  %649 = vmatpush1.bf16.xpose.msra.mxu0 0
  %650 = vmatprep.subr.bf16.mxu0 0
  %651 = vmatpush1.bf16.xpose.msra.mxu0 0
  %652 = vmatprep.subr.bf16.mxu0 0
  %653 = vmatpush1.bf16.xpose.msra.mxu0 0
  %654 = vmatprep.subr.bf16.mxu0 0
  %655 = vmatpush1.bf16.xpose.msra.mxu0 0
  %656 = vmatprep.subr.bf16.mxu0 0
  %657 = vmatpush1.bf16.xpose.msra.mxu0 0
  %658 = vmatprep.subr.bf16.mxu0 0
  %659 = vmatpush1.bf16.xpose.msra.mxu0 0
  %660 = vmatprep.subr.bf16.mxu0 0
  %661 = vmatpush1.bf16.xpose.msra.mxu0 0
  %662 = vmatprep.subr.bf16.mxu0 0
  %663 = vmatpush1.bf16.xpose.msra.mxu0 0
  %664 = vmatprep.subr.bf16.mxu0 0
  %665 = vmatpush1.bf16.xpose.msra.mxu0 0
  %666 = vmatprep.mubr.bf16.mxu0 0
  %667 = vmatmul.mubr.bf16.gmra.mrb[0].mxu0 %v623
  %v668 = vpop.f32.mrb[0].mxu0
  %v669 = vadd.f32 0.0, %v668
  %v670 = vpop.f32.mrb[0].mxu0
  %v671 = vpop.f32.mrb[0].mxu0
  %v672 = vadd.f32 0.0, %v671
  %v673 = vpop.f32.mrb[0].mxu0
  %674 = vmatprep.mubr.bf16.mxu0 0
  %675 = vmatmul.mubr.bf16.gmra.mrb[0].mxu0 %v626
  %v676 = vpop.f32.mrb[0].mxu0
  %v677 = vadd.f32 0.0, %v676
  %v678 = vpop.f32.mrb[0].mxu0
  %v679 = vpop.f32.mrb[0].mxu0
  %v680 = vpop.f32.mrb[0].mxu0
  %681 = vdwg.mxu0
  %vm682 = vcmask 138240
  %v683 = vsel %vm682, %v669, -inf
  %684 = vmax.xlane.f32.xlu0 %v683
  %v685 = vpop.xlane.xlu0 %684
  %v686 = vsel %vm682, %v672, -inf
  %687 = vmax.xlane.f32.xlu0 %v686
  %v688 = vpop.xlane.xlu0 %687
  %vm689 = vcmask 131072
  %v690 = vsel %vm689, %v677, -inf
  %691 = vmax.xlane.f32.xlu0 %v690
  %v692 = vpop.xlane.xlu0 %691
  %v693 = vsub.f32 %v669, %v685
  %v694 = vsub.f32 %v672, %v688
  %v695 = vsub.f32 %v677, %v692
  %v696 = vmul.f32 %v693, 1.442695
  %v697 = vpow.pop %v696
  %v698 = vmul.f32 %v694, 1.442695
  %v699 = vpow.pop %v698
  %v700 = vmul.f32 %v695, 1.442695
  %v701 = vpow.pop %v700
  %v702 = vsel %vm682, %v697, 0.0
  %703 = vadd.xlane.f32.xlu0 %v702
  %v704 = vpop.xlane.xlu0 %703
  %v705 = vsel %vm682, %v699, 0.0
  %706 = vadd.xlane.f32.xlu0 %v705
  %v707 = vpop.xlane.xlu0 %706
  %v708 = vsel %vm689, %v701, 0.0
  %709 = vadd.xlane.f32.xlu0 %v708
  %v710 = vpop.xlane.xlu0 %709
  %v711 = vrcp.pop %v704
  %v712 = vrcp.pop %v707
  %v713 = vrcp.pop %v710
  %v714 = vmul.f32 %v697, %v711
  %v715 = vmul.f32 %v699, %v712
  %v716 = vmul.f32 %v701, %v713
  %v717 = vpack.c.bf16 %v715, %v714
  %v718 = vpack.c.bf16 %v716, %v716
  %v720 = vsel %vm682, %v717, 0
  %v723 = vsel %vm682, %v718, 0
  %v725 = vsel 0, 4294967295, 65535
  %v726 = vsel %vm221, %v725, 0
  %v728 = vand.u32 %v620, %v726
  %730 = vmatprep.subr.bf16.mxu0 0
  %731 = vmatpush1.bf16.msra.mxu0 %v619
  %732 = vmatprep.subr.bf16.mxu0 0
  %733 = vmatpush1.bf16.msra.mxu0 %v728
  %734 = vmatprep.subr.bf16.mxu0 0
  %735 = vmatpush1.bf16.msra.mxu0 0
  %736 = vmatprep.subr.bf16.mxu0 0
  %737 = vmatpush1.bf16.msra.mxu0 0
  %738 = vmatprep.subr.bf16.mxu0 0
  %739 = vmatpush1.bf16.msra.mxu0 0
  %740 = vmatprep.subr.bf16.mxu0 0
  %741 = vmatpush1.bf16.msra.mxu0 0
  %742 = vmatprep.subr.bf16.mxu0 0
  %743 = vmatpush1.bf16.msra.mxu0 0
  %744 = vmatprep.subr.bf16.mxu0 0
  %745 = vmatpush1.bf16.msra.mxu0 0
  %746 = vmatprep.subr.bf16.mxu0 0
  %747 = vmatpush1.bf16.msra.mxu0 0
  %748 = vmatprep.subr.bf16.mxu0 0
  %749 = vmatpush1.bf16.msra.mxu0 0
  %750 = vmatprep.subr.bf16.mxu0 0
  %751 = vmatpush1.bf16.msra.mxu0 0
  %752 = vmatprep.subr.bf16.mxu0 0
  %753 = vmatpush1.bf16.msra.mxu0 0
  %754 = vmatprep.subr.bf16.mxu0 0
  %755 = vmatpush1.bf16.msra.mxu0 0
  %756 = vmatprep.subr.bf16.mxu0 0
  %757 = vmatpush1.bf16.msra.mxu0 0
  %758 = vmatprep.subr.bf16.mxu0 0
  %759 = vmatpush1.bf16.msra.mxu0 0
  %760 = vmatprep.subr.bf16.mxu0 0
  %761 = vmatpush1.bf16.msra.mxu0 0
  %762 = vmatprep.mubr.bf16.mxu0 0
  %763 = vmatmul.mubr.bf16.gmra.mrb[0].mxu0 %v720
  %v764 = vpop.f32.mrb[0].mxu0
  %v765 = vadd.f32 0.0, %v764
  %v766 = vpop.f32.mrb[0].mxu0
  %v767 = vpop.f32.mrb[0].mxu0
  %v768 = vadd.f32 0.0, %v767
  %v769 = vpop.f32.mrb[0].mxu0
  %770 = vmatprep.mubr.bf16.mxu0 0
  %771 = vmatmul.mubr.bf16.gmra.mrb[0].mxu0 %v723
  %v772 = vpop.f32.mrb[0].mxu0
  %v773 = vadd.f32 0.0, %v772
  %v774 = vpop.f32.mrb[0].mxu0
  %v775 = vpop.f32.mrb[0].mxu0
  %v776 = vpop.f32.mrb[0].mxu0
  %777 = vdwg.mxu0
  %780 = vrot.lane.b32.xlu0 %v615, 96
  %v781 = vpop.permute.xlu0 %780
  %782 = vrot.lane.b32.xlu0 %v616, 96
  %v783 = vpop.permute.xlu0 %782
  %786 = vrot.lane.b32.xlu0 %v617, 96
  %v787 = vpop.permute.xlu0 %786
  %788 = vrot.lane.b32.xlu0 %v618, 96
  %v789 = vpop.permute.xlu0 %788
  %v791 = vsel %vm621, %v781, 0
  %v794 = vsel %vm621, %v783, 0
  %v797 = vsel %vm621, %v787, 0
  %v800 = vsel %vm621, %v789, 0
  %802 = vmatprep.subr.bf16.mxu0 0
  %803 = vmatpush1.bf16.xpose.msra.mxu0 %v797
  %804 = vmatprep.subr.bf16.mxu0 0
  %805 = vmatpush1.bf16.xpose.msra.mxu0 %v800
  %806 = vmatprep.subr.bf16.mxu0 0
  %807 = vmatpush1.bf16.xpose.msra.mxu0 0
  %808 = vmatprep.subr.bf16.mxu0 0
  %809 = vmatpush1.bf16.xpose.msra.mxu0 0
  %810 = vmatprep.subr.bf16.mxu0 0
  %811 = vmatpush1.bf16.xpose.msra.mxu0 0
  %812 = vmatprep.subr.bf16.mxu0 0
  %813 = vmatpush1.bf16.xpose.msra.mxu0 0
  %814 = vmatprep.subr.bf16.mxu0 0
  %815 = vmatpush1.bf16.xpose.msra.mxu0 0
  %816 = vmatprep.subr.bf16.mxu0 0
  %817 = vmatpush1.bf16.xpose.msra.mxu0 0
  %818 = vmatprep.subr.bf16.mxu0 0
  %819 = vmatpush1.bf16.xpose.msra.mxu0 0
  %820 = vmatprep.subr.bf16.mxu0 0
  %821 = vmatpush1.bf16.xpose.msra.mxu0 0
  %822 = vmatprep.subr.bf16.mxu0 0
  %823 = vmatpush1.bf16.xpose.msra.mxu0 0
  %824 = vmatprep.subr.bf16.mxu0 0
  %825 = vmatpush1.bf16.xpose.msra.mxu0 0
  %826 = vmatprep.subr.bf16.mxu0 0
  %827 = vmatpush1.bf16.xpose.msra.mxu0 0
  %828 = vmatprep.subr.bf16.mxu0 0
  %829 = vmatpush1.bf16.xpose.msra.mxu0 0
  %830 = vmatprep.subr.bf16.mxu0 0
  %831 = vmatpush1.bf16.xpose.msra.mxu0 0
  %832 = vmatprep.subr.bf16.mxu0 0
  %833 = vmatpush1.bf16.xpose.msra.mxu0 0
  %834 = vmatprep.mubr.bf16.mxu0 0
  %835 = vmatmul.mubr.bf16.gmra.mrb[0].mxu0 %v791
  %v836 = vpop.f32.mrb[0].mxu0
  %v837 = vadd.f32 0.0, %v836
  %v838 = vpop.f32.mrb[0].mxu0
  %v839 = vpop.f32.mrb[0].mxu0
  %v840 = vadd.f32 0.0, %v839
  %v841 = vpop.f32.mrb[0].mxu0
  %842 = vmatprep.mubr.bf16.mxu0 0
  %843 = vmatmul.mubr.bf16.gmra.mrb[0].mxu0 %v794
  %v844 = vpop.f32.mrb[0].mxu0
  %v845 = vadd.f32 0.0, %v844
  %v846 = vpop.f32.mrb[0].mxu0
  %v847 = vpop.f32.mrb[0].mxu0
  %v848 = vpop.f32.mrb[0].mxu0
  %849 = vdwg.mxu0
  %v850 = vsel %vm682, %v837, -inf
  %851 = vmax.xlane.f32.xlu0 %v850
  %v852 = vpop.xlane.xlu0 %851
  %v853 = vsel %vm682, %v840, -inf
  %854 = vmax.xlane.f32.xlu0 %v853
  %v855 = vpop.xlane.xlu0 %854
  %v856 = vsel %vm689, %v845, -inf
  %857 = vmax.xlane.f32.xlu0 %v856
  %v858 = vpop.xlane.xlu0 %857
  %v859 = vsub.f32 %v837, %v852
  %v860 = vsub.f32 %v840, %v855
  %v861 = vsub.f32 %v845, %v858
  %v862 = vmul.f32 %v859, 1.442695
  %v863 = vpow.pop %v862
  %v864 = vmul.f32 %v860, 1.442695
  %v865 = vpow.pop %v864
  %v866 = vmul.f32 %v861, 1.442695
  %v867 = vpow.pop %v866
  %v868 = vsel %vm682, %v863, 0.0
  %869 = vadd.xlane.f32.xlu0 %v868
  %v870 = vpop.xlane.xlu0 %869
  %v871 = vsel %vm682, %v865, 0.0
  %872 = vadd.xlane.f32.xlu0 %v871
  %v873 = vpop.xlane.xlu0 %872
  %v874 = vsel %vm689, %v867, 0.0
  %875 = vadd.xlane.f32.xlu0 %v874
  %v876 = vpop.xlane.xlu0 %875
  %v877 = vrcp.pop %v870
  %v878 = vrcp.pop %v873
  %v879 = vrcp.pop %v876
  %v880 = vmul.f32 %v863, %v877
  %v881 = vmul.f32 %v865, %v878
  %v882 = vmul.f32 %v867, %v879
  %v883 = vpack.c.bf16 %v881, %v880
  %v884 = vpack.c.bf16 %v882, %v882
  %887 = vrot.lane.b32.xlu0 %v619, 96
  %v888 = vpop.permute.xlu0 %887
  %889 = vrot.lane.b32.xlu0 %v620, 96
  %v890 = vpop.permute.xlu0 %889
  %v893 = vsel %vm682, %v883, 0
  %v896 = vsel %vm682, %v884, 0
  %v899 = vand.u32 %v890, %v726
  %901 = vmatprep.subr.bf16.mxu0 0
  %902 = vmatpush1.bf16.msra.mxu0 %v888
  %903 = vmatprep.subr.bf16.mxu0 0
  %904 = vmatpush1.bf16.msra.mxu0 %v899
  %905 = vmatprep.subr.bf16.mxu0 0
  %906 = vmatpush1.bf16.msra.mxu0 0
  %907 = vmatprep.subr.bf16.mxu0 0
  %908 = vmatpush1.bf16.msra.mxu0 0
  %909 = vmatprep.subr.bf16.mxu0 0
  %910 = vmatpush1.bf16.msra.mxu0 0
  %911 = vmatprep.subr.bf16.mxu0 0
  %912 = vmatpush1.bf16.msra.mxu0 0
  %913 = vmatprep.subr.bf16.mxu0 0
  %914 = vmatpush1.bf16.msra.mxu0 0
  %915 = vmatprep.subr.bf16.mxu0 0
  %916 = vmatpush1.bf16.msra.mxu0 0
  %917 = vmatprep.subr.bf16.mxu0 0
  %918 = vmatpush1.bf16.msra.mxu0 0
  %919 = vmatprep.subr.bf16.mxu0 0
  %920 = vmatpush1.bf16.msra.mxu0 0
  %921 = vmatprep.subr.bf16.mxu0 0
  %922 = vmatpush1.bf16.msra.mxu0 0
  %923 = vmatprep.subr.bf16.mxu0 0
  %924 = vmatpush1.bf16.msra.mxu0 0
  %925 = vmatprep.subr.bf16.mxu0 0
  %926 = vmatpush1.bf16.msra.mxu0 0
  %927 = vmatprep.subr.bf16.mxu0 0
  %928 = vmatpush1.bf16.msra.mxu0 0
  %929 = vmatprep.subr.bf16.mxu0 0
  %930 = vmatpush1.bf16.msra.mxu0 0
  %931 = vmatprep.subr.bf16.mxu0 0
  %932 = vmatpush1.bf16.msra.mxu0 0
  %933 = vmatprep.mubr.bf16.mxu0 0
  %934 = vmatmul.mubr.bf16.gmra.mrb[0].mxu0 %v893
  %v935 = vpop.f32.mrb[0].mxu0
  %v936 = vadd.f32 0.0, %v935
  %v937 = vpop.f32.mrb[0].mxu0
  %v938 = vpop.f32.mrb[0].mxu0
  %v939 = vadd.f32 0.0, %v938
  %v940 = vpop.f32.mrb[0].mxu0
  %941 = vmatprep.mubr.bf16.mxu0 0
  %942 = vmatmul.mubr.bf16.gmra.mrb[0].mxu0 %v896
  %v943 = vpop.f32.mrb[0].mxu0
  %v944 = vadd.f32 0.0, %v943
  %v945 = vpop.f32.mrb[0].mxu0
  %v946 = vpop.f32.mrb[0].mxu0
  %v947 = vpop.f32.mrb[0].mxu0
  %948 = vdwg.mxu0
  %949 = vrot.lane.b32.xlu0 %v615, 64
  %v950 = vpop.permute.xlu0 %949
  %951 = vrot.lane.b32.xlu0 %v616, 64
  %v952 = vpop.permute.xlu0 %951
  %953 = vrot.lane.b32.xlu0 %v617, 64
  %v954 = vpop.permute.xlu0 %953
  %955 = vrot.lane.b32.xlu0 %v618, 64
  %v956 = vpop.permute.xlu0 %955
  %v958 = vsel %vm621, %v950, 0
  %v961 = vsel %vm621, %v952, 0
  %v964 = vsel %vm621, %v954, 0
  %v967 = vsel %vm621, %v956, 0
  %969 = vmatprep.subr.bf16.mxu0 0
  %970 = vmatpush1.bf16.xpose.msra.mxu0 %v964
  %971 = vmatprep.subr.bf16.mxu0 0
  %972 = vmatpush1.bf16.xpose.msra.mxu0 %v967
  %973 = vmatprep.subr.bf16.mxu0 0
  %974 = vmatpush1.bf16.xpose.msra.mxu0 0
  %975 = vmatprep.subr.bf16.mxu0 0
  %976 = vmatpush1.bf16.xpose.msra.mxu0 0
  %977 = vmatprep.subr.bf16.mxu0 0
  %978 = vmatpush1.bf16.xpose.msra.mxu0 0
  %979 = vmatprep.subr.bf16.mxu0 0
  %980 = vmatpush1.bf16.xpose.msra.mxu0 0
  %981 = vmatprep.subr.bf16.mxu0 0
  %982 = vmatpush1.bf16.xpose.msra.mxu0 0
  %983 = vmatprep.subr.bf16.mxu0 0
  %984 = vmatpush1.bf16.xpose.msra.mxu0 0
  %985 = vmatprep.subr.bf16.mxu0 0
  %986 = vmatpush1.bf16.xpose.msra.mxu0 0
  %987 = vmatprep.subr.bf16.mxu0 0
  %988 = vmatpush1.bf16.xpose.msra.mxu0 0
  %989 = vmatprep.subr.bf16.mxu0 0
  %990 = vmatpush1.bf16.xpose.msra.mxu0 0
  %991 = vmatprep.subr.bf16.mxu0 0
  %992 = vmatpush1.bf16.xpose.msra.mxu0 0
  %993 = vmatprep.subr.bf16.mxu0 0
  %994 = vmatpush1.bf16.xpose.msra.mxu0 0
  %995 = vmatprep.subr.bf16.mxu0 0
  %996 = vmatpush1.bf16.xpose.msra.mxu0 0
  %997 = vmatprep.subr.bf16.mxu0 0
  %998 = vmatpush1.bf16.xpose.msra.mxu0 0
  %999 = vmatprep.subr.bf16.mxu0 0
  %1000 = vmatpush1.bf16.xpose.msra.mxu0 0
  %1001 = vmatprep.mubr.bf16.mxu0 0
  %1002 = vmatmul.mubr.bf16.gmra.mrb[0].mxu0 %v958
  %v1003 = vpop.f32.mrb[0].mxu0
  %v1004 = vadd.f32 0.0, %v1003
  %v1005 = vpop.f32.mrb[0].mxu0
  %v1006 = vpop.f32.mrb[0].mxu0
  %v1007 = vadd.f32 0.0, %v1006
  %v1008 = vpop.f32.mrb[0].mxu0
  %1009 = vmatprep.mubr.bf16.mxu0 0
  %1010 = vmatmul.mubr.bf16.gmra.mrb[0].mxu0 %v961
  %v1011 = vpop.f32.mrb[0].mxu0
  %v1012 = vadd.f32 0.0, %v1011
  %v1013 = vpop.f32.mrb[0].mxu0
  %v1014 = vpop.f32.mrb[0].mxu0
  %v1015 = vpop.f32.mrb[0].mxu0
  %1016 = vdwg.mxu0
  %v1017 = vsel %vm682, %v1004, -inf
  %1018 = vmax.xlane.f32.xlu0 %v1017
  %v1019 = vpop.xlane.xlu0 %1018
  %v1020 = vsel %vm682, %v1007, -inf
  %1021 = vmax.xlane.f32.xlu0 %v1020
  %v1022 = vpop.xlane.xlu0 %1021
  %v1023 = vsel %vm689, %v1012, -inf
  %1024 = vmax.xlane.f32.xlu0 %v1023
  %v1025 = vpop.xlane.xlu0 %1024
  %v1026 = vsub.f32 %v1004, %v1019
  %v1027 = vsub.f32 %v1007, %v1022
  %v1028 = vsub.f32 %v1012, %v1025
  %v1029 = vmul.f32 %v1026, 1.442695
  %v1030 = vpow.pop %v1029
  %v1031 = vmul.f32 %v1027, 1.442695
  %v1032 = vpow.pop %v1031
  %v1033 = vmul.f32 %v1028, 1.442695
  %v1034 = vpow.pop %v1033
  %v1035 = vsel %vm682, %v1030, 0.0
  %1036 = vadd.xlane.f32.xlu0 %v1035
  %v1037 = vpop.xlane.xlu0 %1036
  %v1038 = vsel %vm682, %v1032, 0.0
  %1039 = vadd.xlane.f32.xlu0 %v1038
  %v1040 = vpop.xlane.xlu0 %1039
  %v1041 = vsel %vm689, %v1034, 0.0
  %1042 = vadd.xlane.f32.xlu0 %v1041
  %v1043 = vpop.xlane.xlu0 %1042
  %v1044 = vrcp.pop %v1037
  %v1045 = vrcp.pop %v1040
  %v1046 = vrcp.pop %v1043
  %v1047 = vmul.f32 %v1030, %v1044
  %v1048 = vmul.f32 %v1032, %v1045
  %v1049 = vmul.f32 %v1034, %v1046
  %v1050 = vpack.c.bf16 %v1048, %v1047
  %v1051 = vpack.c.bf16 %v1049, %v1049
  %1052 = vrot.lane.b32.xlu0 %v619, 64
  %v1053 = vpop.permute.xlu0 %1052
  %1054 = vrot.lane.b32.xlu0 %v620, 64
  %v1055 = vpop.permute.xlu0 %1054
  %v1058 = vsel %vm682, %v1050, 0
  %v1061 = vsel %vm682, %v1051, 0
  %v1064 = vand.u32 %v1055, %v726
  %1066 = vmatprep.subr.bf16.mxu0 0
  %1067 = vmatpush1.bf16.msra.mxu0 %v1053
  %1068 = vmatprep.subr.bf16.mxu0 0
  %1069 = vmatpush1.bf16.msra.mxu0 %v1064
  %1070 = vmatprep.subr.bf16.mxu0 0
  %1071 = vmatpush1.bf16.msra.mxu0 0
  %1072 = vmatprep.subr.bf16.mxu0 0
  %1073 = vmatpush1.bf16.msra.mxu0 0
  %1074 = vmatprep.subr.bf16.mxu0 0
  %1075 = vmatpush1.bf16.msra.mxu0 0
  %1076 = vmatprep.subr.bf16.mxu0 0
  %1077 = vmatpush1.bf16.msra.mxu0 0
  %1078 = vmatprep.subr.bf16.mxu0 0
  %1079 = vmatpush1.bf16.msra.mxu0 0
  %1080 = vmatprep.subr.bf16.mxu0 0
  %1081 = vmatpush1.bf16.msra.mxu0 0
  %1082 = vmatprep.subr.bf16.mxu0 0
  %1083 = vmatpush1.bf16.msra.mxu0 0
  %1084 = vmatprep.subr.bf16.mxu0 0
  %1085 = vmatpush1.bf16.msra.mxu0 0
  %1086 = vmatprep.subr.bf16.mxu0 0
  %1087 = vmatpush1.bf16.msra.mxu0 0
  %1088 = vmatprep.subr.bf16.mxu0 0
  %1089 = vmatpush1.bf16.msra.mxu0 0
  %1090 = vmatprep.subr.bf16.mxu0 0
  %1091 = vmatpush1.bf16.msra.mxu0 0
  %1092 = vmatprep.subr.bf16.mxu0 0
  %1093 = vmatpush1.bf16.msra.mxu0 0
  %1094 = vmatprep.subr.bf16.mxu0 0
  %1095 = vmatpush1.bf16.msra.mxu0 0
  %1096 = vmatprep.subr.bf16.mxu0 0
  %1097 = vmatpush1.bf16.msra.mxu0 0
  %1098 = vmatprep.mubr.bf16.mxu0 0
  %1099 = vmatmul.mubr.bf16.gmra.mrb[0].mxu0 %v1058
  %v1100 = vpop.f32.mrb[0].mxu0
  %v1101 = vadd.f32 0.0, %v1100
  %v1102 = vpop.f32.mrb[0].mxu0
  %v1103 = vpop.f32.mrb[0].mxu0
  %v1104 = vadd.f32 0.0, %v1103
  %v1105 = vpop.f32.mrb[0].mxu0
  %1106 = vmatprep.mubr.bf16.mxu0 0
  %1107 = vmatmul.mubr.bf16.gmra.mrb[0].mxu0 %v1061
  %v1108 = vpop.f32.mrb[0].mxu0
  %v1109 = vadd.f32 0.0, %v1108
  %v1110 = vpop.f32.mrb[0].mxu0
  %v1111 = vpop.f32.mrb[0].mxu0
  %v1112 = vpop.f32.mrb[0].mxu0
  %1113 = vdwg.mxu0
  %1114 = vrot.lane.b32.xlu0 %v615, 32
  %v1115 = vpop.permute.xlu0 %1114
  %1116 = vrot.lane.b32.xlu0 %v616, 32
  %v1117 = vpop.permute.xlu0 %1116
  %1118 = vrot.lane.b32.xlu0 %v617, 32
  %v1119 = vpop.permute.xlu0 %1118
  %1120 = vrot.lane.b32.xlu0 %v618, 32
  %v1121 = vpop.permute.xlu0 %1120
  %v1123 = vsel %vm621, %v1115, 0
  %v1126 = vsel %vm621, %v1117, 0
  %v1129 = vsel %vm621, %v1119, 0
  %v1132 = vsel %vm621, %v1121, 0
  %1134 = vmatprep.subr.bf16.mxu0 0
  %1135 = vmatpush1.bf16.xpose.msra.mxu0 %v1129
  %1136 = vmatprep.subr.bf16.mxu0 0
  %1137 = vmatpush1.bf16.xpose.msra.mxu0 %v1132
  %1138 = vmatprep.subr.bf16.mxu0 0
  %1139 = vmatpush1.bf16.xpose.msra.mxu0 0
  %1140 = vmatprep.subr.bf16.mxu0 0
  %1141 = vmatpush1.bf16.xpose.msra.mxu0 0
  %1142 = vmatprep.subr.bf16.mxu0 0
  %1143 = vmatpush1.bf16.xpose.msra.mxu0 0
  %1144 = vmatprep.subr.bf16.mxu0 0
  %1145 = vmatpush1.bf16.xpose.msra.mxu0 0
  %1146 = vmatprep.subr.bf16.mxu0 0
  %1147 = vmatpush1.bf16.xpose.msra.mxu0 0
  %1148 = vmatprep.subr.bf16.mxu0 0
  %1149 = vmatpush1.bf16.xpose.msra.mxu0 0
  %1150 = vmatprep.subr.bf16.mxu0 0
  %1151 = vmatpush1.bf16.xpose.msra.mxu0 0
  %1152 = vmatprep.subr.bf16.mxu0 0
  %1153 = vmatpush1.bf16.xpose.msra.mxu0 0
  %1154 = vmatprep.subr.bf16.mxu0 0
  %1155 = vmatpush1.bf16.xpose.msra.mxu0 0
  %1156 = vmatprep.subr.bf16.mxu0 0
  %1157 = vmatpush1.bf16.xpose.msra.mxu0 0
  %1158 = vmatprep.subr.bf16.mxu0 0
  %1159 = vmatpush1.bf16.xpose.msra.mxu0 0
  %1160 = vmatprep.subr.bf16.mxu0 0
  %1161 = vmatpush1.bf16.xpose.msra.mxu0 0
  %1162 = vmatprep.subr.bf16.mxu0 0
  %1163 = vmatpush1.bf16.xpose.msra.mxu0 0
  %1164 = vmatprep.subr.bf16.mxu0 0
  %1165 = vmatpush1.bf16.xpose.msra.mxu0 0
  %1166 = vmatprep.mubr.bf16.mxu0 0
  %1167 = vmatmul.mubr.bf16.gmra.mrb[0].mxu0 %v1123
  %v1168 = vpop.f32.mrb[0].mxu0
  %v1169 = vadd.f32 0.0, %v1168
  %v1170 = vpop.f32.mrb[0].mxu0
  %v1171 = vpop.f32.mrb[0].mxu0
  %v1172 = vadd.f32 0.0, %v1171
  %v1173 = vpop.f32.mrb[0].mxu0
  %1174 = vmatprep.mubr.bf16.mxu0 0
  %1175 = vmatmul.mubr.bf16.gmra.mrb[0].mxu0 %v1126
  %v1176 = vpop.f32.mrb[0].mxu0
  %v1177 = vadd.f32 0.0, %v1176
  %v1178 = vpop.f32.mrb[0].mxu0
  %v1179 = vpop.f32.mrb[0].mxu0
  %v1180 = vpop.f32.mrb[0].mxu0
  %1181 = vdwg.mxu0
  %v1182 = vsel %vm682, %v1169, -inf
  %1183 = vmax.xlane.f32.xlu0 %v1182
  %v1184 = vpop.xlane.xlu0 %1183
  %v1185 = vsel %vm682, %v1172, -inf
  %1186 = vmax.xlane.f32.xlu0 %v1185
  %v1187 = vpop.xlane.xlu0 %1186
  %v1188 = vsel %vm689, %v1177, -inf
  %1189 = vmax.xlane.f32.xlu0 %v1188
  %v1190 = vpop.xlane.xlu0 %1189
  %v1191 = vsub.f32 %v1169, %v1184
  %v1192 = vsub.f32 %v1172, %v1187
  %v1193 = vsub.f32 %v1177, %v1190
  %v1194 = vmul.f32 %v1191, 1.442695
  %v1195 = vpow.pop %v1194
  %v1196 = vmul.f32 %v1192, 1.442695
  %v1197 = vpow.pop %v1196
  %v1198 = vmul.f32 %v1193, 1.442695
  %v1199 = vpow.pop %v1198
  %v1200 = vsel %vm682, %v1195, 0.0
  %1201 = vadd.xlane.f32.xlu0 %v1200
  %v1202 = vpop.xlane.xlu0 %1201
  %v1203 = vsel %vm682, %v1197, 0.0
  %1204 = vadd.xlane.f32.xlu0 %v1203
  %v1205 = vpop.xlane.xlu0 %1204
  %v1206 = vsel %vm689, %v1199, 0.0
  %1207 = vadd.xlane.f32.xlu0 %v1206
  %v1208 = vpop.xlane.xlu0 %1207
  %v1209 = vrcp.pop %v1202
  %v1210 = vrcp.pop %v1205
  %v1211 = vrcp.pop %v1208
  %v1212 = vmul.f32 %v1195, %v1209
  %v1213 = vmul.f32 %v1197, %v1210
  %v1214 = vmul.f32 %v1199, %v1211
  %v1215 = vpack.c.bf16 %v1213, %v1212
  %v1216 = vpack.c.bf16 %v1214, %v1214
  %1217 = vrot.lane.b32.xlu0 %v619, 32
  %v1218 = vpop.permute.xlu0 %1217
  %1219 = vrot.lane.b32.xlu0 %v620, 32
  %v1220 = vpop.permute.xlu0 %1219
  %v1223 = vsel %vm682, %v1215, 0
  %v1226 = vsel %vm682, %v1216, 0
  %v1229 = vand.u32 %v1220, %v726
  %1231 = vmatprep.subr.bf16.mxu0 0
  %1232 = vmatpush1.bf16.msra.mxu0 %v1218
  %1233 = vmatprep.subr.bf16.mxu0 0
  %1234 = vmatpush1.bf16.msra.mxu0 %v1229
  %1235 = vmatprep.subr.bf16.mxu0 0
  %1236 = vmatpush1.bf16.msra.mxu0 0
  %1237 = vmatprep.subr.bf16.mxu0 0
  %1238 = vmatpush1.bf16.msra.mxu0 0
  %1239 = vmatprep.subr.bf16.mxu0 0
  %1240 = vmatpush1.bf16.msra.mxu0 0
  %1241 = vmatprep.subr.bf16.mxu0 0
  %1242 = vmatpush1.bf16.msra.mxu0 0
  %1243 = vmatprep.subr.bf16.mxu0 0
  %1244 = vmatpush1.bf16.msra.mxu0 0
  %1245 = vmatprep.subr.bf16.mxu0 0
  %1246 = vmatpush1.bf16.msra.mxu0 0
  %1247 = vmatprep.subr.bf16.mxu0 0
  %1248 = vmatpush1.bf16.msra.mxu0 0
  %1249 = vmatprep.subr.bf16.mxu0 0
  %1250 = vmatpush1.bf16.msra.mxu0 0
  %1251 = vmatprep.subr.bf16.mxu0 0
  %1252 = vmatpush1.bf16.msra.mxu0 0
  %1253 = vmatprep.subr.bf16.mxu0 0
  %1254 = vmatpush1.bf16.msra.mxu0 0
  %1255 = vmatprep.subr.bf16.mxu0 0
  %1256 = vmatpush1.bf16.msra.mxu0 0
  %1257 = vmatprep.subr.bf16.mxu0 0
  %1258 = vmatpush1.bf16.msra.mxu0 0
  %1259 = vmatprep.subr.bf16.mxu0 0
  %1260 = vmatpush1.bf16.msra.mxu0 0
  %1261 = vmatprep.subr.bf16.mxu0 0
  %1262 = vmatpush1.bf16.msra.mxu0 0
  %1263 = vmatprep.mubr.bf16.mxu0 0
  %1264 = vmatmul.mubr.bf16.gmra.mrb[0].mxu0 %v1223
  %v1265 = vpop.f32.mrb[0].mxu0
  %v1266 = vadd.f32 0.0, %v1265
  %v1267 = vpop.f32.mrb[0].mxu0
  %v1268 = vpop.f32.mrb[0].mxu0
  %v1269 = vadd.f32 0.0, %v1268
  %v1270 = vpop.f32.mrb[0].mxu0
  %1271 = vmatprep.mubr.bf16.mxu0 0
  %1272 = vmatmul.mubr.bf16.gmra.mrb[0].mxu0 %v1226
  %v1273 = vpop.f32.mrb[0].mxu0
  %v1274 = vadd.f32 0.0, %v1273
  %v1275 = vpop.f32.mrb[0].mxu0
  %v1276 = vpop.f32.mrb[0].mxu0
  %v1277 = vpop.f32.mrb[0].mxu0
  %1278 = vdwg.mxu0
  %1282 = vrot.lane.b32.xlu0 %v936, 32
  %v1283 = vpop.permute.xlu0 %1282
  %1284 = vrot.lane.b32.xlu0 %v939, 32
  %v1285 = vpop.permute.xlu0 %1284
  %1286 = vrot.lane.b32.xlu0 %v944, 32
  %v1287 = vpop.permute.xlu0 %1286
  %1294 = vrot.lane.b32.xlu0 %v1101, 64
  %v1295 = vpop.permute.xlu0 %1294
  %1296 = vrot.lane.b32.xlu0 %v1104, 64
  %v1297 = vpop.permute.xlu0 %1296
  %1298 = vrot.lane.b32.xlu0 %v1109, 64
  %v1299 = vpop.permute.xlu0 %1298
  %1306 = vrot.lane.b32.xlu0 %v1266, 96
  %v1307 = vpop.permute.xlu0 %1306
  %1308 = vrot.lane.b32.xlu0 %v1269, 96
  %v1309 = vpop.permute.xlu0 %1308
  %1310 = vrot.lane.b32.xlu0 %v1274, 96
  %v1311 = vpop.permute.xlu0 %1310
  %v1315 = vsel %vm621, %v765, %v1283
  %v1316 = vsel %vm621, %v768, %v1285
  %v1317 = vsel %vm621, %v773, %v1287
  %v1318 = vsel %vm163, %v1315, %v1295
  %v1319 = vsel %vm163, %v1316, %v1297
  %v1320 = vsel %vm163, %v1317, %v1299
  %vm1321 = vcmask 785408
  %v1322 = vsel %vm1321, %v1318, %v1307
  %v1323 = vsel %vm1321, %v1319, %v1309
  %v1324 = vsel %vm1321, %v1320, %v1311
  %v1325 = vpack.c.bf16 %v547, %v543
  %v1326 = vpack.c.bf16 %v553, %v553
  %v1327 = vpack.c.bf16 %v549, %v545
  %v1328 = vpack.c.bf16 %v555, %v555
  %v1329 = vpack.c.bf16 %v605, %v602
  %v1330 = vpack.c.bf16 %v610, %v610
  %vm1331 = vsmask.f32 7424
  %v1333 = vshrl.u32 %v1325, 16
  %v1335 = vshll.u32 %v1325, 16
  %v1337 = vrot.slane %v1335, 1
  %v1338 = vor.u32 %v1333, %v1337
  %v1340 = vshll.u32 %v1326, 16
  %v1342 = vrot.slane %v1340, 1
  %v1343 = vsel %vm1331, %v1338, %v1342
  %v1344 = vshrl.u32 %v1326, 16
  %v1347 = vshrl.u32 %v1327, 16
  %v1349 = vshll.u32 %v1327, 16
  %v1351 = vrot.slane %v1349, 1
  %v1352 = vor.u32 %v1347, %v1351
  %v1354 = vshll.u32 %v1328, 16
  %v1356 = vrot.slane %v1354, 1
  %v1357 = vsel %vm1331, %v1352, %v1356
  %v1358 = vshrl.u32 %v1328, 16
  %v1361 = vsel %vm621, %v1343, 0
  %v1364 = vsel %vm621, %v1344, 0
  %v1367 = vsel %vm621, %v1357, 0
  %v1370 = vsel %vm621, %v1358, 0
  %1372 = vmatprep.subr.bf16.mxu0 0
  %1373 = vmatpush1.bf16.xpose.msra.mxu0 %v1367
  %1374 = vmatprep.subr.bf16.mxu0 0
  %1375 = vmatpush1.bf16.xpose.msra.mxu0 %v1370
  %1376 = vmatprep.subr.bf16.mxu0 0
  %1377 = vmatpush1.bf16.xpose.msra.mxu0 0
  %1378 = vmatprep.subr.bf16.mxu0 0
  %1379 = vmatpush1.bf16.xpose.msra.mxu0 0
  %1380 = vmatprep.subr.bf16.mxu0 0
  %1381 = vmatpush1.bf16.xpose.msra.mxu0 0
  %1382 = vmatprep.subr.bf16.mxu0 0
  %1383 = vmatpush1.bf16.xpose.msra.mxu0 0
  %1384 = vmatprep.subr.bf16.mxu0 0
  %1385 = vmatpush1.bf16.xpose.msra.mxu0 0
  %1386 = vmatprep.subr.bf16.mxu0 0
  %1387 = vmatpush1.bf16.xpose.msra.mxu0 0
  %1388 = vmatprep.subr.bf16.mxu0 0
  %1389 = vmatpush1.bf16.xpose.msra.mxu0 0
  %1390 = vmatprep.subr.bf16.mxu0 0
  %1391 = vmatpush1.bf16.xpose.msra.mxu0 0
  %1392 = vmatprep.subr.bf16.mxu0 0
  %1393 = vmatpush1.bf16.xpose.msra.mxu0 0
  %1394 = vmatprep.subr.bf16.mxu0 0
  %1395 = vmatpush1.bf16.xpose.msra.mxu0 0
  %1396 = vmatprep.subr.bf16.mxu0 0
  %1397 = vmatpush1.bf16.xpose.msra.mxu0 0
  %1398 = vmatprep.subr.bf16.mxu0 0
  %1399 = vmatpush1.bf16.xpose.msra.mxu0 0
  %1400 = vmatprep.subr.bf16.mxu0 0
  %1401 = vmatpush1.bf16.xpose.msra.mxu0 0
  %1402 = vmatprep.subr.bf16.mxu0 0
  %1403 = vmatpush1.bf16.xpose.msra.mxu0 0
  %1404 = vmatprep.mubr.bf16.mxu0 0
  %1405 = vmatmul.mubr.bf16.gmra.mrb[0].mxu0 %v1361
  %v1406 = vpop.f32.mrb[0].mxu0
  %v1407 = vadd.f32 0.0, %v1406
  %v1408 = vpop.f32.mrb[0].mxu0
  %v1409 = vpop.f32.mrb[0].mxu0
  %v1410 = vadd.f32 0.0, %v1409
  %v1411 = vpop.f32.mrb[0].mxu0
  %1412 = vmatprep.mubr.bf16.mxu0 0
  %1413 = vmatmul.mubr.bf16.gmra.mrb[0].mxu0 %v1364
  %v1414 = vpop.f32.mrb[0].mxu0
  %v1415 = vadd.f32 0.0, %v1414
  %v1416 = vpop.f32.mrb[0].mxu0
  %v1417 = vpop.f32.mrb[0].mxu0
  %v1418 = vpop.f32.mrb[0].mxu0
  %1419 = vdwg.mxu0
  %v1420 = vsel %vm682, %v1407, -inf
  %1421 = vmax.xlane.f32.xlu0 %v1420
  %v1422 = vpop.xlane.xlu0 %1421
  %v1423 = vsel %vm682, %v1410, -inf
  %1424 = vmax.xlane.f32.xlu0 %v1423
  %v1425 = vpop.xlane.xlu0 %1424
  %v1426 = vsel %vm689, %v1415, -inf
  %1427 = vmax.xlane.f32.xlu0 %v1426
  %v1428 = vpop.xlane.xlu0 %1427
  %v1429 = vsub.f32 %v1407, %v1422
  %v1430 = vsub.f32 %v1410, %v1425
  %v1431 = vsub.f32 %v1415, %v1428
  %v1432 = vmul.f32 %v1429, 1.442695
  %v1433 = vpow.pop %v1432
  %v1434 = vmul.f32 %v1430, 1.442695
  %v1435 = vpow.pop %v1434
  %v1436 = vmul.f32 %v1431, 1.442695
  %v1437 = vpow.pop %v1436
  %v1438 = vsel %vm682, %v1433, 0.0
  %1439 = vadd.xlane.f32.xlu0 %v1438
  %v1440 = vpop.xlane.xlu0 %1439
  %v1441 = vsel %vm682, %v1435, 0.0
  %1442 = vadd.xlane.f32.xlu0 %v1441
  %v1443 = vpop.xlane.xlu0 %1442
  %v1444 = vsel %vm689, %v1437, 0.0
  %1445 = vadd.xlane.f32.xlu0 %v1444
  %v1446 = vpop.xlane.xlu0 %1445
  %v1447 = vrcp.pop %v1440
  %v1448 = vrcp.pop %v1443
  %v1449 = vrcp.pop %v1446
  %v1450 = vmul.f32 %v1433, %v1447
  %v1451 = vmul.f32 %v1435, %v1448
  %v1452 = vmul.f32 %v1437, %v1449
  %v1453 = vpack.c.bf16 %v1451, %v1450
  %v1454 = vpack.c.bf16 %v1452, %v1452
  %v1456 = vshrl.u32 %v1329, 16
  %v1458 = vshll.u32 %v1329, 16
  %v1460 = vrot.slane %v1458, 1
  %v1461 = vor.u32 %v1456, %v1460
  %v1463 = vshll.u32 %v1330, 16
  %v1465 = vrot.slane %v1463, 1
  %v1466 = vsel %vm1331, %v1461, %v1465
  %v1467 = vshrl.u32 %v1330, 16
  %v1471 = vsel %vm682, %v1453, 0
  %v1474 = vsel %vm682, %v1454, 0
  %v1477 = vand.u32 %v1467, %v726
  %1479 = vmatprep.subr.bf16.mxu0 0
  %1480 = vmatpush1.bf16.msra.mxu0 %v1466
  %1481 = vmatprep.subr.bf16.mxu0 0
  %1482 = vmatpush1.bf16.msra.mxu0 %v1477
  %1483 = vmatprep.subr.bf16.mxu0 0
  %1484 = vmatpush1.bf16.msra.mxu0 0
  %1485 = vmatprep.subr.bf16.mxu0 0
  %1486 = vmatpush1.bf16.msra.mxu0 0
  %1487 = vmatprep.subr.bf16.mxu0 0
  %1488 = vmatpush1.bf16.msra.mxu0 0
  %1489 = vmatprep.subr.bf16.mxu0 0
  %1490 = vmatpush1.bf16.msra.mxu0 0
  %1491 = vmatprep.subr.bf16.mxu0 0
  %1492 = vmatpush1.bf16.msra.mxu0 0
  %1493 = vmatprep.subr.bf16.mxu0 0
  %1494 = vmatpush1.bf16.msra.mxu0 0
  %1495 = vmatprep.subr.bf16.mxu0 0
  %1496 = vmatpush1.bf16.msra.mxu0 0
  %1497 = vmatprep.subr.bf16.mxu0 0
  %1498 = vmatpush1.bf16.msra.mxu0 0
  %1499 = vmatprep.subr.bf16.mxu0 0
  %1500 = vmatpush1.bf16.msra.mxu0 0
  %1501 = vmatprep.subr.bf16.mxu0 0
  %1502 = vmatpush1.bf16.msra.mxu0 0
  %1503 = vmatprep.subr.bf16.mxu0 0
  %1504 = vmatpush1.bf16.msra.mxu0 0
  %1505 = vmatprep.subr.bf16.mxu0 0
  %1506 = vmatpush1.bf16.msra.mxu0 0
  %1507 = vmatprep.subr.bf16.mxu0 0
  %1508 = vmatpush1.bf16.msra.mxu0 0
  %1509 = vmatprep.subr.bf16.mxu0 0
  %1510 = vmatpush1.bf16.msra.mxu0 0
  %1511 = vmatprep.mubr.bf16.mxu0 0
  %1512 = vmatmul.mubr.bf16.gmra.mrb[0].mxu0 %v1471
  %v1513 = vpop.f32.mrb[0].mxu0
  %v1514 = vadd.f32 0.0, %v1513
  %v1515 = vpop.f32.mrb[0].mxu0
  %v1516 = vpop.f32.mrb[0].mxu0
  %v1517 = vadd.f32 0.0, %v1516
  %v1518 = vpop.f32.mrb[0].mxu0
  %1519 = vmatprep.mubr.bf16.mxu0 0
  %1520 = vmatmul.mubr.bf16.gmra.mrb[0].mxu0 %v1474
  %v1521 = vpop.f32.mrb[0].mxu0
  %v1522 = vadd.f32 0.0, %v1521
  %v1523 = vpop.f32.mrb[0].mxu0
  %v1524 = vpop.f32.mrb[0].mxu0
  %v1525 = vpop.f32.mrb[0].mxu0
  %1526 = vdwg.mxu0
  %1527 = vrot.lane.b32.xlu0 %v1343, 96
  %v1528 = vpop.permute.xlu0 %1527
  %1529 = vrot.lane.b32.xlu0 %v1344, 96
  %v1530 = vpop.permute.xlu0 %1529
  %1531 = vrot.lane.b32.xlu0 %v1357, 96
  %v1532 = vpop.permute.xlu0 %1531
  %1533 = vrot.lane.b32.xlu0 %v1358, 96
  %v1534 = vpop.permute.xlu0 %1533
  %v1536 = vsel %vm621, %v1528, 0
  %v1539 = vsel %vm621, %v1530, 0
  %v1542 = vsel %vm621, %v1532, 0
  %v1545 = vsel %vm621, %v1534, 0
  %1547 = vmatprep.subr.bf16.mxu0 0
  %1548 = vmatpush1.bf16.xpose.msra.mxu0 %v1542
  %1549 = vmatprep.subr.bf16.mxu0 0
  %1550 = vmatpush1.bf16.xpose.msra.mxu0 %v1545
  %1551 = vmatprep.subr.bf16.mxu0 0
  %1552 = vmatpush1.bf16.xpose.msra.mxu0 0
  %1553 = vmatprep.subr.bf16.mxu0 0
  %1554 = vmatpush1.bf16.xpose.msra.mxu0 0
  %1555 = vmatprep.subr.bf16.mxu0 0
  %1556 = vmatpush1.bf16.xpose.msra.mxu0 0
  %1557 = vmatprep.subr.bf16.mxu0 0
  %1558 = vmatpush1.bf16.xpose.msra.mxu0 0
  %1559 = vmatprep.subr.bf16.mxu0 0
  %1560 = vmatpush1.bf16.xpose.msra.mxu0 0
  %1561 = vmatprep.subr.bf16.mxu0 0
  %1562 = vmatpush1.bf16.xpose.msra.mxu0 0
  %1563 = vmatprep.subr.bf16.mxu0 0
  %1564 = vmatpush1.bf16.xpose.msra.mxu0 0
  %1565 = vmatprep.subr.bf16.mxu0 0
  %1566 = vmatpush1.bf16.xpose.msra.mxu0 0
  %1567 = vmatprep.subr.bf16.mxu0 0
  %1568 = vmatpush1.bf16.xpose.msra.mxu0 0
  %1569 = vmatprep.subr.bf16.mxu0 0
  %1570 = vmatpush1.bf16.xpose.msra.mxu0 0
  %1571 = vmatprep.subr.bf16.mxu0 0
  %1572 = vmatpush1.bf16.xpose.msra.mxu0 0
  %1573 = vmatprep.subr.bf16.mxu0 0
  %1574 = vmatpush1.bf16.xpose.msra.mxu0 0
  %1575 = vmatprep.subr.bf16.mxu0 0
  %1576 = vmatpush1.bf16.xpose.msra.mxu0 0
  %1577 = vmatprep.subr.bf16.mxu0 0
  %1578 = vmatpush1.bf16.xpose.msra.mxu0 0
  %1579 = vmatprep.mubr.bf16.mxu0 0
  %1580 = vmatmul.mubr.bf16.gmra.mrb[0].mxu0 %v1536
  %v1581 = vpop.f32.mrb[0].mxu0
  %v1582 = vadd.f32 0.0, %v1581
  %v1583 = vpop.f32.mrb[0].mxu0
  %v1584 = vpop.f32.mrb[0].mxu0
  %v1585 = vadd.f32 0.0, %v1584
  %v1586 = vpop.f32.mrb[0].mxu0
  %1587 = vmatprep.mubr.bf16.mxu0 0
  %1588 = vmatmul.mubr.bf16.gmra.mrb[0].mxu0 %v1539
  %v1589 = vpop.f32.mrb[0].mxu0
  %v1590 = vadd.f32 0.0, %v1589
  %v1591 = vpop.f32.mrb[0].mxu0
  %v1592 = vpop.f32.mrb[0].mxu0
  %v1593 = vpop.f32.mrb[0].mxu0
  %1594 = vdwg.mxu0
  %v1595 = vsel %vm682, %v1582, -inf
  %1596 = vmax.xlane.f32.xlu0 %v1595
  %v1597 = vpop.xlane.xlu0 %1596
  %v1598 = vsel %vm682, %v1585, -inf
  %1599 = vmax.xlane.f32.xlu0 %v1598
  %v1600 = vpop.xlane.xlu0 %1599
  %v1601 = vsel %vm689, %v1590, -inf
  %1602 = vmax.xlane.f32.xlu0 %v1601
  %v1603 = vpop.xlane.xlu0 %1602
  %v1604 = vsub.f32 %v1582, %v1597
  %v1605 = vsub.f32 %v1585, %v1600
  %v1606 = vsub.f32 %v1590, %v1603
  %v1607 = vmul.f32 %v1604, 1.442695
  %v1608 = vpow.pop %v1607
  %v1609 = vmul.f32 %v1605, 1.442695
  %v1610 = vpow.pop %v1609
  %v1611 = vmul.f32 %v1606, 1.442695
  %v1612 = vpow.pop %v1611
  %v1613 = vsel %vm682, %v1608, 0.0
  %1614 = vadd.xlane.f32.xlu0 %v1613
  %v1615 = vpop.xlane.xlu0 %1614
  %v1616 = vsel %vm682, %v1610, 0.0
  %1617 = vadd.xlane.f32.xlu0 %v1616
  %v1618 = vpop.xlane.xlu0 %1617
  %v1619 = vsel %vm689, %v1612, 0.0
  %1620 = vadd.xlane.f32.xlu0 %v1619
  %v1621 = vpop.xlane.xlu0 %1620
  %v1622 = vrcp.pop %v1615
  %v1623 = vrcp.pop %v1618
  %v1624 = vrcp.pop %v1621
  %v1625 = vmul.f32 %v1608, %v1622
  %v1626 = vmul.f32 %v1610, %v1623
  %v1627 = vmul.f32 %v1612, %v1624
  %v1628 = vpack.c.bf16 %v1626, %v1625
  %v1629 = vpack.c.bf16 %v1627, %v1627
  %1630 = vrot.lane.b32.xlu0 %v1466, 96
  %v1631 = vpop.permute.xlu0 %1630
  %1632 = vrot.lane.b32.xlu0 %v1467, 96
  %v1633 = vpop.permute.xlu0 %1632
  %v1636 = vsel %vm682, %v1628, 0
  %v1639 = vsel %vm682, %v1629, 0
  %v1642 = vand.u32 %v1633, %v726
  %1644 = vmatprep.subr.bf16.mxu0 0
  %1645 = vmatpush1.bf16.msra.mxu0 %v1631
  %1646 = vmatprep.subr.bf16.mxu0 0
  %1647 = vmatpush1.bf16.msra.mxu0 %v1642
  %1648 = vmatprep.subr.bf16.mxu0 0
  %1649 = vmatpush1.bf16.msra.mxu0 0
  %1650 = vmatprep.subr.bf16.mxu0 0
  %1651 = vmatpush1.bf16.msra.mxu0 0
  %1652 = vmatprep.subr.bf16.mxu0 0
  %1653 = vmatpush1.bf16.msra.mxu0 0
  %1654 = vmatprep.subr.bf16.mxu0 0
  %1655 = vmatpush1.bf16.msra.mxu0 0
  %1656 = vmatprep.subr.bf16.mxu0 0
  %1657 = vmatpush1.bf16.msra.mxu0 0
  %1658 = vmatprep.subr.bf16.mxu0 0
  %1659 = vmatpush1.bf16.msra.mxu0 0
  %1660 = vmatprep.subr.bf16.mxu0 0
  %1661 = vmatpush1.bf16.msra.mxu0 0
  %1662 = vmatprep.subr.bf16.mxu0 0
  %1663 = vmatpush1.bf16.msra.mxu0 0
  %1664 = vmatprep.subr.bf16.mxu0 0
  %1665 = vmatpush1.bf16.msra.mxu0 0
  %1666 = vmatprep.subr.bf16.mxu0 0
  %1667 = vmatpush1.bf16.msra.mxu0 0
  %1668 = vmatprep.subr.bf16.mxu0 0
  %1669 = vmatpush1.bf16.msra.mxu0 0
  %1670 = vmatprep.subr.bf16.mxu0 0
  %1671 = vmatpush1.bf16.msra.mxu0 0
  %1672 = vmatprep.subr.bf16.mxu0 0
  %1673 = vmatpush1.bf16.msra.mxu0 0
  %1674 = vmatprep.subr.bf16.mxu0 0
  %1675 = vmatpush1.bf16.msra.mxu0 0
  %1676 = vmatprep.mubr.bf16.mxu0 0
  %1677 = vmatmul.mubr.bf16.gmra.mrb[0].mxu0 %v1636
  %v1678 = vpop.f32.mrb[0].mxu0
  %v1679 = vadd.f32 0.0, %v1678
  %v1680 = vpop.f32.mrb[0].mxu0
  %v1681 = vpop.f32.mrb[0].mxu0
  %v1682 = vadd.f32 0.0, %v1681
  %v1683 = vpop.f32.mrb[0].mxu0
  %1684 = vmatprep.mubr.bf16.mxu0 0
  %1685 = vmatmul.mubr.bf16.gmra.mrb[0].mxu0 %v1639
  %v1686 = vpop.f32.mrb[0].mxu0
  %v1687 = vadd.f32 0.0, %v1686
  %v1688 = vpop.f32.mrb[0].mxu0
  %v1689 = vpop.f32.mrb[0].mxu0
  %v1690 = vpop.f32.mrb[0].mxu0
  %1691 = vdwg.mxu0
  %1692 = vrot.lane.b32.xlu0 %v1343, 64
  %v1693 = vpop.permute.xlu0 %1692
  %1694 = vrot.lane.b32.xlu0 %v1344, 64
  %v1695 = vpop.permute.xlu0 %1694
  %1696 = vrot.lane.b32.xlu0 %v1357, 64
  %v1697 = vpop.permute.xlu0 %1696
  %1698 = vrot.lane.b32.xlu0 %v1358, 64
  %v1699 = vpop.permute.xlu0 %1698
  %v1701 = vsel %vm621, %v1693, 0
  %v1704 = vsel %vm621, %v1695, 0
  %v1707 = vsel %vm621, %v1697, 0
  %v1710 = vsel %vm621, %v1699, 0
  %1712 = vmatprep.subr.bf16.mxu0 0
  %1713 = vmatpush1.bf16.xpose.msra.mxu0 %v1707
  %1714 = vmatprep.subr.bf16.mxu0 0
  %1715 = vmatpush1.bf16.xpose.msra.mxu0 %v1710
  %1716 = vmatprep.subr.bf16.mxu0 0
  %1717 = vmatpush1.bf16.xpose.msra.mxu0 0
  %1718 = vmatprep.subr.bf16.mxu0 0
  %1719 = vmatpush1.bf16.xpose.msra.mxu0 0
  %1720 = vmatprep.subr.bf16.mxu0 0
  %1721 = vmatpush1.bf16.xpose.msra.mxu0 0
  %1722 = vmatprep.subr.bf16.mxu0 0
  %1723 = vmatpush1.bf16.xpose.msra.mxu0 0
  %1724 = vmatprep.subr.bf16.mxu0 0
  %1725 = vmatpush1.bf16.xpose.msra.mxu0 0
  %1726 = vmatprep.subr.bf16.mxu0 0
  %1727 = vmatpush1.bf16.xpose.msra.mxu0 0
  %1728 = vmatprep.subr.bf16.mxu0 0
  %1729 = vmatpush1.bf16.xpose.msra.mxu0 0
  %1730 = vmatprep.subr.bf16.mxu0 0
  %1731 = vmatpush1.bf16.xpose.msra.mxu0 0
  %1732 = vmatprep.subr.bf16.mxu0 0
  %1733 = vmatpush1.bf16.xpose.msra.mxu0 0
  %1734 = vmatprep.subr.bf16.mxu0 0
  %1735 = vmatpush1.bf16.xpose.msra.mxu0 0
  %1736 = vmatprep.subr.bf16.mxu0 0
  %1737 = vmatpush1.bf16.xpose.msra.mxu0 0
  %1738 = vmatprep.subr.bf16.mxu0 0
  %1739 = vmatpush1.bf16.xpose.msra.mxu0 0
  %1740 = vmatprep.subr.bf16.mxu0 0
  %1741 = vmatpush1.bf16.xpose.msra.mxu0 0
  %1742 = vmatprep.subr.bf16.mxu0 0
  %1743 = vmatpush1.bf16.xpose.msra.mxu0 0
  %1744 = vmatprep.mubr.bf16.mxu0 0
  %1745 = vmatmul.mubr.bf16.gmra.mrb[0].mxu0 %v1701
  %v1746 = vpop.f32.mrb[0].mxu0
  %v1747 = vadd.f32 0.0, %v1746
  %v1748 = vpop.f32.mrb[0].mxu0
  %v1749 = vpop.f32.mrb[0].mxu0
  %v1750 = vadd.f32 0.0, %v1749
  %v1751 = vpop.f32.mrb[0].mxu0
  %1752 = vmatprep.mubr.bf16.mxu0 0
  %1753 = vmatmul.mubr.bf16.gmra.mrb[0].mxu0 %v1704
  %v1754 = vpop.f32.mrb[0].mxu0
  %v1755 = vadd.f32 0.0, %v1754
  %v1756 = vpop.f32.mrb[0].mxu0
  %v1757 = vpop.f32.mrb[0].mxu0
  %v1758 = vpop.f32.mrb[0].mxu0
  %1759 = vdwg.mxu0
  %v1760 = vsel %vm682, %v1747, -inf
  %1761 = vmax.xlane.f32.xlu0 %v1760
  %v1762 = vpop.xlane.xlu0 %1761
  %v1763 = vsel %vm682, %v1750, -inf
  %1764 = vmax.xlane.f32.xlu0 %v1763
  %v1765 = vpop.xlane.xlu0 %1764
  %v1766 = vsel %vm689, %v1755, -inf
  %1767 = vmax.xlane.f32.xlu0 %v1766
  %v1768 = vpop.xlane.xlu0 %1767
  %v1769 = vsub.f32 %v1747, %v1762
  %v1770 = vsub.f32 %v1750, %v1765
  %v1771 = vsub.f32 %v1755, %v1768
  %v1772 = vmul.f32 %v1769, 1.442695
  %v1773 = vpow.pop %v1772
  %v1774 = vmul.f32 %v1770, 1.442695
  %v1775 = vpow.pop %v1774
  %v1776 = vmul.f32 %v1771, 1.442695
  %v1777 = vpow.pop %v1776
  %v1778 = vsel %vm682, %v1773, 0.0
  %1779 = vadd.xlane.f32.xlu0 %v1778
  %v1780 = vpop.xlane.xlu0 %1779
  %v1781 = vsel %vm682, %v1775, 0.0
  %1782 = vadd.xlane.f32.xlu0 %v1781
  %v1783 = vpop.xlane.xlu0 %1782
  %v1784 = vsel %vm689, %v1777, 0.0
  %1785 = vadd.xlane.f32.xlu0 %v1784
  %v1786 = vpop.xlane.xlu0 %1785
  %v1787 = vrcp.pop %v1780
  %v1788 = vrcp.pop %v1783
  %v1789 = vrcp.pop %v1786
  %v1790 = vmul.f32 %v1773, %v1787
  %v1791 = vmul.f32 %v1775, %v1788
  %v1792 = vmul.f32 %v1777, %v1789
  %v1793 = vpack.c.bf16 %v1791, %v1790
  %v1794 = vpack.c.bf16 %v1792, %v1792
  %1795 = vrot.lane.b32.xlu0 %v1466, 64
  %v1796 = vpop.permute.xlu0 %1795
  %1797 = vrot.lane.b32.xlu0 %v1467, 64
  %v1798 = vpop.permute.xlu0 %1797
  %v1801 = vsel %vm682, %v1793, 0
  %v1804 = vsel %vm682, %v1794, 0
  %v1807 = vand.u32 %v1798, %v726
  %1809 = vmatprep.subr.bf16.mxu0 0
  %1810 = vmatpush1.bf16.msra.mxu0 %v1796
  %1811 = vmatprep.subr.bf16.mxu0 0
  %1812 = vmatpush1.bf16.msra.mxu0 %v1807
  %1813 = vmatprep.subr.bf16.mxu0 0
  %1814 = vmatpush1.bf16.msra.mxu0 0
  %1815 = vmatprep.subr.bf16.mxu0 0
  %1816 = vmatpush1.bf16.msra.mxu0 0
  %1817 = vmatprep.subr.bf16.mxu0 0
  %1818 = vmatpush1.bf16.msra.mxu0 0
  %1819 = vmatprep.subr.bf16.mxu0 0
  %1820 = vmatpush1.bf16.msra.mxu0 0
  %1821 = vmatprep.subr.bf16.mxu0 0
  %1822 = vmatpush1.bf16.msra.mxu0 0
  %1823 = vmatprep.subr.bf16.mxu0 0
  %1824 = vmatpush1.bf16.msra.mxu0 0
  %1825 = vmatprep.subr.bf16.mxu0 0
  %1826 = vmatpush1.bf16.msra.mxu0 0
  %1827 = vmatprep.subr.bf16.mxu0 0
  %1828 = vmatpush1.bf16.msra.mxu0 0
  %1829 = vmatprep.subr.bf16.mxu0 0
  %1830 = vmatpush1.bf16.msra.mxu0 0
  %1831 = vmatprep.subr.bf16.mxu0 0
  %1832 = vmatpush1.bf16.msra.mxu0 0
  %1833 = vmatprep.subr.bf16.mxu0 0
  %1834 = vmatpush1.bf16.msra.mxu0 0
  %1835 = vmatprep.subr.bf16.mxu0 0
  %1836 = vmatpush1.bf16.msra.mxu0 0
  %1837 = vmatprep.subr.bf16.mxu0 0
  %1838 = vmatpush1.bf16.msra.mxu0 0
  %1839 = vmatprep.subr.bf16.mxu0 0
  %1840 = vmatpush1.bf16.msra.mxu0 0
  %1841 = vmatprep.mubr.bf16.mxu0 0
  %1842 = vmatmul.mubr.bf16.gmra.mrb[0].mxu0 %v1801
  %v1843 = vpop.f32.mrb[0].mxu0
  %v1844 = vadd.f32 0.0, %v1843
  %v1845 = vpop.f32.mrb[0].mxu0
  %v1846 = vpop.f32.mrb[0].mxu0
  %v1847 = vadd.f32 0.0, %v1846
  %v1848 = vpop.f32.mrb[0].mxu0
  %1849 = vmatprep.mubr.bf16.mxu0 0
  %1850 = vmatmul.mubr.bf16.gmra.mrb[0].mxu0 %v1804
  %v1851 = vpop.f32.mrb[0].mxu0
  %v1852 = vadd.f32 0.0, %v1851
  %v1853 = vpop.f32.mrb[0].mxu0
  %v1854 = vpop.f32.mrb[0].mxu0
  %v1855 = vpop.f32.mrb[0].mxu0
  %1856 = vdwg.mxu0
  %1857 = vrot.lane.b32.xlu0 %v1343, 32
  %v1858 = vpop.permute.xlu0 %1857
  %1859 = vrot.lane.b32.xlu0 %v1344, 32
  %v1860 = vpop.permute.xlu0 %1859
  %1861 = vrot.lane.b32.xlu0 %v1357, 32
  %v1862 = vpop.permute.xlu0 %1861
  %1863 = vrot.lane.b32.xlu0 %v1358, 32
  %v1864 = vpop.permute.xlu0 %1863
  %v1866 = vsel %vm621, %v1858, 0
  %v1869 = vsel %vm621, %v1860, 0
  %v1872 = vsel %vm621, %v1862, 0
  %v1875 = vsel %vm621, %v1864, 0
  %1877 = vmatprep.subr.bf16.mxu0 0
  %1878 = vmatpush1.bf16.xpose.msra.mxu0 %v1872
  %1879 = vmatprep.subr.bf16.mxu0 0
  %1880 = vmatpush1.bf16.xpose.msra.mxu0 %v1875
  %1881 = vmatprep.subr.bf16.mxu0 0
  %1882 = vmatpush1.bf16.xpose.msra.mxu0 0
  %1883 = vmatprep.subr.bf16.mxu0 0
  %1884 = vmatpush1.bf16.xpose.msra.mxu0 0
  %1885 = vmatprep.subr.bf16.mxu0 0
  %1886 = vmatpush1.bf16.xpose.msra.mxu0 0
  %1887 = vmatprep.subr.bf16.mxu0 0
  %1888 = vmatpush1.bf16.xpose.msra.mxu0 0
  %1889 = vmatprep.subr.bf16.mxu0 0
  %1890 = vmatpush1.bf16.xpose.msra.mxu0 0
  %1891 = vmatprep.subr.bf16.mxu0 0
  %1892 = vmatpush1.bf16.xpose.msra.mxu0 0
  %1893 = vmatprep.subr.bf16.mxu0 0
  %1894 = vmatpush1.bf16.xpose.msra.mxu0 0
  %1895 = vmatprep.subr.bf16.mxu0 0
  %1896 = vmatpush1.bf16.xpose.msra.mxu0 0
  %1897 = vmatprep.subr.bf16.mxu0 0
  %1898 = vmatpush1.bf16.xpose.msra.mxu0 0
  %1899 = vmatprep.subr.bf16.mxu0 0
  %1900 = vmatpush1.bf16.xpose.msra.mxu0 0
  %1901 = vmatprep.subr.bf16.mxu0 0
  %1902 = vmatpush1.bf16.xpose.msra.mxu0 0
  %1903 = vmatprep.subr.bf16.mxu0 0
  %1904 = vmatpush1.bf16.xpose.msra.mxu0 0
  %1905 = vmatprep.subr.bf16.mxu0 0
  %1906 = vmatpush1.bf16.xpose.msra.mxu0 0
  %1907 = vmatprep.subr.bf16.mxu0 0
  %1908 = vmatpush1.bf16.xpose.msra.mxu0 0
  %1909 = vmatprep.mubr.bf16.mxu0 0
  %1910 = vmatmul.mubr.bf16.gmra.mrb[0].mxu0 %v1866
  %v1911 = vpop.f32.mrb[0].mxu0
  %v1912 = vadd.f32 0.0, %v1911
  %v1913 = vpop.f32.mrb[0].mxu0
  %v1914 = vpop.f32.mrb[0].mxu0
  %v1915 = vadd.f32 0.0, %v1914
  %v1916 = vpop.f32.mrb[0].mxu0
  %1917 = vmatprep.mubr.bf16.mxu0 0
  %1918 = vmatmul.mubr.bf16.gmra.mrb[0].mxu0 %v1869
  %v1919 = vpop.f32.mrb[0].mxu0
  %v1920 = vadd.f32 0.0, %v1919
  %v1921 = vpop.f32.mrb[0].mxu0
  %v1922 = vpop.f32.mrb[0].mxu0
  %v1923 = vpop.f32.mrb[0].mxu0
  %1924 = vdwg.mxu0
  %v1925 = vsel %vm682, %v1912, -inf
  %1926 = vmax.xlane.f32.xlu0 %v1925
  %v1927 = vpop.xlane.xlu0 %1926
  %v1928 = vsel %vm682, %v1915, -inf
  %1929 = vmax.xlane.f32.xlu0 %v1928
  %v1930 = vpop.xlane.xlu0 %1929
  %v1931 = vsel %vm689, %v1920, -inf
  %1932 = vmax.xlane.f32.xlu0 %v1931
  %v1933 = vpop.xlane.xlu0 %1932
  %v1934 = vsub.f32 %v1912, %v1927
  %v1935 = vsub.f32 %v1915, %v1930
  %v1936 = vsub.f32 %v1920, %v1933
  %v1937 = vmul.f32 %v1934, 1.442695
  %v1938 = vpow.pop %v1937
  %v1939 = vmul.f32 %v1935, 1.442695
  %v1940 = vpow.pop %v1939
  %v1941 = vmul.f32 %v1936, 1.442695
  %v1942 = vpow.pop %v1941
  %v1943 = vsel %vm682, %v1938, 0.0
  %1944 = vadd.xlane.f32.xlu0 %v1943
  %v1945 = vpop.xlane.xlu0 %1944
  %v1946 = vsel %vm682, %v1940, 0.0
  %1947 = vadd.xlane.f32.xlu0 %v1946
  %v1948 = vpop.xlane.xlu0 %1947
  %v1949 = vsel %vm689, %v1942, 0.0
  %1950 = vadd.xlane.f32.xlu0 %v1949
  %v1951 = vpop.xlane.xlu0 %1950
  %v1952 = vrcp.pop %v1945
  %v1953 = vrcp.pop %v1948
  %v1954 = vrcp.pop %v1951
  %v1955 = vmul.f32 %v1938, %v1952
  %v1956 = vmul.f32 %v1940, %v1953
  %v1957 = vmul.f32 %v1942, %v1954
  %v1958 = vpack.c.bf16 %v1956, %v1955
  %v1959 = vpack.c.bf16 %v1957, %v1957
  %1960 = vrot.lane.b32.xlu0 %v1466, 32
  %v1961 = vpop.permute.xlu0 %1960
  %1962 = vrot.lane.b32.xlu0 %v1467, 32
  %v1963 = vpop.permute.xlu0 %1962
  %v1966 = vsel %vm682, %v1958, 0
  %v1969 = vsel %vm682, %v1959, 0
  %v1972 = vand.u32 %v1963, %v726
  %1974 = vmatprep.subr.bf16.mxu0 0
  %1975 = vmatpush1.bf16.msra.mxu0 %v1961
  %1976 = vmatprep.subr.bf16.mxu0 0
  %1977 = vmatpush1.bf16.msra.mxu0 %v1972
  %1978 = vmatprep.subr.bf16.mxu0 0
  %1979 = vmatpush1.bf16.msra.mxu0 0
  %1980 = vmatprep.subr.bf16.mxu0 0
  %1981 = vmatpush1.bf16.msra.mxu0 0
  %1982 = vmatprep.subr.bf16.mxu0 0
  %1983 = vmatpush1.bf16.msra.mxu0 0
  %1984 = vmatprep.subr.bf16.mxu0 0
  %1985 = vmatpush1.bf16.msra.mxu0 0
  %1986 = vmatprep.subr.bf16.mxu0 0
  %1987 = vmatpush1.bf16.msra.mxu0 0
  %1988 = vmatprep.subr.bf16.mxu0 0
  %1989 = vmatpush1.bf16.msra.mxu0 0
  %1990 = vmatprep.subr.bf16.mxu0 0
  %1991 = vmatpush1.bf16.msra.mxu0 0
  %1992 = vmatprep.subr.bf16.mxu0 0
  %1993 = vmatpush1.bf16.msra.mxu0 0
  %1994 = vmatprep.subr.bf16.mxu0 0
  %1995 = vmatpush1.bf16.msra.mxu0 0
  %1996 = vmatprep.subr.bf16.mxu0 0
  %1997 = vmatpush1.bf16.msra.mxu0 0
  %1998 = vmatprep.subr.bf16.mxu0 0
  %1999 = vmatpush1.bf16.msra.mxu0 0
  %2000 = vmatprep.subr.bf16.mxu0 0
  %2001 = vmatpush1.bf16.msra.mxu0 0
  %2002 = vmatprep.subr.bf16.mxu0 0
  %2003 = vmatpush1.bf16.msra.mxu0 0
  %2004 = vmatprep.subr.bf16.mxu0 0
  %2005 = vmatpush1.bf16.msra.mxu0 0
  %2006 = vmatprep.mubr.bf16.mxu0 0
  %2007 = vmatmul.mubr.bf16.gmra.mrb[0].mxu0 %v1966
  %v2008 = vpop.f32.mrb[0].mxu0
  %v2009 = vadd.f32 0.0, %v2008
  %v2010 = vpop.f32.mrb[0].mxu0
  %v2011 = vpop.f32.mrb[0].mxu0
  %v2012 = vadd.f32 0.0, %v2011
  %v2013 = vpop.f32.mrb[0].mxu0
  %2014 = vmatprep.mubr.bf16.mxu0 0
  %2015 = vmatmul.mubr.bf16.gmra.mrb[0].mxu0 %v1969
  %v2016 = vpop.f32.mrb[0].mxu0
  %v2017 = vadd.f32 0.0, %v2016
  %v2018 = vpop.f32.mrb[0].mxu0
  %v2019 = vpop.f32.mrb[0].mxu0
  %v2020 = vpop.f32.mrb[0].mxu0
  %2021 = vdwg.mxu0
  %2025 = vrot.lane.b32.xlu0 %v1679, 32
  %v2026 = vpop.permute.xlu0 %2025
  %2027 = vrot.lane.b32.xlu0 %v1682, 32
  %v2028 = vpop.permute.xlu0 %2027
  %2029 = vrot.lane.b32.xlu0 %v1687, 32
  %v2030 = vpop.permute.xlu0 %2029
  %2037 = vrot.lane.b32.xlu0 %v1844, 64
  %v2038 = vpop.permute.xlu0 %2037
  %2039 = vrot.lane.b32.xlu0 %v1847, 64
  %v2040 = vpop.permute.xlu0 %2039
  %2041 = vrot.lane.b32.xlu0 %v1852, 64
  %v2042 = vpop.permute.xlu0 %2041
  %2049 = vrot.lane.b32.xlu0 %v2009, 96
  %v2050 = vpop.permute.xlu0 %2049
  %2051 = vrot.lane.b32.xlu0 %v2012, 96
  %v2052 = vpop.permute.xlu0 %2051
  %2053 = vrot.lane.b32.xlu0 %v2017, 96
  %v2054 = vpop.permute.xlu0 %2053
  %v2058 = vsel %vm621, %v1514, %v2026
  %v2059 = vsel %vm621, %v1517, %v2028
  %v2060 = vsel %vm621, %v1522, %v2030
  %v2061 = vsel %vm163, %v2058, %v2038
  %v2062 = vsel %vm163, %v2059, %v2040
  %v2063 = vsel %vm163, %v2060, %v2042
  %v2064 = vsel %vm1321, %v2061, %v2050
  %v2065 = vsel %vm1321, %v2062, %v2052
  %v2066 = vsel %vm1321, %v2063, %v2054
  %v2070 = vrot.slane %v2064, 7
  %v2071 = vrot.slane %v2065, 7
  %v2072 = vsel %vm221, %v2070, %v2071
  %v2073 = vrot.slane %v2066, 7
  %v2074 = vsel %vm221, %v2071, %v2073
  %v2078 = vsel %vm221, %v1324, %v2070
  %v2079 = vpack.c.bf16 %v1323, %v1322
  %v2080 = vpack.c.bf16 %v2072, %v2078
  %v2081 = vpack.c.bf16 %v2074, %v2074
  %v2082 = vld [vmem:[%s5] sm:$0xf]
  %v2083 = vld [vmem:[%s5 + $0x4] sm:$0xf]
  %v2084 = vld [vmem:[%s5 + $0x8] sm:$0xf]
  %v2085 = vld [vmem:[%s5 + $0xc] sm:$0xf]
  %v2086 = vld [vmem:[%s5 + $0x10] sm:$0xf]
  %v2087 = vld [vmem:[%s5 + $0x14] sm:$0xf]
  %v2088 = vld [vmem:[%s5 + $0x18] sm:$0xf]
  %v2089 = vld [vmem:[%s5 + $0x1c] sm:$0xf]
  %v2090 = vld [vmem:[%s5 + $0x20] sm:$0xf]
  %v2091 = vld [vmem:[%s5 + $0x24] sm:$0xf]
  %v2092 = vld [vmem:[%s5 + $0x28] sm:$0xf]
  %v2093 = vld [vmem:[%s5 + $0x2c] sm:$0xf]
  %v2094 = vld [vmem:[%s5 + $0x30] sm:$0xf]
  %v2095 = vld [vmem:[%s5 + $0x34] sm:$0xf]
  %v2096 = vld [vmem:[%s5 + $0x38] sm:$0xf]
  %v2097 = vld [vmem:[%s5 + $0x3c] sm:$0xf]
  %v2114 = vunpack.c.l.b16 %v2082
  %v2115 = vunpack.c.l.b16 %v2083
  %v2116 = vunpack.c.l.b16 %v2084
  %v2117 = vunpack.c.l.b16 %v2085
  %v2118 = vunpack.c.l.b16 %v2086
  %v2119 = vunpack.c.l.b16 %v2087
  %v2120 = vunpack.c.l.b16 %v2088
  %v2121 = vunpack.c.l.b16 %v2089
  %v2122 = vunpack.c.l.b16 %v2090
  %v2123 = vunpack.c.l.b16 %v2091
  %v2124 = vunpack.c.l.b16 %v2092
  %v2125 = vunpack.c.l.b16 %v2093
  %v2126 = vunpack.c.l.b16 %v2094
  %v2127 = vunpack.c.l.b16 %v2095
  %v2128 = vunpack.c.l.b16 %v2096
  %v2129 = vunpack.c.l.b16 %v2097
  %v2130 = vpack.c.b16 %v2115, %v2114
  %v2131 = vpack.c.b16 %v2117, %v2116
  %v2132 = vpack.c.b16 %v2119, %v2118
  %v2133 = vpack.c.b16 %v2121, %v2120
  %v2134 = vpack.c.b16 %v2123, %v2122
  %v2135 = vpack.c.b16 %v2125, %v2124
  %v2136 = vpack.c.b16 %v2127, %v2126
  %v2137 = vpack.c.b16 %v2129, %v2128
  %2146 = vmatprep.subr.bf16.mxu0 0
  %2147 = vmatpush1.bf16.msra.mxu0 %v2130
  %2148 = vmatprep.subr.bf16.mxu0 0
  %2149 = vmatpush1.bf16.msra.mxu0 %v2131
  %2150 = vmatprep.subr.bf16.mxu0 0
  %2151 = vmatpush1.bf16.msra.mxu0 %v2132
  %2152 = vmatprep.subr.bf16.mxu0 0
  %2153 = vmatpush1.bf16.msra.mxu0 %v2133
  %2154 = vmatprep.subr.bf16.mxu0 0
  %2155 = vmatpush1.bf16.msra.mxu0 %v2134
  %2156 = vmatprep.subr.bf16.mxu0 0
  %2157 = vmatpush1.bf16.msra.mxu0 %v2135
  %2158 = vmatprep.subr.bf16.mxu0 0
  %2159 = vmatpush1.bf16.msra.mxu0 %v2136
  %2160 = vmatprep.subr.bf16.mxu0 0
  %2161 = vmatpush1.bf16.msra.mxu0 %v2137
  %2162 = vmatprep.subr.bf16.mxu0 0
  %2163 = vmatpush1.bf16.msra.mxu0 0
  %2164 = vmatprep.subr.bf16.mxu0 0
  %2165 = vmatpush1.bf16.msra.mxu0 0
  %2166 = vmatprep.subr.bf16.mxu0 0
  %2167 = vmatpush1.bf16.msra.mxu0 0
  %2168 = vmatprep.subr.bf16.mxu0 0
  %2169 = vmatpush1.bf16.msra.mxu0 0
  %2170 = vmatprep.subr.bf16.mxu0 0
  %2171 = vmatpush1.bf16.msra.mxu0 0
  %2172 = vmatprep.subr.bf16.mxu0 0
  %2173 = vmatpush1.bf16.msra.mxu0 0
  %2174 = vmatprep.subr.bf16.mxu0 0
  %2175 = vmatpush1.bf16.msra.mxu0 0
  %2176 = vmatprep.subr.bf16.mxu0 0
  %2177 = vmatpush1.bf16.msra.mxu0 0
  %2178 = vmatprep.mubr.bf16.mxu0 0
  %2179 = vmatmul.mubr.bf16.gmra.mrb[0].mxu0 %v2079
  %v2180 = vpop.f32.mrb[0].mxu0
  %v2181 = vadd.f32 0.0, %v2180
  %v2182 = vpop.f32.mrb[0].mxu0
  %v2183 = vpop.f32.mrb[0].mxu0
  %v2184 = vadd.f32 0.0, %v2183
  %v2185 = vpop.f32.mrb[0].mxu0
  %2186 = vmatprep.mubr.bf16.mxu0 0
  %2187 = vmatmul.mubr.bf16.gmra.mrb[0].mxu0 %v2080
  %v2188 = vpop.f32.mrb[0].mxu0
  %v2189 = vadd.f32 0.0, %v2188
  %v2190 = vpop.f32.mrb[0].mxu0
  %v2191 = vpop.f32.mrb[0].mxu0
  %v2192 = vadd.f32 0.0, %v2191
  %v2193 = vpop.f32.mrb[0].mxu0
  %2194 = vmatprep.mubr.bf16.mxu0 0
  %2195 = vmatmul.mubr.bf16.gmra.mrb[0].mxu0 %v2081
  %v2196 = vpop.f32.mrb[0].mxu0
  %v2197 = vadd.f32 0.0, %v2196
  %v2198 = vpop.f32.mrb[0].mxu0
  %v2199 = vpop.f32.mrb[0].mxu0
  %v2200 = vpop.f32.mrb[0].mxu0
  %2201 = vdwg.mxu0
  %v2202 = vadd.f32 %v235, %v2181
  %v2203 = vadd.f32 %v236, %v2184
  %v2204 = vadd.f32 %v237, %v2189
  %v2205 = vadd.f32 %v238, %v2192
  %v2206 = vadd.f32 %v239, %v2197
  %v2207 = vlaneseq
  %v2208 = vshrl.u32 %v2207, 7
  %v2209 = vsub.s32 4, %v2208
  %v2210 = vrot.slane %v240, %v2209
  %v2211 = vadd.f32 %v2202, %v2210
  %v2212 = vadd.f32 %v2203, %v2210
  %v2213 = vadd.f32 %v2204, %v2210
  %v2214 = vadd.f32 %v2205, %v2210
  %v2215 = vadd.f32 %v2206, %v2210
  %2216 = vadd.xlane.f32.xlu0 %v2211
  %v2217 = vpop.xlane.xlu0 %2216
  %2218 = vadd.xlane.f32.xlu0 %v2212
  %v2219 = vpop.xlane.xlu0 %2218
  %2220 = vadd.xlane.f32.xlu0 %v2213
  %v2221 = vpop.xlane.xlu0 %2220
  %2222 = vadd.xlane.f32.xlu0 %v2214
  %v2223 = vpop.xlane.xlu0 %2222
  %v2224 = vsel %vm249, %v2215, 0.0
  %2225 = vadd.xlane.f32.xlu0 %v2224
  %v2226 = vpop.xlane.xlu0 %2225
  %v2227 = vmul.f32 %v2217, %v253
  %v2228 = vmul.f32 %v2219, %v253
  %v2229 = vmul.f32 %v2221, %v253
  %v2230 = vmul.f32 %v2223, %v253
  %v2231 = vmul.f32 %v2226, %v253
  %v2232 = vsub.f32 %v2211, %v2227
  %v2233 = vsub.f32 %v2212, %v2228
  %v2234 = vsub.f32 %v2213, %v2229
  %v2235 = vsub.f32 %v2214, %v2230
  %v2236 = vsub.f32 %v2215, %v2231
  %v2237 = vmul.f32 %v2232, %v2232
  %v2238 = vmul.f32 %v2233, %v2233
  %v2239 = vmul.f32 %v2234, %v2234
  %v2240 = vmul.f32 %v2235, %v2235
  %v2241 = vmul.f32 %v2236, %v2236
  %2242 = vadd.xlane.f32.xlu0 %v2237
  %v2243 = vpop.xlane.xlu0 %2242
  %2244 = vadd.xlane.f32.xlu0 %v2238
  %v2245 = vpop.xlane.xlu0 %2244
  %2246 = vadd.xlane.f32.xlu0 %v2239
  %v2247 = vpop.xlane.xlu0 %2246
  %2248 = vadd.xlane.f32.xlu0 %v2240
  %v2249 = vpop.xlane.xlu0 %2248
  %v2250 = vsel %vm249, %v2241, 0.0
  %2251 = vadd.xlane.f32.xlu0 %v2250
  %v2252 = vpop.xlane.xlu0 %2251
  %v2253 = vmul.f32 %v2243, %v253
  %v2254 = vmul.f32 %v2245, %v253
  %v2255 = vmul.f32 %v2247, %v253
  %v2256 = vmul.f32 %v2249, %v253
  %v2257 = vmul.f32 %v2252, %v253
  %v2258 = vadd.f32 %v2253, 1e-06
  %v2259 = vadd.f32 %v2254, 1e-06
  %v2260 = vadd.f32 %v2255, 1e-06
  %v2261 = vadd.f32 %v2256, 1e-06
  %v2262 = vadd.f32 %v2257, 1e-06
  %v2263 = vrsqrt.pop %v2258
  %v2264 = vrsqrt.pop %v2259
  %v2265 = vrsqrt.pop %v2260
  %v2266 = vrsqrt.pop %v2261
  %v2267 = vrsqrt.pop %v2262
  %v2268 = vmul.f32 %v2232, %v2263
  %v2269 = vmul.f32 %v2233, %v2264
  %v2270 = vmul.f32 %v2234, %v2265
  %v2271 = vmul.f32 %v2235, %v2266
  %v2272 = vmul.f32 %v2236, %v2267
  %v2273 = vlaneseq
  %v2274 = vshrl.u32 %v2273, 7
  %v2275 = vsub.s32 2, %v2274
  %v2276 = vrot.slane %v240, %v2275
  %v2277 = vmul.f32 %v2268, %v2276
  %v2278 = vmul.f32 %v2269, %v2276
  %v2279 = vmul.f32 %v2270, %v2276
  %v2280 = vmul.f32 %v2271, %v2276
  %v2281 = vmul.f32 %v2272, %v2276
  %v2282 = vlaneseq
  %v2283 = vshrl.u32 %v2282, 7
  %v2284 = vsub.s32 3, %v2283
  %v2285 = vrot.slane %v240, %v2284
  %v2286 = vadd.f32 %v2277, %v2285
  %v2287 = vadd.f32 %v2278, %v2285
  %v2288 = vadd.f32 %v2279, %v2285
  %v2289 = vadd.f32 %v2280, %v2285
  %v2290 = vadd.f32 %v2281, %v2285
  %v2291 = vpack.c.bf16 %v2287, %v2286
  %v2292 = vpack.c.bf16 %v2289, %v2288
  %v2293 = vpack.c.bf16 %v2290, %v2290
  %v2294 = vld [vmem:[%s6] sm:$0xff]
  %v2295 = vld [vmem:[%s6 + $0x8] sm:$0xff]
  %v2296 = vld [vmem:[%s6 + $0x10] sm:$0xff]
  %v2297 = vld [vmem:[%s6 + $0x18] sm:$0xff]
  %v2298 = vld [vmem:[%s6 + $0x20] sm:$0xff]
  %v2299 = vld [vmem:[%s6 + $0x28] sm:$0xff]
  %v2300 = vld [vmem:[%s6 + $0x30] sm:$0xff]
  %v2301 = vld [vmem:[%s6 + $0x38] sm:$0xff]
  %v2302 = vld [vmem:[%s6 + $0x40] sm:$0xff]
  %v2303 = vld [vmem:[%s6 + $0x48] sm:$0xff]
  %v2304 = vld [vmem:[%s6 + $0x50] sm:$0xff]
  %v2305 = vld [vmem:[%s6 + $0x58] sm:$0xff]
  %v2306 = vld [vmem:[%s6 + $0x60] sm:$0xff]
  %v2307 = vld [vmem:[%s6 + $0x68] sm:$0xff]
  %v2308 = vld [vmem:[%s6 + $0x70] sm:$0xff]
  %v2309 = vld [vmem:[%s6 + $0x78] sm:$0xff]
  %v2310 = vld [vmem:[%s7] sm:$0x3]
  %v2312 = vlaneseq
  %v2313 = vshrl.u32 %v2312, 7
  %v2314 = vsub.s32 0, %v2313
  %v2315 = vrot.slane %v2310, %v2314
  %v2316 = vlaneseq
  %v2317 = vshrl.u32 %v2316, 7
  %v2318 = vsub.s32 1, %v2317
  %v2319 = vrot.slane %v2310, %v2318
  %v2338 = vunpack.c.l.b16 %v2294
  %v2339 = vunpack.c.h.b16 %v2294
  %v2340 = vunpack.c.l.b16 %v2295
  %v2341 = vunpack.c.h.b16 %v2295
  %v2342 = vunpack.c.l.b16 %v2296
  %v2343 = vunpack.c.h.b16 %v2296
  %v2344 = vunpack.c.l.b16 %v2297
  %v2345 = vunpack.c.h.b16 %v2297
  %v2346 = vunpack.c.l.b16 %v2298
  %v2347 = vunpack.c.h.b16 %v2298
  %v2348 = vunpack.c.l.b16 %v2299
  %v2349 = vunpack.c.h.b16 %v2299
  %v2350 = vunpack.c.l.b16 %v2300
  %v2351 = vunpack.c.h.b16 %v2300
  %v2352 = vunpack.c.l.b16 %v2301
  %v2353 = vunpack.c.h.b16 %v2301
  %v2354 = vunpack.c.l.b16 %v2302
  %v2355 = vunpack.c.h.b16 %v2302
  %v2356 = vunpack.c.l.b16 %v2303
  %v2357 = vunpack.c.h.b16 %v2303
  %v2358 = vunpack.c.l.b16 %v2304
  %v2359 = vunpack.c.h.b16 %v2304
  %v2360 = vunpack.c.l.b16 %v2305
  %v2361 = vunpack.c.h.b16 %v2305
  %v2362 = vunpack.c.l.b16 %v2306
  %v2363 = vunpack.c.h.b16 %v2306
  %v2364 = vunpack.c.l.b16 %v2307
  %v2365 = vunpack.c.h.b16 %v2307
  %v2366 = vunpack.c.l.b16 %v2308
  %v2367 = vunpack.c.h.b16 %v2308
  %v2368 = vunpack.c.l.b16 %v2309
  %v2369 = vunpack.c.h.b16 %v2309
  %v2370 = vpack.c.b16 %v2340, %v2338
  %v2371 = vpack.c.b16 %v2341, %v2339
  %v2372 = vpack.c.b16 %v2344, %v2342
  %v2373 = vpack.c.b16 %v2345, %v2343
  %v2374 = vpack.c.b16 %v2348, %v2346
  %v2375 = vpack.c.b16 %v2349, %v2347
  %v2376 = vpack.c.b16 %v2352, %v2350
  %v2377 = vpack.c.b16 %v2353, %v2351
  %v2378 = vpack.c.b16 %v2356, %v2354
  %v2379 = vpack.c.b16 %v2357, %v2355
  %v2380 = vpack.c.b16 %v2360, %v2358
  %v2381 = vpack.c.b16 %v2361, %v2359
  %v2382 = vpack.c.b16 %v2364, %v2362
  %v2383 = vpack.c.b16 %v2365, %v2363
  %v2384 = vpack.c.b16 %v2368, %v2366
  %v2385 = vpack.c.b16 %v2369, %v2367
  %2402 = vmatprep.subr.bf16.mxu0 %v2371
  %2403 = vmatpush1.bf16.msra.mxu0 %v2370
  %2404 = vmatprep.subr.bf16.mxu0 %v2373
  %2405 = vmatpush1.bf16.msra.mxu0 %v2372
  %2406 = vmatprep.subr.bf16.mxu0 %v2375
  %2407 = vmatpush1.bf16.msra.mxu0 %v2374
  %2408 = vmatprep.subr.bf16.mxu0 %v2377
  %2409 = vmatpush1.bf16.msra.mxu0 %v2376
  %2410 = vmatprep.subr.bf16.mxu0 %v2379
  %2411 = vmatpush1.bf16.msra.mxu0 %v2378
  %2412 = vmatprep.subr.bf16.mxu0 %v2381
  %2413 = vmatpush1.bf16.msra.mxu0 %v2380
  %2414 = vmatprep.subr.bf16.mxu0 %v2383
  %2415 = vmatpush1.bf16.msra.mxu0 %v2382
  %2416 = vmatprep.subr.bf16.mxu0 %v2385
  %2417 = vmatpush1.bf16.msra.mxu0 %v2384
  %2418 = vmatprep.subr.bf16.mxu0 0
  %2419 = vmatpush1.bf16.msra.mxu0 0
  %2420 = vmatprep.subr.bf16.mxu0 0
  %2421 = vmatpush1.bf16.msra.mxu0 0
  %2422 = vmatprep.subr.bf16.mxu0 0
  %2423 = vmatpush1.bf16.msra.mxu0 0
  %2424 = vmatprep.subr.bf16.mxu0 0
  %2425 = vmatpush1.bf16.msra.mxu0 0
  %2426 = vmatprep.subr.bf16.mxu0 0
  %2427 = vmatpush1.bf16.msra.mxu0 0
  %2428 = vmatprep.subr.bf16.mxu0 0
  %2429 = vmatpush1.bf16.msra.mxu0 0
  %2430 = vmatprep.subr.bf16.mxu0 0
  %2431 = vmatpush1.bf16.msra.mxu0 0
  %2432 = vmatprep.subr.bf16.mxu0 0
  %2433 = vmatpush1.bf16.msra.mxu0 0
  %2434 = vmatprep.mubr.bf16.mxu0 0
  %2435 = vmatmul.mubr.bf16.gmra.mrb[0].mxu0 %v2291
  %v2436 = vpop.f32.mrb[0].mxu0
  %v2437 = vadd.f32 %v2315, %v2436
  %v2438 = vpop.f32.mrb[0].mxu0
  %v2439 = vadd.f32 %v2319, %v2438
  %v2440 = vpop.f32.mrb[0].mxu0
  %v2441 = vadd.f32 %v2315, %v2440
  %v2442 = vpop.f32.mrb[0].mxu0
  %v2443 = vadd.f32 %v2319, %v2442
  %2444 = vmatprep.mubr.bf16.mxu0 0
  %2445 = vmatmul.mubr.bf16.gmra.mrb[0].mxu0 %v2292
  %v2446 = vpop.f32.mrb[0].mxu0
  %v2447 = vadd.f32 %v2315, %v2446
  %v2448 = vpop.f32.mrb[0].mxu0
  %v2449 = vadd.f32 %v2319, %v2448
  %v2450 = vpop.f32.mrb[0].mxu0
  %v2451 = vadd.f32 %v2315, %v2450
  %v2452 = vpop.f32.mrb[0].mxu0
  %v2453 = vadd.f32 %v2319, %v2452
  %2454 = vmatprep.mubr.bf16.mxu0 0
  %2455 = vmatmul.mubr.bf16.gmra.mrb[0].mxu0 %v2293
  %v2456 = vpop.f32.mrb[0].mxu0
  %v2457 = vadd.f32 %v2315, %v2456
  %v2458 = vpop.f32.mrb[0].mxu0
  %v2459 = vadd.f32 %v2319, %v2458
  %v2460 = vpop.f32.mrb[0].mxu0
  %v2461 = vpop.f32.mrb[0].mxu0
  %2462 = vdwg.mxu0
  %v2463 = vmul.f32 %v2437, 0.5
  %v2464 = vmul.f32 %v2439, 0.5
  %v2465 = vmul.f32 %v2441, 0.5
  %v2466 = vmul.f32 %v2443, 0.5
  %v2467 = vmul.f32 %v2447, 0.5
  %v2468 = vmul.f32 %v2449, 0.5
  %v2469 = vmul.f32 %v2451, 0.5
  %v2470 = vmul.f32 %v2453, 0.5
  %v2471 = vmul.f32 %v2457, 0.5
  %v2472 = vmul.f32 %v2459, 0.5
  %v2473 = vmul.f32 %v2437, 0.044715
  %v2474 = vmul.f32 %v2439, 0.044715
  %v2475 = vmul.f32 %v2441, 0.044715
  %v2476 = vmul.f32 %v2443, 0.044715
  %v2477 = vmul.f32 %v2447, 0.044715
  %v2478 = vmul.f32 %v2449, 0.044715
  %v2479 = vmul.f32 %v2451, 0.044715
  %v2480 = vmul.f32 %v2453, 0.044715
  %v2481 = vmul.f32 %v2457, 0.044715
  %v2482 = vmul.f32 %v2459, 0.044715
  %v2483 = vmul.f32 %v2473, %v2437
  %v2484 = vmul.f32 %v2474, %v2439
  %v2485 = vmul.f32 %v2475, %v2441
  %v2486 = vmul.f32 %v2476, %v2443
  %v2487 = vmul.f32 %v2477, %v2447
  %v2488 = vmul.f32 %v2478, %v2449
  %v2489 = vmul.f32 %v2479, %v2451
  %v2490 = vmul.f32 %v2480, %v2453
  %v2491 = vmul.f32 %v2481, %v2457
  %v2492 = vmul.f32 %v2482, %v2459
  %v2493 = vmul.f32 %v2483, %v2437
  %v2494 = vmul.f32 %v2484, %v2439
  %v2495 = vmul.f32 %v2485, %v2441
  %v2496 = vmul.f32 %v2486, %v2443
  %v2497 = vmul.f32 %v2487, %v2447
  %v2498 = vmul.f32 %v2488, %v2449
  %v2499 = vmul.f32 %v2489, %v2451
  %v2500 = vmul.f32 %v2490, %v2453
  %v2501 = vmul.f32 %v2491, %v2457
  %v2502 = vmul.f32 %v2492, %v2459
  %v2503 = vadd.f32 %v2437, %v2493
  %v2504 = vadd.f32 %v2439, %v2494
  %v2505 = vadd.f32 %v2441, %v2495
  %v2506 = vadd.f32 %v2443, %v2496
  %v2507 = vadd.f32 %v2447, %v2497
  %v2508 = vadd.f32 %v2449, %v2498
  %v2509 = vadd.f32 %v2451, %v2499
  %v2510 = vadd.f32 %v2453, %v2500
  %v2511 = vadd.f32 %v2457, %v2501
  %v2512 = vadd.f32 %v2459, %v2502
  %v2513 = vmul.f32 %v2503, 0.7978846
  %v2514 = vmul.f32 %v2504, 0.7978846
  %v2515 = vmul.f32 %v2505, 0.7978846
  %v2516 = vmul.f32 %v2506, 0.7978846
  %v2517 = vmul.f32 %v2507, 0.7978846
  %v2518 = vmul.f32 %v2508, 0.7978846
  %v2519 = vmul.f32 %v2509, 0.7978846
  %v2520 = vmul.f32 %v2510, 0.7978846
  %v2521 = vmul.f32 %v2511, 0.7978846
  %v2522 = vmul.f32 %v2512, 0.7978846
  %v2523 = vtanh.pop %v2513
  %v2524 = vtanh.pop %v2514
  %v2525 = vtanh.pop %v2515
  %v2526 = vtanh.pop %v2516
  %v2527 = vtanh.pop %v2517
  %v2528 = vtanh.pop %v2518
  %v2529 = vtanh.pop %v2519
  %v2530 = vtanh.pop %v2520
  %v2531 = vtanh.pop %v2521
  %v2532 = vtanh.pop %v2522
  %v2533 = vadd.f32 %v2523, 1.0
  %v2534 = vadd.f32 %v2524, 1.0
  %v2535 = vadd.f32 %v2525, 1.0
  %v2536 = vadd.f32 %v2526, 1.0
  %v2537 = vadd.f32 %v2527, 1.0
  %v2538 = vadd.f32 %v2528, 1.0
  %v2539 = vadd.f32 %v2529, 1.0
  %v2540 = vadd.f32 %v2530, 1.0
  %v2541 = vadd.f32 %v2531, 1.0
  %v2542 = vadd.f32 %v2532, 1.0
  %v2543 = vmul.f32 %v2463, %v2533
  %v2544 = vmul.f32 %v2464, %v2534
  %v2545 = vmul.f32 %v2465, %v2535
  %v2546 = vmul.f32 %v2466, %v2536
  %v2547 = vmul.f32 %v2467, %v2537
  %v2548 = vmul.f32 %v2468, %v2538
  %v2549 = vmul.f32 %v2469, %v2539
  %v2550 = vmul.f32 %v2470, %v2540
  %v2551 = vmul.f32 %v2471, %v2541
  %v2552 = vmul.f32 %v2472, %v2542
  %v2553 = vpack.c.bf16 %v2545, %v2543
  %v2554 = vpack.c.bf16 %v2546, %v2544
  %v2555 = vpack.c.bf16 %v2549, %v2547
  %v2556 = vpack.c.bf16 %v2550, %v2548
  %v2557 = vpack.c.bf16 %v2551, %v2551
  %v2558 = vpack.c.bf16 %v2552, %v2552
  %v2559 = vld [vmem:[%s8] sm:$0xf]
  %v2560 = vld [vmem:[%s8 + $0x4] sm:$0xf]
  %v2561 = vld [vmem:[%s8 + $0x8] sm:$0xf]
  %v2562 = vld [vmem:[%s8 + $0xc] sm:$0xf]
  %v2563 = vld [vmem:[%s8 + $0x10] sm:$0xf]
  %v2564 = vld [vmem:[%s8 + $0x14] sm:$0xf]
  %v2565 = vld [vmem:[%s8 + $0x18] sm:$0xf]
  %v2566 = vld [vmem:[%s8 + $0x1c] sm:$0xf]
  %v2567 = vld [vmem:[%s8 + $0x20] sm:$0xf]
  %v2568 = vld [vmem:[%s8 + $0x24] sm:$0xf]
  %v2569 = vld [vmem:[%s8 + $0x28] sm:$0xf]
  %v2570 = vld [vmem:[%s8 + $0x2c] sm:$0xf]
  %v2571 = vld [vmem:[%s8 + $0x30] sm:$0xf]
  %v2572 = vld [vmem:[%s8 + $0x34] sm:$0xf]
  %v2573 = vld [vmem:[%s8 + $0x38] sm:$0xf]
  %v2574 = vld [vmem:[%s8 + $0x3c] sm:$0xf]
  %v2575 = vld [vmem:[%s8 + $0x40] sm:$0xf]
  %v2576 = vld [vmem:[%s8 + $0x44] sm:$0xf]
  %v2577 = vld [vmem:[%s8 + $0x48] sm:$0xf]
  %v2578 = vld [vmem:[%s8 + $0x4c] sm:$0xf]
  %v2579 = vld [vmem:[%s8 + $0x50] sm:$0xf]
  %v2580 = vld [vmem:[%s8 + $0x54] sm:$0xf]
  %v2581 = vld [vmem:[%s8 + $0x58] sm:$0xf]
  %v2582 = vld [vmem:[%s8 + $0x5c] sm:$0xf]
  %v2583 = vld [vmem:[%s8 + $0x60] sm:$0xf]
  %v2584 = vld [vmem:[%s8 + $0x64] sm:$0xf]
  %v2585 = vld [vmem:[%s8 + $0x68] sm:$0xf]
  %v2586 = vld [vmem:[%s8 + $0x6c] sm:$0xf]
  %v2587 = vld [vmem:[%s8 + $0x70] sm:$0xf]
  %v2588 = vld [vmem:[%s8 + $0x74] sm:$0xf]
  %v2589 = vld [vmem:[%s8 + $0x78] sm:$0xf]
  %v2590 = vld [vmem:[%s8 + $0x7c] sm:$0xf]
  %v2623 = vunpack.c.l.b16 %v2559
  %v2624 = vunpack.c.l.b16 %v2560
  %v2625 = vunpack.c.l.b16 %v2561
  %v2626 = vunpack.c.l.b16 %v2562
  %v2627 = vunpack.c.l.b16 %v2563
  %v2628 = vunpack.c.l.b16 %v2564
  %v2629 = vunpack.c.l.b16 %v2565
  %v2630 = vunpack.c.l.b16 %v2566
  %v2631 = vunpack.c.l.b16 %v2567
  %v2632 = vunpack.c.l.b16 %v2568
  %v2633 = vunpack.c.l.b16 %v2569
  %v2634 = vunpack.c.l.b16 %v2570
  %v2635 = vunpack.c.l.b16 %v2571
  %v2636 = vunpack.c.l.b16 %v2572
  %v2637 = vunpack.c.l.b16 %v2573
  %v2638 = vunpack.c.l.b16 %v2574
  %v2639 = vunpack.c.l.b16 %v2575
  %v2640 = vunpack.c.l.b16 %v2576
  %v2641 = vunpack.c.l.b16 %v2577
  %v2642 = vunpack.c.l.b16 %v2578
  %v2643 = vunpack.c.l.b16 %v2579
  %v2644 = vunpack.c.l.b16 %v2580
  %v2645 = vunpack.c.l.b16 %v2581
  %v2646 = vunpack.c.l.b16 %v2582
  %v2647 = vunpack.c.l.b16 %v2583
  %v2648 = vunpack.c.l.b16 %v2584
  %v2649 = vunpack.c.l.b16 %v2585
  %v2650 = vunpack.c.l.b16 %v2586
  %v2651 = vunpack.c.l.b16 %v2587
  %v2652 = vunpack.c.l.b16 %v2588
  %v2653 = vunpack.c.l.b16 %v2589
  %v2654 = vunpack.c.l.b16 %v2590
  %v2655 = vpack.c.b16 %v2624, %v2623
  %v2656 = vpack.c.b16 %v2626, %v2625
  %v2657 = vpack.c.b16 %v2628, %v2627
  %v2658 = vpack.c.b16 %v2630, %v2629
  %v2659 = vpack.c.b16 %v2632, %v2631
  %v2660 = vpack.c.b16 %v2634, %v2633
  %v2661 = vpack.c.b16 %v2636, %v2635
  %v2662 = vpack.c.b16 %v2638, %v2637
  %v2663 = vpack.c.b16 %v2640, %v2639
  %v2664 = vpack.c.b16 %v2642, %v2641
  %v2665 = vpack.c.b16 %v2644, %v2643
  %v2666 = vpack.c.b16 %v2646, %v2645
  %v2667 = vpack.c.b16 %v2648, %v2647
  %v2668 = vpack.c.b16 %v2650, %v2649
  %v2669 = vpack.c.b16 %v2652, %v2651
  %v2670 = vpack.c.b16 %v2654, %v2653
  %2687 = vmatprep.subr.bf16.mxu0 0
  %2688 = vmatpush1.bf16.msra.mxu0 %v2655
  %2689 = vmatprep.subr.bf16.mxu0 0
  %2690 = vmatpush1.bf16.msra.mxu0 %v2656
  %2691 = vmatprep.subr.bf16.mxu0 0
  %2692 = vmatpush1.bf16.msra.mxu0 %v2657
  %2693 = vmatprep.subr.bf16.mxu0 0
  %2694 = vmatpush1.bf16.msra.mxu0 %v2658
  %2695 = vmatprep.subr.bf16.mxu0 0
  %2696 = vmatpush1.bf16.msra.mxu0 %v2659
  %2697 = vmatprep.subr.bf16.mxu0 0
  %2698 = vmatpush1.bf16.msra.mxu0 %v2660
  %2699 = vmatprep.subr.bf16.mxu0 0
  %2700 = vmatpush1.bf16.msra.mxu0 %v2661
  %2701 = vmatprep.subr.bf16.mxu0 0
  %2702 = vmatpush1.bf16.msra.mxu0 %v2662
  %2703 = vmatprep.subr.bf16.mxu0 0
  %2704 = vmatpush1.bf16.msra.mxu0 %v2663
  %2705 = vmatprep.subr.bf16.mxu0 0
  %2706 = vmatpush1.bf16.msra.mxu0 %v2664
  %2707 = vmatprep.subr.bf16.mxu0 0
  %2708 = vmatpush1.bf16.msra.mxu0 %v2665
  %2709 = vmatprep.subr.bf16.mxu0 0
  %2710 = vmatpush1.bf16.msra.mxu0 %v2666
  %2711 = vmatprep.subr.bf16.mxu0 0
  %2712 = vmatpush1.bf16.msra.mxu0 %v2667
  %2713 = vmatprep.subr.bf16.mxu0 0
  %2714 = vmatpush1.bf16.msra.mxu0 %v2668
  %2715 = vmatprep.subr.bf16.mxu0 0
  %2716 = vmatpush1.bf16.msra.mxu0 %v2669
  %2717 = vmatprep.subr.bf16.mxu0 0
  %2718 = vmatpush1.bf16.msra.mxu0 %v2670
  %2719 = vmatprep.mubr.bf16.mxu0 %v2554
  %2720 = vmatmul.mubr.bf16.gmra.mrb[0].mxu0 %v2553
  %v2721 = vpop.f32.mrb[0].mxu0
  %v2722 = vadd.f32 0.0, %v2721
  %v2723 = vpop.f32.mrb[0].mxu0
  %v2724 = vpop.f32.mrb[0].mxu0
  %v2725 = vadd.f32 0.0, %v2724
  %v2726 = vpop.f32.mrb[0].mxu0
  %2727 = vmatprep.mubr.bf16.mxu0 %v2556
  %2728 = vmatmul.mubr.bf16.gmra.mrb[0].mxu0 %v2555
  %v2729 = vpop.f32.mrb[0].mxu0
  %v2730 = vadd.f32 0.0, %v2729
  %v2731 = vpop.f32.mrb[0].mxu0
  %v2732 = vpop.f32.mrb[0].mxu0
  %v2733 = vadd.f32 0.0, %v2732
  %v2734 = vpop.f32.mrb[0].mxu0
  %2735 = vmatprep.mubr.bf16.mxu0 %v2558
  %2736 = vmatmul.mubr.bf16.gmra.mrb[0].mxu0 %v2557
  %v2737 = vpop.f32.mrb[0].mxu0
  %v2738 = vadd.f32 0.0, %v2737
  %v2739 = vpop.f32.mrb[0].mxu0
  %v2740 = vpop.f32.mrb[0].mxu0
  %v2741 = vpop.f32.mrb[0].mxu0
  %2742 = vdwg.mxu0
  %v2743 = vadd.f32 %v2211, %v2722
  %v2744 = vadd.f32 %v2212, %v2725
  %v2745 = vadd.f32 %v2213, %v2730
  %v2746 = vadd.f32 %v2214, %v2733
  %v2747 = vadd.f32 %v2215, %v2738
  %v2748 = vlaneseq
  %v2749 = vshrl.u32 %v2748, 7
  %v2750 = vsub.s32 5, %v2749
  %v2751 = vrot.slane %v240, %v2750
  %v2752 = vadd.f32 %v2743, %v2751
  %v2753 = vadd.f32 %v2744, %v2751
  %v2754 = vadd.f32 %v2745, %v2751
  %v2755 = vadd.f32 %v2746, %v2751
  %v2756 = vadd.f32 %v2747, %v2751
  %s2757 = scalar_lea.vmem %s9, 8
  %v2758 = vld [vmem:[%s2757] sm:$0xff]
  %2759 = vadd.xlane.f32.xlu0 %v2752
  %v2760 = vpop.xlane.xlu0 %2759
  %2761 = vadd.xlane.f32.xlu0 %v2753
  %v2762 = vpop.xlane.xlu0 %2761
  %2763 = vadd.xlane.f32.xlu0 %v2754
  %v2764 = vpop.xlane.xlu0 %2763
  %2765 = vadd.xlane.f32.xlu0 %v2755
  %v2766 = vpop.xlane.xlu0 %2765
  %v2767 = vsel %vm249, %v2756, 0.0
  %2768 = vadd.xlane.f32.xlu0 %v2767
  %v2769 = vpop.xlane.xlu0 %2768
  %v2770 = vmul.f32 %v2760, %v253
  %v2771 = vmul.f32 %v2762, %v253
  %v2772 = vmul.f32 %v2764, %v253
  %v2773 = vmul.f32 %v2766, %v253
  %v2774 = vmul.f32 %v2769, %v253
  %v2775 = vsub.f32 %v2752, %v2770
  %v2776 = vsub.f32 %v2753, %v2771
  %v2777 = vsub.f32 %v2754, %v2772
  %v2778 = vsub.f32 %v2755, %v2773
  %v2779 = vsub.f32 %v2756, %v2774
  %v2780 = vmul.f32 %v2775, %v2775
  %v2781 = vmul.f32 %v2776, %v2776
  %v2782 = vmul.f32 %v2777, %v2777
  %v2783 = vmul.f32 %v2778, %v2778
  %v2784 = vmul.f32 %v2779, %v2779
  %2785 = vadd.xlane.f32.xlu0 %v2780
  %v2786 = vpop.xlane.xlu0 %2785
  %2787 = vadd.xlane.f32.xlu0 %v2781
  %v2788 = vpop.xlane.xlu0 %2787
  %2789 = vadd.xlane.f32.xlu0 %v2782
  %v2790 = vpop.xlane.xlu0 %2789
  %2791 = vadd.xlane.f32.xlu0 %v2783
  %v2792 = vpop.xlane.xlu0 %2791
  %v2793 = vsel %vm249, %v2784, 0.0
  %2794 = vadd.xlane.f32.xlu0 %v2793
  %v2795 = vpop.xlane.xlu0 %2794
  %v2796 = vmul.f32 %v2786, %v253
  %v2797 = vmul.f32 %v2788, %v253
  %v2798 = vmul.f32 %v2790, %v253
  %v2799 = vmul.f32 %v2792, %v253
  %v2800 = vmul.f32 %v2795, %v253
  %v2801 = vadd.f32 %v2796, 1e-06
  %v2802 = vadd.f32 %v2797, 1e-06
  %v2803 = vadd.f32 %v2798, 1e-06
  %v2804 = vadd.f32 %v2799, 1e-06
  %v2805 = vadd.f32 %v2800, 1e-06
  %v2806 = vrsqrt.pop %v2801
  %v2807 = vrsqrt.pop %v2802
  %v2808 = vrsqrt.pop %v2803
  %v2809 = vrsqrt.pop %v2804
  %v2810 = vrsqrt.pop %v2805
  %v2811 = vmul.f32 %v2775, %v2806
  %v2812 = vmul.f32 %v2776, %v2807
  %v2813 = vmul.f32 %v2777, %v2808
  %v2814 = vmul.f32 %v2778, %v2809
  %v2815 = vmul.f32 %v2779, %v2810
  %v2816 = vlaneseq
  %v2817 = vshrl.u32 %v2816, 7
  %v2818 = vsub.s32 0, %v2817
  %v2819 = vrot.slane %v2758, %v2818
  %v2820 = vmul.f32 %v2811, %v2819
  %v2821 = vmul.f32 %v2812, %v2819
  %v2822 = vmul.f32 %v2813, %v2819
  %v2823 = vmul.f32 %v2814, %v2819
  %v2824 = vmul.f32 %v2815, %v2819
  %v2825 = vlaneseq
  %v2826 = vshrl.u32 %v2825, 7
  %v2827 = vsub.s32 1, %v2826
  %v2828 = vrot.slane %v2758, %v2827
  %v2829 = vadd.f32 %v2820, %v2828
  %v2830 = vadd.f32 %v2821, %v2828
  %v2831 = vadd.f32 %v2822, %v2828
  %v2832 = vadd.f32 %v2823, %v2828
  %v2833 = vadd.f32 %v2824, %v2828
  %v2834 = vpack.c.bf16 %v2830, %v2829
  %v2835 = vpack.c.bf16 %v2832, %v2831
  %v2836 = vpack.c.bf16 %v2833, %v2833
  %s2837 = scalar_lea.vmem %s3, 192
  %v2838 = vld [vmem:[%s2837] sm:$0xff]
  %v2839 = vld [vmem:[%s2837 + $0x8] sm:$0xf]
  %v2840 = vld [vmem:[%s2837 + $0xc] sm:$0xff]
  %v2841 = vld [vmem:[%s2837 + $0x14] sm:$0xf]
  %v2842 = vld [vmem:[%s2837 + $0x18] sm:$0xff]
  %v2843 = vld [vmem:[%s2837 + $0x20] sm:$0xf]
  %v2844 = vld [vmem:[%s2837 + $0x24] sm:$0xff]
  %v2845 = vld [vmem:[%s2837 + $0x2c] sm:$0xf]
  %v2846 = vld [vmem:[%s2837 + $0x30] sm:$0xff]
  %v2847 = vld [vmem:[%s2837 + $0x38] sm:$0xf]
  %v2848 = vld [vmem:[%s2837 + $0x3c] sm:$0xff]
  %v2849 = vld [vmem:[%s2837 + $0x44] sm:$0xf]
  %v2850 = vld [vmem:[%s2837 + $0x48] sm:$0xff]
  %v2851 = vld [vmem:[%s2837 + $0x50] sm:$0xf]
  %v2852 = vld [vmem:[%s2837 + $0x54] sm:$0xff]
  %v2853 = vld [vmem:[%s2837 + $0x5c] sm:$0xf]
  %v2854 = vld [vmem:[%s2837 + $0x60] sm:$0xff]
  %v2855 = vld [vmem:[%s2837 + $0x68] sm:$0xf]
  %v2856 = vld [vmem:[%s2837 + $0x6c] sm:$0xff]
  %v2857 = vld [vmem:[%s2837 + $0x74] sm:$0xf]
  %v2858 = vld [vmem:[%s2837 + $0x78] sm:$0xff]
  %v2859 = vld [vmem:[%s2837 + $0x80] sm:$0xf]
  %v2860 = vld [vmem:[%s2837 + $0x84] sm:$0xff]
  %v2861 = vld [vmem:[%s2837 + $0x8c] sm:$0xf]
  %v2862 = vld [vmem:[%s2837 + $0x90] sm:$0xff]
  %v2863 = vld [vmem:[%s2837 + $0x98] sm:$0xf]
  %v2864 = vld [vmem:[%s2837 + $0x9c] sm:$0xff]
  %v2865 = vld [vmem:[%s2837 + $0xa4] sm:$0xf]
  %v2866 = vld [vmem:[%s2837 + $0xa8] sm:$0xff]
  %v2867 = vld [vmem:[%s2837 + $0xb0] sm:$0xf]
  %v2868 = vld [vmem:[%s2837 + $0xb4] sm:$0xff]
  %v2869 = vld [vmem:[%s2837 + $0xbc] sm:$0xf]
  %s2870 = scalar_lea.vmem %s4, 3
  %v2871 = vld [vmem:[%s2870] sm:$0x7]
  %v2873 = vlaneseq
  %v2874 = vshrl.u32 %v2873, 7
  %v2875 = vsub.s32 0, %v2874
  %v2876 = vrot.slane %v2871, %v2875
  %v2877 = vlaneseq
  %v2878 = vshrl.u32 %v2877, 7
  %v2879 = vsub.s32 1, %v2878
  %v2880 = vrot.slane %v2871, %v2879
  %v2881 = vlaneseq
  %v2882 = vshrl.u32 %v2881, 7
  %v2883 = vsub.s32 2, %v2882
  %v2884 = vrot.slane %v2871, %v2883
  %v2920 = vunpack.c.l.b16 %v2838
  %v2921 = vunpack.c.h.b16 %v2838
  %v2922 = vunpack.c.l.b16 %v2839
  %v2923 = vunpack.c.l.b16 %v2840
  %v2924 = vunpack.c.h.b16 %v2840
  %v2925 = vunpack.c.l.b16 %v2841
  %v2926 = vunpack.c.l.b16 %v2842
  %v2927 = vunpack.c.h.b16 %v2842
  %v2928 = vunpack.c.l.b16 %v2843
  %v2929 = vunpack.c.l.b16 %v2844
  %v2930 = vunpack.c.h.b16 %v2844
  %v2931 = vunpack.c.l.b16 %v2845
  %v2932 = vunpack.c.l.b16 %v2846
  %v2933 = vunpack.c.h.b16 %v2846
  %v2934 = vunpack.c.l.b16 %v2847
  %v2935 = vunpack.c.l.b16 %v2848
  %v2936 = vunpack.c.h.b16 %v2848
  %v2937 = vunpack.c.l.b16 %v2849
  %v2938 = vunpack.c.l.b16 %v2850
  %v2939 = vunpack.c.h.b16 %v2850
  %v2940 = vunpack.c.l.b16 %v2851
  %v2941 = vunpack.c.l.b16 %v2852
  %v2942 = vunpack.c.h.b16 %v2852
  %v2943 = vunpack.c.l.b16 %v2853
  %v2944 = vunpack.c.l.b16 %v2854
  %v2945 = vunpack.c.h.b16 %v2854
  %v2946 = vunpack.c.l.b16 %v2855
  %v2947 = vunpack.c.l.b16 %v2856
  %v2948 = vunpack.c.h.b16 %v2856
  %v2949 = vunpack.c.l.b16 %v2857
  %v2950 = vunpack.c.l.b16 %v2858
  %v2951 = vunpack.c.h.b16 %v2858
  %v2952 = vunpack.c.l.b16 %v2859
  %v2953 = vunpack.c.l.b16 %v2860
  %v2954 = vunpack.c.h.b16 %v2860
  %v2955 = vunpack.c.l.b16 %v2861
  %v2956 = vunpack.c.l.b16 %v2862
  %v2957 = vunpack.c.h.b16 %v2862
  %v2958 = vunpack.c.l.b16 %v2863
  %v2959 = vunpack.c.l.b16 %v2864
  %v2960 = vunpack.c.h.b16 %v2864
  %v2961 = vunpack.c.l.b16 %v2865
  %v2962 = vunpack.c.l.b16 %v2866
  %v2963 = vunpack.c.h.b16 %v2866
  %v2964 = vunpack.c.l.b16 %v2867
  %v2965 = vunpack.c.l.b16 %v2868
  %v2966 = vunpack.c.h.b16 %v2868
  %v2967 = vunpack.c.l.b16 %v2869
  %v2968 = vpack.c.b16 %v2923, %v2920
  %v2969 = vpack.c.b16 %v2924, %v2921
  %v2970 = vpack.c.b16 %v2925, %v2922
  %v2971 = vpack.c.b16 %v2929, %v2926
  %v2972 = vpack.c.b16 %v2930, %v2927
  %v2973 = vpack.c.b16 %v2931, %v2928
  %v2974 = vpack.c.b16 %v2935, %v2932
  %v2975 = vpack.c.b16 %v2936, %v2933
  %v2976 = vpack.c.b16 %v2937, %v2934
  %v2977 = vpack.c.b16 %v2941, %v2938
  %v2978 = vpack.c.b16 %v2942, %v2939
  %v2979 = vpack.c.b16 %v2943, %v2940
  %v2980 = vpack.c.b16 %v2947, %v2944
  %v2981 = vpack.c.b16 %v2948, %v2945
  %v2982 = vpack.c.b16 %v2949, %v2946
  %v2983 = vpack.c.b16 %v2953, %v2950
  %v2984 = vpack.c.b16 %v2954, %v2951
  %v2985 = vpack.c.b16 %v2955, %v2952
  %v2986 = vpack.c.b16 %v2959, %v2956
  %v2987 = vpack.c.b16 %v2960, %v2957
  %v2988 = vpack.c.b16 %v2961, %v2958
  %v2989 = vpack.c.b16 %v2965, %v2962
  %v2990 = vpack.c.b16 %v2966, %v2963
  %v2991 = vpack.c.b16 %v2967, %v2964
  %3016 = vmatprep.subr.bf16.mxu0 %v2969
  %3017 = vmatpush1.bf16.msra.mxu0 %v2968
  %3018 = vmatprep.subr.bf16.mxu0 %v2972
  %3019 = vmatpush1.bf16.msra.mxu0 %v2971
  %3020 = vmatprep.subr.bf16.mxu0 %v2975
  %3021 = vmatpush1.bf16.msra.mxu0 %v2974
  %3022 = vmatprep.subr.bf16.mxu0 %v2978
  %3023 = vmatpush1.bf16.msra.mxu0 %v2977
  %3024 = vmatprep.subr.bf16.mxu0 %v2981
  %3025 = vmatpush1.bf16.msra.mxu0 %v2980
  %3026 = vmatprep.subr.bf16.mxu0 %v2984
  %3027 = vmatpush1.bf16.msra.mxu0 %v2983
  %3028 = vmatprep.subr.bf16.mxu0 %v2987
  %3029 = vmatpush1.bf16.msra.mxu0 %v2986
  %3030 = vmatprep.subr.bf16.mxu0 %v2990
  %3031 = vmatpush1.bf16.msra.mxu0 %v2989
  %3032 = vmatprep.subr.bf16.mxu0 0
  %3033 = vmatpush1.bf16.msra.mxu0 0
  %3034 = vmatprep.subr.bf16.mxu0 0
  %3035 = vmatpush1.bf16.msra.mxu0 0
  %3036 = vmatprep.subr.bf16.mxu0 0
  %3037 = vmatpush1.bf16.msra.mxu0 0
  %3038 = vmatprep.subr.bf16.mxu0 0
  %3039 = vmatpush1.bf16.msra.mxu0 0
  %3040 = vmatprep.subr.bf16.mxu0 0
  %3041 = vmatpush1.bf16.msra.mxu0 0
  %3042 = vmatprep.subr.bf16.mxu0 0
  %3043 = vmatpush1.bf16.msra.mxu0 0
  %3044 = vmatprep.subr.bf16.mxu0 0
  %3045 = vmatpush1.bf16.msra.mxu0 0
  %3046 = vmatprep.subr.bf16.mxu0 0
  %3047 = vmatpush1.bf16.msra.mxu0 0
  %3048 = vmatprep.mubr.bf16.mxu0 0
  %3049 = vmatmul.mubr.bf16.gmra.mrb[0].mxu0 %v2834
  %v3050 = vpop.f32.mrb[0].mxu0
  %v3051 = vadd.f32 %v2876, %v3050
  %v3052 = vpop.f32.mrb[0].mxu0
  %v3053 = vadd.f32 %v2880, %v3052
  %v3054 = vpop.f32.mrb[0].mxu0
  %v3055 = vadd.f32 %v2876, %v3054
  %v3056 = vpop.f32.mrb[0].mxu0
  %v3057 = vadd.f32 %v2880, %v3056
  %3058 = vmatprep.mubr.bf16.mxu0 0
  %3059 = vmatmul.mubr.bf16.gmra.mrb[0].mxu0 %v2835
  %v3060 = vpop.f32.mrb[0].mxu0
  %v3061 = vadd.f32 %v2876, %v3060
  %v3062 = vpop.f32.mrb[0].mxu0
  %v3063 = vadd.f32 %v2880, %v3062
  %v3064 = vpop.f32.mrb[0].mxu0
  %v3065 = vadd.f32 %v2876, %v3064
  %v3066 = vpop.f32.mrb[0].mxu0
  %v3067 = vadd.f32 %v2880, %v3066
  %3068 = vmatprep.mubr.bf16.mxu0 0
  %3069 = vmatmul.mubr.bf16.gmra.mrb[0].mxu0 %v2836
  %v3070 = vpop.f32.mrb[0].mxu0
  %v3071 = vadd.f32 %v2876, %v3070
  %v3072 = vpop.f32.mrb[0].mxu0
  %v3073 = vadd.f32 %v2880, %v3072
  %v3074 = vpop.f32.mrb[0].mxu0
  %v3075 = vpop.f32.mrb[0].mxu0
  %3076 = vdwg.mxu0
  %3077 = vmatprep.subr.bf16.mxu0 0
  %3078 = vmatpush1.bf16.msra.mxu0 %v2970
  %3079 = vmatprep.subr.bf16.mxu0 0
  %3080 = vmatpush1.bf16.msra.mxu0 %v2973
  %3081 = vmatprep.subr.bf16.mxu0 0
  %3082 = vmatpush1.bf16.msra.mxu0 %v2976
  %3083 = vmatprep.subr.bf16.mxu0 0
  %3084 = vmatpush1.bf16.msra.mxu0 %v2979
  %3085 = vmatprep.subr.bf16.mxu0 0
  %3086 = vmatpush1.bf16.msra.mxu0 %v2982
  %3087 = vmatprep.subr.bf16.mxu0 0
  %3088 = vmatpush1.bf16.msra.mxu0 %v2985
  %3089 = vmatprep.subr.bf16.mxu0 0
  %3090 = vmatpush1.bf16.msra.mxu0 %v2988
  %3091 = vmatprep.subr.bf16.mxu0 0
  %3092 = vmatpush1.bf16.msra.mxu0 %v2991
  %3093 = vmatprep.subr.bf16.mxu0 0
  %3094 = vmatpush1.bf16.msra.mxu0 0
  %3095 = vmatprep.subr.bf16.mxu0 0
  %3096 = vmatpush1.bf16.msra.mxu0 0
  %3097 = vmatprep.subr.bf16.mxu0 0
  %3098 = vmatpush1.bf16.msra.mxu0 0
  %3099 = vmatprep.subr.bf16.mxu0 0
  %3100 = vmatpush1.bf16.msra.mxu0 0
  %3101 = vmatprep.subr.bf16.mxu0 0
  %3102 = vmatpush1.bf16.msra.mxu0 0
  %3103 = vmatprep.subr.bf16.mxu0 0
  %3104 = vmatpush1.bf16.msra.mxu0 0
  %3105 = vmatprep.subr.bf16.mxu0 0
  %3106 = vmatpush1.bf16.msra.mxu0 0
  %3107 = vmatprep.subr.bf16.mxu0 0
  %3108 = vmatpush1.bf16.msra.mxu0 0
  %3109 = vmatprep.mubr.bf16.mxu0 0
  %3110 = vmatmul.mubr.bf16.gmra.mrb[0].mxu0 %v2834
  %v3111 = vpop.f32.mrb[0].mxu0
  %v3112 = vadd.f32 %v2884, %v3111
  %v3113 = vpop.f32.mrb[0].mxu0
  %v3114 = vpop.f32.mrb[0].mxu0
  %v3115 = vadd.f32 %v2884, %v3114
  %v3116 = vpop.f32.mrb[0].mxu0
  %3117 = vmatprep.mubr.bf16.mxu0 0
  %3118 = vmatmul.mubr.bf16.gmra.mrb[0].mxu0 %v2835
  %v3119 = vpop.f32.mrb[0].mxu0
  %v3120 = vadd.f32 %v2884, %v3119
  %v3121 = vpop.f32.mrb[0].mxu0
  %v3122 = vpop.f32.mrb[0].mxu0
  %v3123 = vadd.f32 %v2884, %v3122
  %v3124 = vpop.f32.mrb[0].mxu0
  %3125 = vmatprep.mubr.bf16.mxu0 0
  %3126 = vmatmul.mubr.bf16.gmra.mrb[0].mxu0 %v2836
  %v3127 = vpop.f32.mrb[0].mxu0
  %v3128 = vadd.f32 %v2884, %v3127
  %v3129 = vpop.f32.mrb[0].mxu0
  %v3130 = vpop.f32.mrb[0].mxu0
  %v3131 = vpop.f32.mrb[0].mxu0
  %3132 = vdwg.mxu0
  %v3133 = vpack.c.bf16 %v3055, %v3051
  %v3134 = vpack.c.bf16 %v3061, %v3061
  %v3135 = vpack.c.bf16 %v3057, %v3053
  %v3136 = vpack.c.bf16 %v3063, %v3063
  %v3137 = vpack.c.bf16 %v3115, %v3112
  %v3138 = vpack.c.bf16 %v3120, %v3120
  %v3140 = vsel %vm621, %v3133, 0
  %v3143 = vsel %vm621, %v3134, 0
  %v3146 = vsel %vm621, %v3135, 0
  %v3149 = vsel %vm621, %v3136, 0
  %3151 = vmatprep.subr.bf16.mxu0 0
  %3152 = vmatpush1.bf16.xpose.msra.mxu0 %v3146
  %3153 = vmatprep.subr.bf16.mxu0 0
  %3154 = vmatpush1.bf16.xpose.msra.mxu0 %v3149
  %3155 = vmatprep.subr.bf16.mxu0 0
  %3156 = vmatpush1.bf16.xpose.msra.mxu0 0
  %3157 = vmatprep.subr.bf16.mxu0 0
  %3158 = vmatpush1.bf16.xpose.msra.mxu0 0
  %3159 = vmatprep.subr.bf16.mxu0 0
  %3160 = vmatpush1.bf16.xpose.msra.mxu0 0
  %3161 = vmatprep.subr.bf16.mxu0 0
  %3162 = vmatpush1.bf16.xpose.msra.mxu0 0
  %3163 = vmatprep.subr.bf16.mxu0 0
  %3164 = vmatpush1.bf16.xpose.msra.mxu0 0
  %3165 = vmatprep.subr.bf16.mxu0 0
  %3166 = vmatpush1.bf16.xpose.msra.mxu0 0
  %3167 = vmatprep.subr.bf16.mxu0 0
  %3168 = vmatpush1.bf16.xpose.msra.mxu0 0
  %3169 = vmatprep.subr.bf16.mxu0 0
  %3170 = vmatpush1.bf16.xpose.msra.mxu0 0
  %3171 = vmatprep.subr.bf16.mxu0 0
  %3172 = vmatpush1.bf16.xpose.msra.mxu0 0
  %3173 = vmatprep.subr.bf16.mxu0 0
  %3174 = vmatpush1.bf16.xpose.msra.mxu0 0
  %3175 = vmatprep.subr.bf16.mxu0 0
  %3176 = vmatpush1.bf16.xpose.msra.mxu0 0
  %3177 = vmatprep.subr.bf16.mxu0 0
  %3178 = vmatpush1.bf16.xpose.msra.mxu0 0
  %3179 = vmatprep.subr.bf16.mxu0 0
  %3180 = vmatpush1.bf16.xpose.msra.mxu0 0
  %3181 = vmatprep.subr.bf16.mxu0 0
  %3182 = vmatpush1.bf16.xpose.msra.mxu0 0
  %3183 = vmatprep.mubr.bf16.mxu0 0
  %3184 = vmatmul.mubr.bf16.gmra.mrb[0].mxu0 %v3140
  %v3185 = vpop.f32.mrb[0].mxu0
  %v3186 = vadd.f32 0.0, %v3185
  %v3187 = vpop.f32.mrb[0].mxu0
  %v3188 = vpop.f32.mrb[0].mxu0
  %v3189 = vadd.f32 0.0, %v3188
  %v3190 = vpop.f32.mrb[0].mxu0
  %3191 = vmatprep.mubr.bf16.mxu0 0
  %3192 = vmatmul.mubr.bf16.gmra.mrb[0].mxu0 %v3143
  %v3193 = vpop.f32.mrb[0].mxu0
  %v3194 = vadd.f32 0.0, %v3193
  %v3195 = vpop.f32.mrb[0].mxu0
  %v3196 = vpop.f32.mrb[0].mxu0
  %v3197 = vpop.f32.mrb[0].mxu0
  %3198 = vdwg.mxu0
  %v3199 = vsel %vm682, %v3186, -inf
  %3200 = vmax.xlane.f32.xlu0 %v3199
  %v3201 = vpop.xlane.xlu0 %3200
  %v3202 = vsel %vm682, %v3189, -inf
  %3203 = vmax.xlane.f32.xlu0 %v3202
  %v3204 = vpop.xlane.xlu0 %3203
  %v3205 = vsel %vm689, %v3194, -inf
  %3206 = vmax.xlane.f32.xlu0 %v3205
  %v3207 = vpop.xlane.xlu0 %3206
  %v3208 = vsub.f32 %v3186, %v3201
  %v3209 = vsub.f32 %v3189, %v3204
  %v3210 = vsub.f32 %v3194, %v3207
  %v3211 = vmul.f32 %v3208, 1.442695
  %v3212 = vpow.pop %v3211
  %v3213 = vmul.f32 %v3209, 1.442695
  %v3214 = vpow.pop %v3213
  %v3215 = vmul.f32 %v3210, 1.442695
  %v3216 = vpow.pop %v3215
  %v3217 = vsel %vm682, %v3212, 0.0
  %3218 = vadd.xlane.f32.xlu0 %v3217
  %v3219 = vpop.xlane.xlu0 %3218
  %v3220 = vsel %vm682, %v3214, 0.0
  %3221 = vadd.xlane.f32.xlu0 %v3220
  %v3222 = vpop.xlane.xlu0 %3221
  %v3223 = vsel %vm689, %v3216, 0.0
  %3224 = vadd.xlane.f32.xlu0 %v3223
  %v3225 = vpop.xlane.xlu0 %3224
  %v3226 = vrcp.pop %v3219
  %v3227 = vrcp.pop %v3222
  %v3228 = vrcp.pop %v3225
  %v3229 = vmul.f32 %v3212, %v3226
  %v3230 = vmul.f32 %v3214, %v3227
  %v3231 = vmul.f32 %v3216, %v3228
  %v3232 = vpack.c.bf16 %v3230, %v3229
  %v3233 = vpack.c.bf16 %v3231, %v3231
  %v3235 = vsel %vm682, %v3232, 0
  %v3238 = vsel %vm682, %v3233, 0
  %v3241 = vand.u32 %v3138, %v726
  %3243 = vmatprep.subr.bf16.mxu0 0
  %3244 = vmatpush1.bf16.msra.mxu0 %v3137
  %3245 = vmatprep.subr.bf16.mxu0 0
  %3246 = vmatpush1.bf16.msra.mxu0 %v3241
  %3247 = vmatprep.subr.bf16.mxu0 0
  %3248 = vmatpush1.bf16.msra.mxu0 0
  %3249 = vmatprep.subr.bf16.mxu0 0
  %3250 = vmatpush1.bf16.msra.mxu0 0
  %3251 = vmatprep.subr.bf16.mxu0 0
  %3252 = vmatpush1.bf16.msra.mxu0 0
  %3253 = vmatprep.subr.bf16.mxu0 0
  %3254 = vmatpush1.bf16.msra.mxu0 0
  %3255 = vmatprep.subr.bf16.mxu0 0
  %3256 = vmatpush1.bf16.msra.mxu0 0
  %3257 = vmatprep.subr.bf16.mxu0 0
  %3258 = vmatpush1.bf16.msra.mxu0 0
  %3259 = vmatprep.subr.bf16.mxu0 0
  %3260 = vmatpush1.bf16.msra.mxu0 0
  %3261 = vmatprep.subr.bf16.mxu0 0
  %3262 = vmatpush1.bf16.msra.mxu0 0
  %3263 = vmatprep.subr.bf16.mxu0 0
  %3264 = vmatpush1.bf16.msra.mxu0 0
  %3265 = vmatprep.subr.bf16.mxu0 0
  %3266 = vmatpush1.bf16.msra.mxu0 0
  %3267 = vmatprep.subr.bf16.mxu0 0
  %3268 = vmatpush1.bf16.msra.mxu0 0
  %3269 = vmatprep.subr.bf16.mxu0 0
  %3270 = vmatpush1.bf16.msra.mxu0 0
  %3271 = vmatprep.subr.bf16.mxu0 0
  %3272 = vmatpush1.bf16.msra.mxu0 0
  %3273 = vmatprep.subr.bf16.mxu0 0
  %3274 = vmatpush1.bf16.msra.mxu0 0
  %3275 = vmatprep.mubr.bf16.mxu0 0
  %3276 = vmatmul.mubr.bf16.gmra.mrb[0].mxu0 %v3235
  %v3277 = vpop.f32.mrb[0].mxu0
  %v3278 = vadd.f32 0.0, %v3277
  %v3279 = vpop.f32.mrb[0].mxu0
  %v3280 = vpop.f32.mrb[0].mxu0
  %v3281 = vadd.f32 0.0, %v3280
  %v3282 = vpop.f32.mrb[0].mxu0
  %3283 = vmatprep.mubr.bf16.mxu0 0
  %3284 = vmatmul.mubr.bf16.gmra.mrb[0].mxu0 %v3238
  %v3285 = vpop.f32.mrb[0].mxu0
  %v3286 = vadd.f32 0.0, %v3285
  %v3287 = vpop.f32.mrb[0].mxu0
  %v3288 = vpop.f32.mrb[0].mxu0
  %v3289 = vpop.f32.mrb[0].mxu0
  %3290 = vdwg.mxu0
  %3293 = vrot.lane.b32.xlu0 %v3133, 96
  %v3294 = vpop.permute.xlu0 %3293
  %3295 = vrot.lane.b32.xlu0 %v3134, 96
  %v3296 = vpop.permute.xlu0 %3295
  %3299 = vrot.lane.b32.xlu0 %v3135, 96
  %v3300 = vpop.permute.xlu0 %3299
  %3301 = vrot.lane.b32.xlu0 %v3136, 96
  %v3302 = vpop.permute.xlu0 %3301
  %v3304 = vsel %vm621, %v3294, 0
  %v3307 = vsel %vm621, %v3296, 0
  %v3310 = vsel %vm621, %v3300, 0
  %v3313 = vsel %vm621, %v3302, 0
  %3315 = vmatprep.subr.bf16.mxu0 0
  %3316 = vmatpush1.bf16.xpose.msra.mxu0 %v3310
  %3317 = vmatprep.subr.bf16.mxu0 0
  %3318 = vmatpush1.bf16.xpose.msra.mxu0 %v3313
  %3319 = vmatprep.subr.bf16.mxu0 0
  %3320 = vmatpush1.bf16.xpose.msra.mxu0 0
  %3321 = vmatprep.subr.bf16.mxu0 0
  %3322 = vmatpush1.bf16.xpose.msra.mxu0 0
  %3323 = vmatprep.subr.bf16.mxu0 0
  %3324 = vmatpush1.bf16.xpose.msra.mxu0 0
  %3325 = vmatprep.subr.bf16.mxu0 0
  %3326 = vmatpush1.bf16.xpose.msra.mxu0 0
  %3327 = vmatprep.subr.bf16.mxu0 0
  %3328 = vmatpush1.bf16.xpose.msra.mxu0 0
  %3329 = vmatprep.subr.bf16.mxu0 0
  %3330 = vmatpush1.bf16.xpose.msra.mxu0 0
  %3331 = vmatprep.subr.bf16.mxu0 0
  %3332 = vmatpush1.bf16.xpose.msra.mxu0 0
  %3333 = vmatprep.subr.bf16.mxu0 0
  %3334 = vmatpush1.bf16.xpose.msra.mxu0 0
  %3335 = vmatprep.subr.bf16.mxu0 0
  %3336 = vmatpush1.bf16.xpose.msra.mxu0 0
  %3337 = vmatprep.subr.bf16.mxu0 0
  %3338 = vmatpush1.bf16.xpose.msra.mxu0 0
  %3339 = vmatprep.subr.bf16.mxu0 0
  %3340 = vmatpush1.bf16.xpose.msra.mxu0 0
  %3341 = vmatprep.subr.bf16.mxu0 0
  %3342 = vmatpush1.bf16.xpose.msra.mxu0 0
  %3343 = vmatprep.subr.bf16.mxu0 0
  %3344 = vmatpush1.bf16.xpose.msra.mxu0 0
  %3345 = vmatprep.subr.bf16.mxu0 0
  %3346 = vmatpush1.bf16.xpose.msra.mxu0 0
  %3347 = vmatprep.mubr.bf16.mxu0 0
  %3348 = vmatmul.mubr.bf16.gmra.mrb[0].mxu0 %v3304
  %v3349 = vpop.f32.mrb[0].mxu0
  %v3350 = vadd.f32 0.0, %v3349
  %v3351 = vpop.f32.mrb[0].mxu0
  %v3352 = vpop.f32.mrb[0].mxu0
  %v3353 = vadd.f32 0.0, %v3352
  %v3354 = vpop.f32.mrb[0].mxu0
  %3355 = vmatprep.mubr.bf16.mxu0 0
  %3356 = vmatmul.mubr.bf16.gmra.mrb[0].mxu0 %v3307
  %v3357 = vpop.f32.mrb[0].mxu0
  %v3358 = vadd.f32 0.0, %v3357
  %v3359 = vpop.f32.mrb[0].mxu0
  %v3360 = vpop.f32.mrb[0].mxu0
  %v3361 = vpop.f32.mrb[0].mxu0
  %3362 = vdwg.mxu0
  %v3363 = vsel %vm682, %v3350, -inf
  %3364 = vmax.xlane.f32.xlu0 %v3363
  %v3365 = vpop.xlane.xlu0 %3364
  %v3366 = vsel %vm682, %v3353, -inf
  %3367 = vmax.xlane.f32.xlu0 %v3366
  %v3368 = vpop.xlane.xlu0 %3367
  %v3369 = vsel %vm689, %v3358, -inf
  %3370 = vmax.xlane.f32.xlu0 %v3369
  %v3371 = vpop.xlane.xlu0 %3370
  %v3372 = vsub.f32 %v3350, %v3365
  %v3373 = vsub.f32 %v3353, %v3368
  %v3374 = vsub.f32 %v3358, %v3371
  %v3375 = vmul.f32 %v3372, 1.442695
  %v3376 = vpow.pop %v3375
  %v3377 = vmul.f32 %v3373, 1.442695
  %v3378 = vpow.pop %v3377
  %v3379 = vmul.f32 %v3374, 1.442695
  %v3380 = vpow.pop %v3379
  %v3381 = vsel %vm682, %v3376, 0.0
  %3382 = vadd.xlane.f32.xlu0 %v3381
  %v3383 = vpop.xlane.xlu0 %3382
  %v3384 = vsel %vm682, %v3378, 0.0
  %3385 = vadd.xlane.f32.xlu0 %v3384
  %v3386 = vpop.xlane.xlu0 %3385
  %v3387 = vsel %vm689, %v3380, 0.0
  %3388 = vadd.xlane.f32.xlu0 %v3387
  %v3389 = vpop.xlane.xlu0 %3388
  %v3390 = vrcp.pop %v3383
  %v3391 = vrcp.pop %v3386
  %v3392 = vrcp.pop %v3389
  %v3393 = vmul.f32 %v3376, %v3390
  %v3394 = vmul.f32 %v3378, %v3391
  %v3395 = vmul.f32 %v3380, %v3392
  %v3396 = vpack.c.bf16 %v3394, %v3393
  %v3397 = vpack.c.bf16 %v3395, %v3395
  %3400 = vrot.lane.b32.xlu0 %v3137, 96
  %v3401 = vpop.permute.xlu0 %3400
  %3402 = vrot.lane.b32.xlu0 %v3138, 96
  %v3403 = vpop.permute.xlu0 %3402
  %v3406 = vsel %vm682, %v3396, 0
  %v3409 = vsel %vm682, %v3397, 0
  %v3412 = vand.u32 %v3403, %v726
  %3414 = vmatprep.subr.bf16.mxu0 0
  %3415 = vmatpush1.bf16.msra.mxu0 %v3401
  %3416 = vmatprep.subr.bf16.mxu0 0
  %3417 = vmatpush1.bf16.msra.mxu0 %v3412
  %3418 = vmatprep.subr.bf16.mxu0 0
  %3419 = vmatpush1.bf16.msra.mxu0 0
  %3420 = vmatprep.subr.bf16.mxu0 0
  %3421 = vmatpush1.bf16.msra.mxu0 0
  %3422 = vmatprep.subr.bf16.mxu0 0
  %3423 = vmatpush1.bf16.msra.mxu0 0
  %3424 = vmatprep.subr.bf16.mxu0 0
  %3425 = vmatpush1.bf16.msra.mxu0 0
  %3426 = vmatprep.subr.bf16.mxu0 0
  %3427 = vmatpush1.bf16.msra.mxu0 0
  %3428 = vmatprep.subr.bf16.mxu0 0
  %3429 = vmatpush1.bf16.msra.mxu0 0
  %3430 = vmatprep.subr.bf16.mxu0 0
  %3431 = vmatpush1.bf16.msra.mxu0 0
  %3432 = vmatprep.subr.bf16.mxu0 0
  %3433 = vmatpush1.bf16.msra.mxu0 0
  %3434 = vmatprep.subr.bf16.mxu0 0
  %3435 = vmatpush1.bf16.msra.mxu0 0
  %3436 = vmatprep.subr.bf16.mxu0 0
  %3437 = vmatpush1.bf16.msra.mxu0 0
  %3438 = vmatprep.subr.bf16.mxu0 0
  %3439 = vmatpush1.bf16.msra.mxu0 0
  %3440 = vmatprep.subr.bf16.mxu0 0
  %3441 = vmatpush1.bf16.msra.mxu0 0
  %3442 = vmatprep.subr.bf16.mxu0 0
  %3443 = vmatpush1.bf16.msra.mxu0 0
  %3444 = vmatprep.subr.bf16.mxu0 0
  %3445 = vmatpush1.bf16.msra.mxu0 0
  %3446 = vmatprep.mubr.bf16.mxu0 0
  %3447 = vmatmul.mubr.bf16.gmra.mrb[0].mxu0 %v3406
  %v3448 = vpop.f32.mrb[0].mxu0
  %v3449 = vadd.f32 0.0, %v3448
  %v3450 = vpop.f32.mrb[0].mxu0
  %v3451 = vpop.f32.mrb[0].mxu0
  %v3452 = vadd.f32 0.0, %v3451
  %v3453 = vpop.f32.mrb[0].mxu0
  %3454 = vmatprep.mubr.bf16.mxu0 0
  %3455 = vmatmul.mubr.bf16.gmra.mrb[0].mxu0 %v3409
  %v3456 = vpop.f32.mrb[0].mxu0
  %v3457 = vadd.f32 0.0, %v3456
  %v3458 = vpop.f32.mrb[0].mxu0
  %v3459 = vpop.f32.mrb[0].mxu0
  %v3460 = vpop.f32.mrb[0].mxu0
  %3461 = vdwg.mxu0
  %3462 = vrot.lane.b32.xlu0 %v3133, 64
  %v3463 = vpop.permute.xlu0 %3462
  %3464 = vrot.lane.b32.xlu0 %v3134, 64
  %v3465 = vpop.permute.xlu0 %3464
  %3466 = vrot.lane.b32.xlu0 %v3135, 64
  %v3467 = vpop.permute.xlu0 %3466
  %3468 = vrot.lane.b32.xlu0 %v3136, 64
  %v3469 = vpop.permute.xlu0 %3468
  %v3471 = vsel %vm621, %v3463, 0
  %v3474 = vsel %vm621, %v3465, 0
  %v3477 = vsel %vm621, %v3467, 0
  %v3480 = vsel %vm621, %v3469, 0
  %3482 = vmatprep.subr.bf16.mxu0 0
  %3483 = vmatpush1.bf16.xpose.msra.mxu0 %v3477
  %3484 = vmatprep.subr.bf16.mxu0 0
  %3485 = vmatpush1.bf16.xpose.msra.mxu0 %v3480
  %3486 = vmatprep.subr.bf16.mxu0 0
  %3487 = vmatpush1.bf16.xpose.msra.mxu0 0
  %3488 = vmatprep.subr.bf16.mxu0 0
  %3489 = vmatpush1.bf16.xpose.msra.mxu0 0
  %3490 = vmatprep.subr.bf16.mxu0 0
  %3491 = vmatpush1.bf16.xpose.msra.mxu0 0
  %3492 = vmatprep.subr.bf16.mxu0 0
  %3493 = vmatpush1.bf16.xpose.msra.mxu0 0
  %3494 = vmatprep.subr.bf16.mxu0 0
  %3495 = vmatpush1.bf16.xpose.msra.mxu0 0
  %3496 = vmatprep.subr.bf16.mxu0 0
  %3497 = vmatpush1.bf16.xpose.msra.mxu0 0
  %3498 = vmatprep.subr.bf16.mxu0 0
  %3499 = vmatpush1.bf16.xpose.msra.mxu0 0
  %3500 = vmatprep.subr.bf16.mxu0 0
  %3501 = vmatpush1.bf16.xpose.msra.mxu0 0
  %3502 = vmatprep.subr.bf16.mxu0 0
  %3503 = vmatpush1.bf16.xpose.msra.mxu0 0
  %3504 = vmatprep.subr.bf16.mxu0 0
  %3505 = vmatpush1.bf16.xpose.msra.mxu0 0
  %3506 = vmatprep.subr.bf16.mxu0 0
  %3507 = vmatpush1.bf16.xpose.msra.mxu0 0
  %3508 = vmatprep.subr.bf16.mxu0 0
  %3509 = vmatpush1.bf16.xpose.msra.mxu0 0
  %3510 = vmatprep.subr.bf16.mxu0 0
  %3511 = vmatpush1.bf16.xpose.msra.mxu0 0
  %3512 = vmatprep.subr.bf16.mxu0 0
  %3513 = vmatpush1.bf16.xpose.msra.mxu0 0
  %3514 = vmatprep.mubr.bf16.mxu0 0
  %3515 = vmatmul.mubr.bf16.gmra.mrb[0].mxu0 %v3471
  %v3516 = vpop.f32.mrb[0].mxu0
  %v3517 = vadd.f32 0.0, %v3516
  %v3518 = vpop.f32.mrb[0].mxu0
  %v3519 = vpop.f32.mrb[0].mxu0
  %v3520 = vadd.f32 0.0, %v3519
  %v3521 = vpop.f32.mrb[0].mxu0
  %3522 = vmatprep.mubr.bf16.mxu0 0
  %3523 = vmatmul.mubr.bf16.gmra.mrb[0].mxu0 %v3474
  %v3524 = vpop.f32.mrb[0].mxu0
  %v3525 = vadd.f32 0.0, %v3524
  %v3526 = vpop.f32.mrb[0].mxu0
  %v3527 = vpop.f32.mrb[0].mxu0
  %v3528 = vpop.f32.mrb[0].mxu0
  %3529 = vdwg.mxu0
  %v3530 = vsel %vm682, %v3517, -inf
  %3531 = vmax.xlane.f32.xlu0 %v3530
  %v3532 = vpop.xlane.xlu0 %3531
  %v3533 = vsel %vm682, %v3520, -inf
  %3534 = vmax.xlane.f32.xlu0 %v3533
  %v3535 = vpop.xlane.xlu0 %3534
  %v3536 = vsel %vm689, %v3525, -inf
  %3537 = vmax.xlane.f32.xlu0 %v3536
  %v3538 = vpop.xlane.xlu0 %3537
  %v3539 = vsub.f32 %v3517, %v3532
  %v3540 = vsub.f32 %v3520, %v3535
  %v3541 = vsub.f32 %v3525, %v3538
  %v3542 = vmul.f32 %v3539, 1.442695
  %v3543 = vpow.pop %v3542
  %v3544 = vmul.f32 %v3540, 1.442695
  %v3545 = vpow.pop %v3544
  %v3546 = vmul.f32 %v3541, 1.442695
  %v3547 = vpow.pop %v3546
  %v3548 = vsel %vm682, %v3543, 0.0
  %3549 = vadd.xlane.f32.xlu0 %v3548
  %v3550 = vpop.xlane.xlu0 %3549
  %v3551 = vsel %vm682, %v3545, 0.0
  %3552 = vadd.xlane.f32.xlu0 %v3551
  %v3553 = vpop.xlane.xlu0 %3552
  %v3554 = vsel %vm689, %v3547, 0.0
  %3555 = vadd.xlane.f32.xlu0 %v3554
  %v3556 = vpop.xlane.xlu0 %3555
  %v3557 = vrcp.pop %v3550
  %v3558 = vrcp.pop %v3553
  %v3559 = vrcp.pop %v3556
  %v3560 = vmul.f32 %v3543, %v3557
  %v3561 = vmul.f32 %v3545, %v3558
  %v3562 = vmul.f32 %v3547, %v3559
  %v3563 = vpack.c.bf16 %v3561, %v3560
  %v3564 = vpack.c.bf16 %v3562, %v3562
  %3565 = vrot.lane.b32.xlu0 %v3137, 64
  %v3566 = vpop.permute.xlu0 %3565
  %3567 = vrot.lane.b32.xlu0 %v3138, 64
  %v3568 = vpop.permute.xlu0 %3567
  %v3571 = vsel %vm682, %v3563, 0
  %v3574 = vsel %vm682, %v3564, 0
  %v3577 = vand.u32 %v3568, %v726
  %3579 = vmatprep.subr.bf16.mxu0 0
  %3580 = vmatpush1.bf16.msra.mxu0 %v3566
  %3581 = vmatprep.subr.bf16.mxu0 0
  %3582 = vmatpush1.bf16.msra.mxu0 %v3577
  %3583 = vmatprep.subr.bf16.mxu0 0
  %3584 = vmatpush1.bf16.msra.mxu0 0
  %3585 = vmatprep.subr.bf16.mxu0 0
  %3586 = vmatpush1.bf16.msra.mxu0 0
  %3587 = vmatprep.subr.bf16.mxu0 0
  %3588 = vmatpush1.bf16.msra.mxu0 0
  %3589 = vmatprep.subr.bf16.mxu0 0
  %3590 = vmatpush1.bf16.msra.mxu0 0
  %3591 = vmatprep.subr.bf16.mxu0 0
  %3592 = vmatpush1.bf16.msra.mxu0 0
  %3593 = vmatprep.subr.bf16.mxu0 0
  %3594 = vmatpush1.bf16.msra.mxu0 0
  %3595 = vmatprep.subr.bf16.mxu0 0
  %3596 = vmatpush1.bf16.msra.mxu0 0
  %3597 = vmatprep.subr.bf16.mxu0 0
  %3598 = vmatpush1.bf16.msra.mxu0 0
  %3599 = vmatprep.subr.bf16.mxu0 0
  %3600 = vmatpush1.bf16.msra.mxu0 0
  %3601 = vmatprep.subr.bf16.mxu0 0
  %3602 = vmatpush1.bf16.msra.mxu0 0
  %3603 = vmatprep.subr.bf16.mxu0 0
  %3604 = vmatpush1.bf16.msra.mxu0 0
  %3605 = vmatprep.subr.bf16.mxu0 0
  %3606 = vmatpush1.bf16.msra.mxu0 0
  %3607 = vmatprep.subr.bf16.mxu0 0
  %3608 = vmatpush1.bf16.msra.mxu0 0
  %3609 = vmatprep.subr.bf16.mxu0 0
  %3610 = vmatpush1.bf16.msra.mxu0 0
  %3611 = vmatprep.mubr.bf16.mxu0 0
  %3612 = vmatmul.mubr.bf16.gmra.mrb[0].mxu0 %v3571
  %v3613 = vpop.f32.mrb[0].mxu0
  %v3614 = vadd.f32 0.0, %v3613
  %v3615 = vpop.f32.mrb[0].mxu0
  %v3616 = vpop.f32.mrb[0].mxu0
  %v3617 = vadd.f32 0.0, %v3616
  %v3618 = vpop.f32.mrb[0].mxu0
  %3619 = vmatprep.mubr.bf16.mxu0 0
  %3620 = vmatmul.mubr.bf16.gmra.mrb[0].mxu0 %v3574
  %v3621 = vpop.f32.mrb[0].mxu0
  %v3622 = vadd.f32 0.0, %v3621
  %v3623 = vpop.f32.mrb[0].mxu0
  %v3624 = vpop.f32.mrb[0].mxu0
  %v3625 = vpop.f32.mrb[0].mxu0
  %3626 = vdwg.mxu0
  %3627 = vrot.lane.b32.xlu0 %v3133, 32
  %v3628 = vpop.permute.xlu0 %3627
  %3629 = vrot.lane.b32.xlu0 %v3134, 32
  %v3630 = vpop.permute.xlu0 %3629
  %3631 = vrot.lane.b32.xlu0 %v3135, 32
  %v3632 = vpop.permute.xlu0 %3631
  %3633 = vrot.lane.b32.xlu0 %v3136, 32
  %v3634 = vpop.permute.xlu0 %3633
  %v3636 = vsel %vm621, %v3628, 0
  %v3639 = vsel %vm621, %v3630, 0
  %v3642 = vsel %vm621, %v3632, 0
  %v3645 = vsel %vm621, %v3634, 0
  %3647 = vmatprep.subr.bf16.mxu0 0
  %3648 = vmatpush1.bf16.xpose.msra.mxu0 %v3642
  %3649 = vmatprep.subr.bf16.mxu0 0
  %3650 = vmatpush1.bf16.xpose.msra.mxu0 %v3645
  %3651 = vmatprep.subr.bf16.mxu0 0
  %3652 = vmatpush1.bf16.xpose.msra.mxu0 0
  %3653 = vmatprep.subr.bf16.mxu0 0
  %3654 = vmatpush1.bf16.xpose.msra.mxu0 0
  %3655 = vmatprep.subr.bf16.mxu0 0
  %3656 = vmatpush1.bf16.xpose.msra.mxu0 0
  %3657 = vmatprep.subr.bf16.mxu0 0
  %3658 = vmatpush1.bf16.xpose.msra.mxu0 0
  %3659 = vmatprep.subr.bf16.mxu0 0
  %3660 = vmatpush1.bf16.xpose.msra.mxu0 0
  %3661 = vmatprep.subr.bf16.mxu0 0
  %3662 = vmatpush1.bf16.xpose.msra.mxu0 0
  %3663 = vmatprep.subr.bf16.mxu0 0
  %3664 = vmatpush1.bf16.xpose.msra.mxu0 0
  %3665 = vmatprep.subr.bf16.mxu0 0
  %3666 = vmatpush1.bf16.xpose.msra.mxu0 0
  %3667 = vmatprep.subr.bf16.mxu0 0
  %3668 = vmatpush1.bf16.xpose.msra.mxu0 0
  %3669 = vmatprep.subr.bf16.mxu0 0
  %3670 = vmatpush1.bf16.xpose.msra.mxu0 0
  %3671 = vmatprep.subr.bf16.mxu0 0
  %3672 = vmatpush1.bf16.xpose.msra.mxu0 0
  %3673 = vmatprep.subr.bf16.mxu0 0
  %3674 = vmatpush1.bf16.xpose.msra.mxu0 0
  %3675 = vmatprep.subr.bf16.mxu0 0
  %3676 = vmatpush1.bf16.xpose.msra.mxu0 0
  %3677 = vmatprep.subr.bf16.mxu0 0
  %3678 = vmatpush1.bf16.xpose.msra.mxu0 0
  %3679 = vmatprep.mubr.bf16.mxu0 0
  %3680 = vmatmul.mubr.bf16.gmra.mrb[0].mxu0 %v3636
  %v3681 = vpop.f32.mrb[0].mxu0
  %v3682 = vadd.f32 0.0, %v3681
  %v3683 = vpop.f32.mrb[0].mxu0
  %v3684 = vpop.f32.mrb[0].mxu0
  %v3685 = vadd.f32 0.0, %v3684
  %v3686 = vpop.f32.mrb[0].mxu0
  %3687 = vmatprep.mubr.bf16.mxu0 0
  %3688 = vmatmul.mubr.bf16.gmra.mrb[0].mxu0 %v3639
  %v3689 = vpop.f32.mrb[0].mxu0
  %v3690 = vadd.f32 0.0, %v3689
  %v3691 = vpop.f32.mrb[0].mxu0
  %v3692 = vpop.f32.mrb[0].mxu0
  %v3693 = vpop.f32.mrb[0].mxu0
  %3694 = vdwg.mxu0
  %v3695 = vsel %vm682, %v3682, -inf
  %3696 = vmax.xlane.f32.xlu0 %v3695
  %v3697 = vpop.xlane.xlu0 %3696
  %v3698 = vsel %vm682, %v3685, -inf
  %3699 = vmax.xlane.f32.xlu0 %v3698
  %v3700 = vpop.xlane.xlu0 %3699
  %v3701 = vsel %vm689, %v3690, -inf
  %3702 = vmax.xlane.f32.xlu0 %v3701
  %v3703 = vpop.xlane.xlu0 %3702
  %v3704 = vsub.f32 %v3682, %v3697
  %v3705 = vsub.f32 %v3685, %v3700
  %v3706 = vsub.f32 %v3690, %v3703
  %v3707 = vmul.f32 %v3704, 1.442695
  %v3708 = vpow.pop %v3707
  %v3709 = vmul.f32 %v3705, 1.442695
  %v3710 = vpow.pop %v3709
  %v3711 = vmul.f32 %v3706, 1.442695
  %v3712 = vpow.pop %v3711
  %v3713 = vsel %vm682, %v3708, 0.0
  %3714 = vadd.xlane.f32.xlu0 %v3713
  %v3715 = vpop.xlane.xlu0 %3714
  %v3716 = vsel %vm682, %v3710, 0.0
  %3717 = vadd.xlane.f32.xlu0 %v3716
  %v3718 = vpop.xlane.xlu0 %3717
  %v3719 = vsel %vm689, %v3712, 0.0
  %3720 = vadd.xlane.f32.xlu0 %v3719
  %v3721 = vpop.xlane.xlu0 %3720
  %v3722 = vrcp.pop %v3715
  %v3723 = vrcp.pop %v3718
  %v3724 = vrcp.pop %v3721
  %v3725 = vmul.f32 %v3708, %v3722
  %v3726 = vmul.f32 %v3710, %v3723
  %v3727 = vmul.f32 %v3712, %v3724
  %v3728 = vpack.c.bf16 %v3726, %v3725
  %v3729 = vpack.c.bf16 %v3727, %v3727
  %3730 = vrot.lane.b32.xlu0 %v3137, 32
  %v3731 = vpop.permute.xlu0 %3730
  %3732 = vrot.lane.b32.xlu0 %v3138, 32
  %v3733 = vpop.permute.xlu0 %3732
  %v3736 = vsel %vm682, %v3728, 0
  %v3739 = vsel %vm682, %v3729, 0
  %v3742 = vand.u32 %v3733, %v726
  %3744 = vmatprep.subr.bf16.mxu0 0
  %3745 = vmatpush1.bf16.msra.mxu0 %v3731
  %3746 = vmatprep.subr.bf16.mxu0 0
  %3747 = vmatpush1.bf16.msra.mxu0 %v3742
  %3748 = vmatprep.subr.bf16.mxu0 0
  %3749 = vmatpush1.bf16.msra.mxu0 0
  %3750 = vmatprep.subr.bf16.mxu0 0
  %3751 = vmatpush1.bf16.msra.mxu0 0
  %3752 = vmatprep.subr.bf16.mxu0 0
  %3753 = vmatpush1.bf16.msra.mxu0 0
  %3754 = vmatprep.subr.bf16.mxu0 0
  %3755 = vmatpush1.bf16.msra.mxu0 0
  %3756 = vmatprep.subr.bf16.mxu0 0
  %3757 = vmatpush1.bf16.msra.mxu0 0
  %3758 = vmatprep.subr.bf16.mxu0 0
  %3759 = vmatpush1.bf16.msra.mxu0 0
  %3760 = vmatprep.subr.bf16.mxu0 0
  %3761 = vmatpush1.bf16.msra.mxu0 0
  %3762 = vmatprep.subr.bf16.mxu0 0
  %3763 = vmatpush1.bf16.msra.mxu0 0
  %3764 = vmatprep.subr.bf16.mxu0 0
  %3765 = vmatpush1.bf16.msra.mxu0 0
  %3766 = vmatprep.subr.bf16.mxu0 0
  %3767 = vmatpush1.bf16.msra.mxu0 0
  %3768 = vmatprep.subr.bf16.mxu0 0
  %3769 = vmatpush1.bf16.msra.mxu0 0
  %3770 = vmatprep.subr.bf16.mxu0 0
  %3771 = vmatpush1.bf16.msra.mxu0 0
  %3772 = vmatprep.subr.bf16.mxu0 0
  %3773 = vmatpush1.bf16.msra.mxu0 0
  %3774 = vmatprep.subr.bf16.mxu0 0
  %3775 = vmatpush1.bf16.msra.mxu0 0
  %3776 = vmatprep.mubr.bf16.mxu0 0
  %3777 = vmatmul.mubr.bf16.gmra.mrb[0].mxu0 %v3736
  %v3778 = vpop.f32.mrb[0].mxu0
  %v3779 = vadd.f32 0.0, %v3778
  %v3780 = vpop.f32.mrb[0].mxu0
  %v3781 = vpop.f32.mrb[0].mxu0
  %v3782 = vadd.f32 0.0, %v3781
  %v3783 = vpop.f32.mrb[0].mxu0
  %3784 = vmatprep.mubr.bf16.mxu0 0
  %3785 = vmatmul.mubr.bf16.gmra.mrb[0].mxu0 %v3739
  %v3786 = vpop.f32.mrb[0].mxu0
  %v3787 = vadd.f32 0.0, %v3786
  %v3788 = vpop.f32.mrb[0].mxu0
  %v3789 = vpop.f32.mrb[0].mxu0
  %v3790 = vpop.f32.mrb[0].mxu0
  %3791 = vdwg.mxu0
  %3795 = vrot.lane.b32.xlu0 %v3449, 32
  %v3796 = vpop.permute.xlu0 %3795
  %3797 = vrot.lane.b32.xlu0 %v3452, 32
  %v3798 = vpop.permute.xlu0 %3797
  %3799 = vrot.lane.b32.xlu0 %v3457, 32
  %v3800 = vpop.permute.xlu0 %3799
  %3807 = vrot.lane.b32.xlu0 %v3614, 64
  %v3808 = vpop.permute.xlu0 %3807
  %3809 = vrot.lane.b32.xlu0 %v3617, 64
  %v3810 = vpop.permute.xlu0 %3809
  %3811 = vrot.lane.b32.xlu0 %v3622, 64
  %v3812 = vpop.permute.xlu0 %3811
  %3819 = vrot.lane.b32.xlu0 %v3779, 96
  %v3820 = vpop.permute.xlu0 %3819
  %3821 = vrot.lane.b32.xlu0 %v3782, 96
  %v3822 = vpop.permute.xlu0 %3821
  %3823 = vrot.lane.b32.xlu0 %v3787, 96
  %v3824 = vpop.permute.xlu0 %3823
  %v3828 = vsel %vm621, %v3278, %v3796
  %v3829 = vsel %vm621, %v3281, %v3798
  %v3830 = vsel %vm621, %v3286, %v3800
  %v3831 = vsel %vm163, %v3828, %v3808
  %v3832 = vsel %vm163, %v3829, %v3810
  %v3833 = vsel %vm163, %v3830, %v3812
  %v3834 = vsel %vm1321, %v3831, %v3820
  %v3835 = vsel %vm1321, %v3832, %v3822
  %v3836 = vsel %vm1321, %v3833, %v3824
  %v3837 = vpack.c.bf16 %v3065, %v3061
  %v3838 = vpack.c.bf16 %v3071, %v3071
  %v3839 = vpack.c.bf16 %v3067, %v3063
  %v3840 = vpack.c.bf16 %v3073, %v3073
  %v3841 = vpack.c.bf16 %v3123, %v3120
  %v3842 = vpack.c.bf16 %v3128, %v3128
  %v3844 = vshrl.u32 %v3837, 16
  %v3846 = vshll.u32 %v3837, 16
  %v3848 = vrot.slane %v3846, 1
  %v3849 = vor.u32 %v3844, %v3848
  %v3851 = vshll.u32 %v3838, 16
  %v3853 = vrot.slane %v3851, 1
  %v3854 = vsel %vm1331, %v3849, %v3853
  %v3855 = vshrl.u32 %v3838, 16
  %v3858 = vshrl.u32 %v3839, 16
  %v3860 = vshll.u32 %v3839, 16
  %v3862 = vrot.slane %v3860, 1
  %v3863 = vor.u32 %v3858, %v3862
  %v3865 = vshll.u32 %v3840, 16
  %v3867 = vrot.slane %v3865, 1
  %v3868 = vsel %vm1331, %v3863, %v3867
  %v3869 = vshrl.u32 %v3840, 16
  %v3872 = vsel %vm621, %v3854, 0
  %v3875 = vsel %vm621, %v3855, 0
  %v3878 = vsel %vm621, %v3868, 0
  %v3881 = vsel %vm621, %v3869, 0
  %3883 = vmatprep.subr.bf16.mxu0 0
  %3884 = vmatpush1.bf16.xpose.msra.mxu0 %v3878
  %3885 = vmatprep.subr.bf16.mxu0 0
  %3886 = vmatpush1.bf16.xpose.msra.mxu0 %v3881
  %3887 = vmatprep.subr.bf16.mxu0 0
  %3888 = vmatpush1.bf16.xpose.msra.mxu0 0
  %3889 = vmatprep.subr.bf16.mxu0 0
  %3890 = vmatpush1.bf16.xpose.msra.mxu0 0
  %3891 = vmatprep.subr.bf16.mxu0 0
  %3892 = vmatpush1.bf16.xpose.msra.mxu0 0
  %3893 = vmatprep.subr.bf16.mxu0 0
  %3894 = vmatpush1.bf16.xpose.msra.mxu0 0
  %3895 = vmatprep.subr.bf16.mxu0 0
  %3896 = vmatpush1.bf16.xpose.msra.mxu0 0
  %3897 = vmatprep.subr.bf16.mxu0 0
  %3898 = vmatpush1.bf16.xpose.msra.mxu0 0
  %3899 = vmatprep.subr.bf16.mxu0 0
  %3900 = vmatpush1.bf16.xpose.msra.mxu0 0
  %3901 = vmatprep.subr.bf16.mxu0 0
  %3902 = vmatpush1.bf16.xpose.msra.mxu0 0
  %3903 = vmatprep.subr.bf16.mxu0 0
  %3904 = vmatpush1.bf16.xpose.msra.mxu0 0
  %3905 = vmatprep.subr.bf16.mxu0 0
  %3906 = vmatpush1.bf16.xpose.msra.mxu0 0
  %3907 = vmatprep.subr.bf16.mxu0 0
  %3908 = vmatpush1.bf16.xpose.msra.mxu0 0
  %3909 = vmatprep.subr.bf16.mxu0 0
  %3910 = vmatpush1.bf16.xpose.msra.mxu0 0
  %3911 = vmatprep.subr.bf16.mxu0 0
  %3912 = vmatpush1.bf16.xpose.msra.mxu0 0
  %3913 = vmatprep.subr.bf16.mxu0 0
  %3914 = vmatpush1.bf16.xpose.msra.mxu0 0
  %3915 = vmatprep.mubr.bf16.mxu0 0
  %3916 = vmatmul.mubr.bf16.gmra.mrb[0].mxu0 %v3872
  %v3917 = vpop.f32.mrb[0].mxu0
  %v3918 = vadd.f32 0.0, %v3917
  %v3919 = vpop.f32.mrb[0].mxu0
  %v3920 = vpop.f32.mrb[0].mxu0
  %v3921 = vadd.f32 0.0, %v3920
  %v3922 = vpop.f32.mrb[0].mxu0
  %3923 = vmatprep.mubr.bf16.mxu0 0
  %3924 = vmatmul.mubr.bf16.gmra.mrb[0].mxu0 %v3875
  %v3925 = vpop.f32.mrb[0].mxu0
  %v3926 = vadd.f32 0.0, %v3925
  %v3927 = vpop.f32.mrb[0].mxu0
  %v3928 = vpop.f32.mrb[0].mxu0
  %v3929 = vpop.f32.mrb[0].mxu0
  %3930 = vdwg.mxu0
  %v3931 = vsel %vm682, %v3918, -inf
  %3932 = vmax.xlane.f32.xlu0 %v3931
  %v3933 = vpop.xlane.xlu0 %3932
  %v3934 = vsel %vm682, %v3921, -inf
  %3935 = vmax.xlane.f32.xlu0 %v3934
  %v3936 = vpop.xlane.xlu0 %3935
  %v3937 = vsel %vm689, %v3926, -inf
  %3938 = vmax.xlane.f32.xlu0 %v3937
  %v3939 = vpop.xlane.xlu0 %3938
  %v3940 = vsub.f32 %v3918, %v3933
  %v3941 = vsub.f32 %v3921, %v3936
  %v3942 = vsub.f32 %v3926, %v3939
  %v3943 = vmul.f32 %v3940, 1.442695
  %v3944 = vpow.pop %v3943
  %v3945 = vmul.f32 %v3941, 1.442695
  %v3946 = vpow.pop %v3945
  %v3947 = vmul.f32 %v3942, 1.442695
  %v3948 = vpow.pop %v3947
  %v3949 = vsel %vm682, %v3944, 0.0
  %3950 = vadd.xlane.f32.xlu0 %v3949
  %v3951 = vpop.xlane.xlu0 %3950
  %v3952 = vsel %vm682, %v3946, 0.0
  %3953 = vadd.xlane.f32.xlu0 %v3952
  %v3954 = vpop.xlane.xlu0 %3953
  %v3955 = vsel %vm689, %v3948, 0.0
  %3956 = vadd.xlane.f32.xlu0 %v3955
  %v3957 = vpop.xlane.xlu0 %3956
  %v3958 = vrcp.pop %v3951
  %v3959 = vrcp.pop %v3954
  %v3960 = vrcp.pop %v3957
  %v3961 = vmul.f32 %v3944, %v3958
  %v3962 = vmul.f32 %v3946, %v3959
  %v3963 = vmul.f32 %v3948, %v3960
  %v3964 = vpack.c.bf16 %v3962, %v3961
  %v3965 = vpack.c.bf16 %v3963, %v3963
  %v3967 = vshrl.u32 %v3841, 16
  %v3969 = vshll.u32 %v3841, 16
  %v3971 = vrot.slane %v3969, 1
  %v3972 = vor.u32 %v3967, %v3971
  %v3974 = vshll.u32 %v3842, 16
  %v3976 = vrot.slane %v3974, 1
  %v3977 = vsel %vm1331, %v3972, %v3976
  %v3978 = vshrl.u32 %v3842, 16
  %v3982 = vsel %vm682, %v3964, 0
  %v3985 = vsel %vm682, %v3965, 0
  %v3988 = vand.u32 %v3978, %v726
  %3990 = vmatprep.subr.bf16.mxu0 0
  %3991 = vmatpush1.bf16.msra.mxu0 %v3977
  %3992 = vmatprep.subr.bf16.mxu0 0
  %3993 = vmatpush1.bf16.msra.mxu0 %v3988
  %3994 = vmatprep.subr.bf16.mxu0 0
  %3995 = vmatpush1.bf16.msra.mxu0 0
  %3996 = vmatprep.subr.bf16.mxu0 0
  %3997 = vmatpush1.bf16.msra.mxu0 0
  %3998 = vmatprep.subr.bf16.mxu0 0
  %3999 = vmatpush1.bf16.msra.mxu0 0
  %4000 = vmatprep.subr.bf16.mxu0 0
  %4001 = vmatpush1.bf16.msra.mxu0 0
  %4002 = vmatprep.subr.bf16.mxu0 0
  %4003 = vmatpush1.bf16.msra.mxu0 0
  %4004 = vmatprep.subr.bf16.mxu0 0
  %4005 = vmatpush1.bf16.msra.mxu0 0
  %4006 = vmatprep.subr.bf16.mxu0 0
  %4007 = vmatpush1.bf16.msra.mxu0 0
  %4008 = vmatprep.subr.bf16.mxu0 0
  %4009 = vmatpush1.bf16.msra.mxu0 0
  %4010 = vmatprep.subr.bf16.mxu0 0
  %4011 = vmatpush1.bf16.msra.mxu0 0
  %4012 = vmatprep.subr.bf16.mxu0 0
  %4013 = vmatpush1.bf16.msra.mxu0 0
  %4014 = vmatprep.subr.bf16.mxu0 0
  %4015 = vmatpush1.bf16.msra.mxu0 0
  %4016 = vmatprep.subr.bf16.mxu0 0
  %4017 = vmatpush1.bf16.msra.mxu0 0
  %4018 = vmatprep.subr.bf16.mxu0 0
  %4019 = vmatpush1.bf16.msra.mxu0 0
  %4020 = vmatprep.subr.bf16.mxu0 0
  %4021 = vmatpush1.bf16.msra.mxu0 0
  %4022 = vmatprep.mubr.bf16.mxu0 0
  %4023 = vmatmul.mubr.bf16.gmra.mrb[0].mxu0 %v3982
  %v4024 = vpop.f32.mrb[0].mxu0
  %v4025 = vadd.f32 0.0, %v4024
  %v4026 = vpop.f32.mrb[0].mxu0
  %v4027 = vpop.f32.mrb[0].mxu0
  %v4028 = vadd.f32 0.0, %v4027
  %v4029 = vpop.f32.mrb[0].mxu0
  %4030 = vmatprep.mubr.bf16.mxu0 0
  %4031 = vmatmul.mubr.bf16.gmra.mrb[0].mxu0 %v3985
  %v4032 = vpop.f32.mrb[0].mxu0
  %v4033 = vadd.f32 0.0, %v4032
  %v4034 = vpop.f32.mrb[0].mxu0
  %v4035 = vpop.f32.mrb[0].mxu0
  %v4036 = vpop.f32.mrb[0].mxu0
  %4037 = vdwg.mxu0
  %4038 = vrot.lane.b32.xlu0 %v3854, 96
  %v4039 = vpop.permute.xlu0 %4038
  %4040 = vrot.lane.b32.xlu0 %v3855, 96
  %v4041 = vpop.permute.xlu0 %4040
  %4042 = vrot.lane.b32.xlu0 %v3868, 96
  %v4043 = vpop.permute.xlu0 %4042
  %4044 = vrot.lane.b32.xlu0 %v3869, 96
  %v4045 = vpop.permute.xlu0 %4044
  %v4047 = vsel %vm621, %v4039, 0
  %v4050 = vsel %vm621, %v4041, 0
  %v4053 = vsel %vm621, %v4043, 0
  %v4056 = vsel %vm621, %v4045, 0
  %4058 = vmatprep.subr.bf16.mxu0 0
  %4059 = vmatpush1.bf16.xpose.msra.mxu0 %v4053
  %4060 = vmatprep.subr.bf16.mxu0 0
  %4061 = vmatpush1.bf16.xpose.msra.mxu0 %v4056
  %4062 = vmatprep.subr.bf16.mxu0 0
  %4063 = vmatpush1.bf16.xpose.msra.mxu0 0
  %4064 = vmatprep.subr.bf16.mxu0 0
  %4065 = vmatpush1.bf16.xpose.msra.mxu0 0
  %4066 = vmatprep.subr.bf16.mxu0 0
  %4067 = vmatpush1.bf16.xpose.msra.mxu0 0
  %4068 = vmatprep.subr.bf16.mxu0 0
  %4069 = vmatpush1.bf16.xpose.msra.mxu0 0
  %4070 = vmatprep.subr.bf16.mxu0 0
  %4071 = vmatpush1.bf16.xpose.msra.mxu0 0
  %4072 = vmatprep.subr.bf16.mxu0 0
  %4073 = vmatpush1.bf16.xpose.msra.mxu0 0
  %4074 = vmatprep.subr.bf16.mxu0 0
  %4075 = vmatpush1.bf16.xpose.msra.mxu0 0
  %4076 = vmatprep.subr.bf16.mxu0 0
  %4077 = vmatpush1.bf16.xpose.msra.mxu0 0
  %4078 = vmatprep.subr.bf16.mxu0 0
  %4079 = vmatpush1.bf16.xpose.msra.mxu0 0
  %4080 = vmatprep.subr.bf16.mxu0 0
  %4081 = vmatpush1.bf16.xpose.msra.mxu0 0
  %4082 = vmatprep.subr.bf16.mxu0 0
  %4083 = vmatpush1.bf16.xpose.msra.mxu0 0
  %4084 = vmatprep.subr.bf16.mxu0 0
  %4085 = vmatpush1.bf16.xpose.msra.mxu0 0
  %4086 = vmatprep.subr.bf16.mxu0 0
  %4087 = vmatpush1.bf16.xpose.msra.mxu0 0
  %4088 = vmatprep.subr.bf16.mxu0 0
  %4089 = vmatpush1.bf16.xpose.msra.mxu0 0
  %4090 = vmatprep.mubr.bf16.mxu0 0
  %4091 = vmatmul.mubr.bf16.gmra.mrb[0].mxu0 %v4047
  %v4092 = vpop.f32.mrb[0].mxu0
  %v4093 = vadd.f32 0.0, %v4092
  %v4094 = vpop.f32.mrb[0].mxu0
  %v4095 = vpop.f32.mrb[0].mxu0
  %v4096 = vadd.f32 0.0, %v4095
  %v4097 = vpop.f32.mrb[0].mxu0
  %4098 = vmatprep.mubr.bf16.mxu0 0
  %4099 = vmatmul.mubr.bf16.gmra.mrb[0].mxu0 %v4050
  %v4100 = vpop.f32.mrb[0].mxu0
  %v4101 = vadd.f32 0.0, %v4100
  %v4102 = vpop.f32.mrb[0].mxu0
  %v4103 = vpop.f32.mrb[0].mxu0
  %v4104 = vpop.f32.mrb[0].mxu0
  %4105 = vdwg.mxu0
  %v4106 = vsel %vm682, %v4093, -inf
  %4107 = vmax.xlane.f32.xlu0 %v4106
  %v4108 = vpop.xlane.xlu0 %4107
  %v4109 = vsel %vm682, %v4096, -inf
  %4110 = vmax.xlane.f32.xlu0 %v4109
  %v4111 = vpop.xlane.xlu0 %4110
  %v4112 = vsel %vm689, %v4101, -inf
  %4113 = vmax.xlane.f32.xlu0 %v4112
  %v4114 = vpop.xlane.xlu0 %4113
  %v4115 = vsub.f32 %v4093, %v4108
  %v4116 = vsub.f32 %v4096, %v4111
  %v4117 = vsub.f32 %v4101, %v4114
  %v4118 = vmul.f32 %v4115, 1.442695
  %v4119 = vpow.pop %v4118
  %v4120 = vmul.f32 %v4116, 1.442695
  %v4121 = vpow.pop %v4120
  %v4122 = vmul.f32 %v4117, 1.442695
  %v4123 = vpow.pop %v4122
  %v4124 = vsel %vm682, %v4119, 0.0
  %4125 = vadd.xlane.f32.xlu0 %v4124
  %v4126 = vpop.xlane.xlu0 %4125
  %v4127 = vsel %vm682, %v4121, 0.0
  %4128 = vadd.xlane.f32.xlu0 %v4127
  %v4129 = vpop.xlane.xlu0 %4128
  %v4130 = vsel %vm689, %v4123, 0.0
  %4131 = vadd.xlane.f32.xlu0 %v4130
  %v4132 = vpop.xlane.xlu0 %4131
  %v4133 = vrcp.pop %v4126
  %v4134 = vrcp.pop %v4129
  %v4135 = vrcp.pop %v4132
  %v4136 = vmul.f32 %v4119, %v4133
  %v4137 = vmul.f32 %v4121, %v4134
  %v4138 = vmul.f32 %v4123, %v4135
  %v4139 = vpack.c.bf16 %v4137, %v4136
  %v4140 = vpack.c.bf16 %v4138, %v4138
  %4141 = vrot.lane.b32.xlu0 %v3977, 96
  %v4142 = vpop.permute.xlu0 %4141
  %4143 = vrot.lane.b32.xlu0 %v3978, 96
  %v4144 = vpop.permute.xlu0 %4143
  %v4147 = vsel %vm682, %v4139, 0
  %v4150 = vsel %vm682, %v4140, 0
  %v4153 = vand.u32 %v4144, %v726
  %4155 = vmatprep.subr.bf16.mxu0 0
  %4156 = vmatpush1.bf16.msra.mxu0 %v4142
  %4157 = vmatprep.subr.bf16.mxu0 0
  %4158 = vmatpush1.bf16.msra.mxu0 %v4153
  %4159 = vmatprep.subr.bf16.mxu0 0
  %4160 = vmatpush1.bf16.msra.mxu0 0
  %4161 = vmatprep.subr.bf16.mxu0 0
  %4162 = vmatpush1.bf16.msra.mxu0 0
  %4163 = vmatprep.subr.bf16.mxu0 0
  %4164 = vmatpush1.bf16.msra.mxu0 0
  %4165 = vmatprep.subr.bf16.mxu0 0
  %4166 = vmatpush1.bf16.msra.mxu0 0
  %4167 = vmatprep.subr.bf16.mxu0 0
  %4168 = vmatpush1.bf16.msra.mxu0 0
  %4169 = vmatprep.subr.bf16.mxu0 0
  %4170 = vmatpush1.bf16.msra.mxu0 0
  %4171 = vmatprep.subr.bf16.mxu0 0
  %4172 = vmatpush1.bf16.msra.mxu0 0
  %4173 = vmatprep.subr.bf16.mxu0 0
  %4174 = vmatpush1.bf16.msra.mxu0 0
  %4175 = vmatprep.subr.bf16.mxu0 0
  %4176 = vmatpush1.bf16.msra.mxu0 0
  %4177 = vmatprep.subr.bf16.mxu0 0
  %4178 = vmatpush1.bf16.msra.mxu0 0
  %4179 = vmatprep.subr.bf16.mxu0 0
  %4180 = vmatpush1.bf16.msra.mxu0 0
  %4181 = vmatprep.subr.bf16.mxu0 0
  %4182 = vmatpush1.bf16.msra.mxu0 0
  %4183 = vmatprep.subr.bf16.mxu0 0
  %4184 = vmatpush1.bf16.msra.mxu0 0
  %4185 = vmatprep.subr.bf16.mxu0 0
  %4186 = vmatpush1.bf16.msra.mxu0 0
  %4187 = vmatprep.mubr.bf16.mxu0 0
  %4188 = vmatmul.mubr.bf16.gmra.mrb[0].mxu0 %v4147
  %v4189 = vpop.f32.mrb[0].mxu0
  %v4190 = vadd.f32 0.0, %v4189
  %v4191 = vpop.f32.mrb[0].mxu0
  %v4192 = vpop.f32.mrb[0].mxu0
  %v4193 = vadd.f32 0.0, %v4192
  %v4194 = vpop.f32.mrb[0].mxu0
  %4195 = vmatprep.mubr.bf16.mxu0 0
  %4196 = vmatmul.mubr.bf16.gmra.mrb[0].mxu0 %v4150
  %v4197 = vpop.f32.mrb[0].mxu0
  %v4198 = vadd.f32 0.0, %v4197
  %v4199 = vpop.f32.mrb[0].mxu0
  %v4200 = vpop.f32.mrb[0].mxu0
  %v4201 = vpop.f32.mrb[0].mxu0
  %4202 = vdwg.mxu0
  %4203 = vrot.lane.b32.xlu0 %v3854, 64
  %v4204 = vpop.permute.xlu0 %4203
  %4205 = vrot.lane.b32.xlu0 %v3855, 64
  %v4206 = vpop.permute.xlu0 %4205
  %4207 = vrot.lane.b32.xlu0 %v3868, 64
  %v4208 = vpop.permute.xlu0 %4207
  %4209 = vrot.lane.b32.xlu0 %v3869, 64
  %v4210 = vpop.permute.xlu0 %4209
  %v4212 = vsel %vm621, %v4204, 0
  %v4215 = vsel %vm621, %v4206, 0
  %v4218 = vsel %vm621, %v4208, 0
  %v4221 = vsel %vm621, %v4210, 0
  %4223 = vmatprep.subr.bf16.mxu0 0
  %4224 = vmatpush1.bf16.xpose.msra.mxu0 %v4218
  %4225 = vmatprep.subr.bf16.mxu0 0
  %4226 = vmatpush1.bf16.xpose.msra.mxu0 %v4221
  %4227 = vmatprep.subr.bf16.mxu0 0
  %4228 = vmatpush1.bf16.xpose.msra.mxu0 0
  %4229 = vmatprep.subr.bf16.mxu0 0
  %4230 = vmatpush1.bf16.xpose.msra.mxu0 0
  %4231 = vmatprep.subr.bf16.mxu0 0
  %4232 = vmatpush1.bf16.xpose.msra.mxu0 0
  %4233 = vmatprep.subr.bf16.mxu0 0
  %4234 = vmatpush1.bf16.xpose.msra.mxu0 0
  %4235 = vmatprep.subr.bf16.mxu0 0
  %4236 = vmatpush1.bf16.xpose.msra.mxu0 0
  %4237 = vmatprep.subr.bf16.mxu0 0
  %4238 = vmatpush1.bf16.xpose.msra.mxu0 0
  %4239 = vmatprep.subr.bf16.mxu0 0
  %4240 = vmatpush1.bf16.xpose.msra.mxu0 0
  %4241 = vmatprep.subr.bf16.mxu0 0
  %4242 = vmatpush1.bf16.xpose.msra.mxu0 0
  %4243 = vmatprep.subr.bf16.mxu0 0
  %4244 = vmatpush1.bf16.xpose.msra.mxu0 0
  %4245 = vmatprep.subr.bf16.mxu0 0
  %4246 = vmatpush1.bf16.xpose.msra.mxu0 0
  %4247 = vmatprep.subr.bf16.mxu0 0
  %4248 = vmatpush1.bf16.xpose.msra.mxu0 0
  %4249 = vmatprep.subr.bf16.mxu0 0
  %4250 = vmatpush1.bf16.xpose.msra.mxu0 0
  %4251 = vmatprep.subr.bf16.mxu0 0
  %4252 = vmatpush1.bf16.xpose.msra.mxu0 0
  %4253 = vmatprep.subr.bf16.mxu0 0
  %4254 = vmatpush1.bf16.xpose.msra.mxu0 0
  %4255 = vmatprep.mubr.bf16.mxu0 0
  %4256 = vmatmul.mubr.bf16.gmra.mrb[0].mxu0 %v4212
  %v4257 = vpop.f32.mrb[0].mxu0
  %v4258 = vadd.f32 0.0, %v4257
  %v4259 = vpop.f32.mrb[0].mxu0
  %v4260 = vpop.f32.mrb[0].mxu0
  %v4261 = vadd.f32 0.0, %v4260
  %v4262 = vpop.f32.mrb[0].mxu0
  %4263 = vmatprep.mubr.bf16.mxu0 0
  %4264 = vmatmul.mubr.bf16.gmra.mrb[0].mxu0 %v4215
  %v4265 = vpop.f32.mrb[0].mxu0
  %v4266 = vadd.f32 0.0, %v4265
  %v4267 = vpop.f32.mrb[0].mxu0
  %v4268 = vpop.f32.mrb[0].mxu0
  %v4269 = vpop.f32.mrb[0].mxu0
  %4270 = vdwg.mxu0
  %v4271 = vsel %vm682, %v4258, -inf
  %4272 = vmax.xlane.f32.xlu0 %v4271
  %v4273 = vpop.xlane.xlu0 %4272
  %v4274 = vsel %vm682, %v4261, -inf
  %4275 = vmax.xlane.f32.xlu0 %v4274
  %v4276 = vpop.xlane.xlu0 %4275
  %v4277 = vsel %vm689, %v4266, -inf
  %4278 = vmax.xlane.f32.xlu0 %v4277
  %v4279 = vpop.xlane.xlu0 %4278
  %v4280 = vsub.f32 %v4258, %v4273
  %v4281 = vsub.f32 %v4261, %v4276
  %v4282 = vsub.f32 %v4266, %v4279
  %v4283 = vmul.f32 %v4280, 1.442695
  %v4284 = vpow.pop %v4283
  %v4285 = vmul.f32 %v4281, 1.442695
  %v4286 = vpow.pop %v4285
  %v4287 = vmul.f32 %v4282, 1.442695
  %v4288 = vpow.pop %v4287
  %v4289 = vsel %vm682, %v4284, 0.0
  %4290 = vadd.xlane.f32.xlu0 %v4289
  %v4291 = vpop.xlane.xlu0 %4290
  %v4292 = vsel %vm682, %v4286, 0.0
  %4293 = vadd.xlane.f32.xlu0 %v4292
  %v4294 = vpop.xlane.xlu0 %4293
  %v4295 = vsel %vm689, %v4288, 0.0
  %4296 = vadd.xlane.f32.xlu0 %v4295
  %v4297 = vpop.xlane.xlu0 %4296
  %v4298 = vrcp.pop %v4291
  %v4299 = vrcp.pop %v4294
  %v4300 = vrcp.pop %v4297
  %v4301 = vmul.f32 %v4284, %v4298
  %v4302 = vmul.f32 %v4286, %v4299
  %v4303 = vmul.f32 %v4288, %v4300
  %v4304 = vpack.c.bf16 %v4302, %v4301
  %v4305 = vpack.c.bf16 %v4303, %v4303
  %4306 = vrot.lane.b32.xlu0 %v3977, 64
  %v4307 = vpop.permute.xlu0 %4306
  %4308 = vrot.lane.b32.xlu0 %v3978, 64
  %v4309 = vpop.permute.xlu0 %4308
  %v4312 = vsel %vm682, %v4304, 0
  %v4315 = vsel %vm682, %v4305, 0
  %v4318 = vand.u32 %v4309, %v726
  %4320 = vmatprep.subr.bf16.mxu0 0
  %4321 = vmatpush1.bf16.msra.mxu0 %v4307
  %4322 = vmatprep.subr.bf16.mxu0 0
  %4323 = vmatpush1.bf16.msra.mxu0 %v4318
  %4324 = vmatprep.subr.bf16.mxu0 0
  %4325 = vmatpush1.bf16.msra.mxu0 0
  %4326 = vmatprep.subr.bf16.mxu0 0
  %4327 = vmatpush1.bf16.msra.mxu0 0
  %4328 = vmatprep.subr.bf16.mxu0 0
  %4329 = vmatpush1.bf16.msra.mxu0 0
  %4330 = vmatprep.subr.bf16.mxu0 0
  %4331 = vmatpush1.bf16.msra.mxu0 0
  %4332 = vmatprep.subr.bf16.mxu0 0
  %4333 = vmatpush1.bf16.msra.mxu0 0
  %4334 = vmatprep.subr.bf16.mxu0 0
  %4335 = vmatpush1.bf16.msra.mxu0 0
  %4336 = vmatprep.subr.bf16.mxu0 0
  %4337 = vmatpush1.bf16.msra.mxu0 0
  %4338 = vmatprep.subr.bf16.mxu0 0
  %4339 = vmatpush1.bf16.msra.mxu0 0
  %4340 = vmatprep.subr.bf16.mxu0 0
  %4341 = vmatpush1.bf16.msra.mxu0 0
  %4342 = vmatprep.subr.bf16.mxu0 0
  %4343 = vmatpush1.bf16.msra.mxu0 0
  %4344 = vmatprep.subr.bf16.mxu0 0
  %4345 = vmatpush1.bf16.msra.mxu0 0
  %4346 = vmatprep.subr.bf16.mxu0 0
  %4347 = vmatpush1.bf16.msra.mxu0 0
  %4348 = vmatprep.subr.bf16.mxu0 0
  %4349 = vmatpush1.bf16.msra.mxu0 0
  %4350 = vmatprep.subr.bf16.mxu0 0
  %4351 = vmatpush1.bf16.msra.mxu0 0
  %4352 = vmatprep.mubr.bf16.mxu0 0
  %4353 = vmatmul.mubr.bf16.gmra.mrb[0].mxu0 %v4312
  %v4354 = vpop.f32.mrb[0].mxu0
  %v4355 = vadd.f32 0.0, %v4354
  %v4356 = vpop.f32.mrb[0].mxu0
  %v4357 = vpop.f32.mrb[0].mxu0
  %v4358 = vadd.f32 0.0, %v4357
  %v4359 = vpop.f32.mrb[0].mxu0
  %4360 = vmatprep.mubr.bf16.mxu0 0
  %4361 = vmatmul.mubr.bf16.gmra.mrb[0].mxu0 %v4315
  %v4362 = vpop.f32.mrb[0].mxu0
  %v4363 = vadd.f32 0.0, %v4362
  %v4364 = vpop.f32.mrb[0].mxu0
  %v4365 = vpop.f32.mrb[0].mxu0
  %v4366 = vpop.f32.mrb[0].mxu0
  %4367 = vdwg.mxu0
  %4368 = vrot.lane.b32.xlu0 %v3854, 32
  %v4369 = vpop.permute.xlu0 %4368
  %4370 = vrot.lane.b32.xlu0 %v3855, 32
  %v4371 = vpop.permute.xlu0 %4370
  %4372 = vrot.lane.b32.xlu0 %v3868, 32
  %v4373 = vpop.permute.xlu0 %4372
  %4374 = vrot.lane.b32.xlu0 %v3869, 32
  %v4375 = vpop.permute.xlu0 %4374
  %v4377 = vsel %vm621, %v4369, 0
  %v4380 = vsel %vm621, %v4371, 0
  %v4383 = vsel %vm621, %v4373, 0
  %v4386 = vsel %vm621, %v4375, 0
  %4388 = vmatprep.subr.bf16.mxu0 0
  %4389 = vmatpush1.bf16.xpose.msra.mxu0 %v4383
  %4390 = vmatprep.subr.bf16.mxu0 0
  %4391 = vmatpush1.bf16.xpose.msra.mxu0 %v4386
  %4392 = vmatprep.subr.bf16.mxu0 0
  %4393 = vmatpush1.bf16.xpose.msra.mxu0 0
  %4394 = vmatprep.subr.bf16.mxu0 0
  %4395 = vmatpush1.bf16.xpose.msra.mxu0 0
  %4396 = vmatprep.subr.bf16.mxu0 0
  %4397 = vmatpush1.bf16.xpose.msra.mxu0 0
  %4398 = vmatprep.subr.bf16.mxu0 0
  %4399 = vmatpush1.bf16.xpose.msra.mxu0 0
  %4400 = vmatprep.subr.bf16.mxu0 0
  %4401 = vmatpush1.bf16.xpose.msra.mxu0 0
  %4402 = vmatprep.subr.bf16.mxu0 0
  %4403 = vmatpush1.bf16.xpose.msra.mxu0 0
  %4404 = vmatprep.subr.bf16.mxu0 0
  %4405 = vmatpush1.bf16.xpose.msra.mxu0 0
  %4406 = vmatprep.subr.bf16.mxu0 0
  %4407 = vmatpush1.bf16.xpose.msra.mxu0 0
  %4408 = vmatprep.subr.bf16.mxu0 0
  %4409 = vmatpush1.bf16.xpose.msra.mxu0 0
  %4410 = vmatprep.subr.bf16.mxu0 0
  %4411 = vmatpush1.bf16.xpose.msra.mxu0 0
  %4412 = vmatprep.subr.bf16.mxu0 0
  %4413 = vmatpush1.bf16.xpose.msra.mxu0 0
  %4414 = vmatprep.subr.bf16.mxu0 0
  %4415 = vmatpush1.bf16.xpose.msra.mxu0 0
  %4416 = vmatprep.subr.bf16.mxu0 0
  %4417 = vmatpush1.bf16.xpose.msra.mxu0 0
  %4418 = vmatprep.subr.bf16.mxu0 0
  %4419 = vmatpush1.bf16.xpose.msra.mxu0 0
  %4420 = vmatprep.mubr.bf16.mxu0 0
  %4421 = vmatmul.mubr.bf16.gmra.mrb[0].mxu0 %v4377
  %v4422 = vpop.f32.mrb[0].mxu0
  %v4423 = vadd.f32 0.0, %v4422
  %v4424 = vpop.f32.mrb[0].mxu0
  %v4425 = vpop.f32.mrb[0].mxu0
  %v4426 = vadd.f32 0.0, %v4425
  %v4427 = vpop.f32.mrb[0].mxu0
  %4428 = vmatprep.mubr.bf16.mxu0 0
  %4429 = vmatmul.mubr.bf16.gmra.mrb[0].mxu0 %v4380
  %v4430 = vpop.f32.mrb[0].mxu0
  %v4431 = vadd.f32 0.0, %v4430
  %v4432 = vpop.f32.mrb[0].mxu0
  %v4433 = vpop.f32.mrb[0].mxu0
  %v4434 = vpop.f32.mrb[0].mxu0
  %4435 = vdwg.mxu0
  %v4436 = vsel %vm682, %v4423, -inf
  %4437 = vmax.xlane.f32.xlu0 %v4436
  %v4438 = vpop.xlane.xlu0 %4437
  %v4439 = vsel %vm682, %v4426, -inf
  %4440 = vmax.xlane.f32.xlu0 %v4439
  %v4441 = vpop.xlane.xlu0 %4440
  %v4442 = vsel %vm689, %v4431, -inf
  %4443 = vmax.xlane.f32.xlu0 %v4442
  %v4444 = vpop.xlane.xlu0 %4443
  %v4445 = vsub.f32 %v4423, %v4438
  %v4446 = vsub.f32 %v4426, %v4441
  %v4447 = vsub.f32 %v4431, %v4444
  %v4448 = vmul.f32 %v4445, 1.442695
  %v4449 = vpow.pop %v4448
  %v4450 = vmul.f32 %v4446, 1.442695
  %v4451 = vpow.pop %v4450
  %v4452 = vmul.f32 %v4447, 1.442695
  %v4453 = vpow.pop %v4452
  %v4454 = vsel %vm682, %v4449, 0.0
  %4455 = vadd.xlane.f32.xlu0 %v4454
  %v4456 = vpop.xlane.xlu0 %4455
  %v4457 = vsel %vm682, %v4451, 0.0
  %4458 = vadd.xlane.f32.xlu0 %v4457
  %v4459 = vpop.xlane.xlu0 %4458
  %v4460 = vsel %vm689, %v4453, 0.0
  %4461 = vadd.xlane.f32.xlu0 %v4460
  %v4462 = vpop.xlane.xlu0 %4461
  %v4463 = vrcp.pop %v4456
  %v4464 = vrcp.pop %v4459
  %v4465 = vrcp.pop %v4462
  %v4466 = vmul.f32 %v4449, %v4463
  %v4467 = vmul.f32 %v4451, %v4464
  %v4468 = vmul.f32 %v4453, %v4465
  %v4469 = vpack.c.bf16 %v4467, %v4466
  %v4470 = vpack.c.bf16 %v4468, %v4468
  %4471 = vrot.lane.b32.xlu0 %v3977, 32
  %v4472 = vpop.permute.xlu0 %4471
  %4473 = vrot.lane.b32.xlu0 %v3978, 32
  %v4474 = vpop.permute.xlu0 %4473
  %v4477 = vsel %vm682, %v4469, 0
  %v4480 = vsel %vm682, %v4470, 0
  %v4483 = vand.u32 %v4474, %v726
  %4485 = vmatprep.subr.bf16.mxu0 0
  %4486 = vmatpush1.bf16.msra.mxu0 %v4472
  %4487 = vmatprep.subr.bf16.mxu0 0
  %4488 = vmatpush1.bf16.msra.mxu0 %v4483
  %4489 = vmatprep.subr.bf16.mxu0 0
  %4490 = vmatpush1.bf16.msra.mxu0 0
  %4491 = vmatprep.subr.bf16.mxu0 0
  %4492 = vmatpush1.bf16.msra.mxu0 0
  %4493 = vmatprep.subr.bf16.mxu0 0
  %4494 = vmatpush1.bf16.msra.mxu0 0
  %4495 = vmatprep.subr.bf16.mxu0 0
  %4496 = vmatpush1.bf16.msra.mxu0 0
  %4497 = vmatprep.subr.bf16.mxu0 0
  %4498 = vmatpush1.bf16.msra.mxu0 0
  %4499 = vmatprep.subr.bf16.mxu0 0
  %4500 = vmatpush1.bf16.msra.mxu0 0
  %4501 = vmatprep.subr.bf16.mxu0 0
  %4502 = vmatpush1.bf16.msra.mxu0 0
  %4503 = vmatprep.subr.bf16.mxu0 0
  %4504 = vmatpush1.bf16.msra.mxu0 0
  %4505 = vmatprep.subr.bf16.mxu0 0
  %4506 = vmatpush1.bf16.msra.mxu0 0
  %4507 = vmatprep.subr.bf16.mxu0 0
  %4508 = vmatpush1.bf16.msra.mxu0 0
  %4509 = vmatprep.subr.bf16.mxu0 0
  %4510 = vmatpush1.bf16.msra.mxu0 0
  %4511 = vmatprep.subr.bf16.mxu0 0
  %4512 = vmatpush1.bf16.msra.mxu0 0
  %4513 = vmatprep.subr.bf16.mxu0 0
  %4514 = vmatpush1.bf16.msra.mxu0 0
  %4515 = vmatprep.subr.bf16.mxu0 0
  %4516 = vmatpush1.bf16.msra.mxu0 0
  %4517 = vmatprep.mubr.bf16.mxu0 0
  %4518 = vmatmul.mubr.bf16.gmra.mrb[0].mxu0 %v4477
  %v4519 = vpop.f32.mrb[0].mxu0
  %v4520 = vadd.f32 0.0, %v4519
  %v4521 = vpop.f32.mrb[0].mxu0
  %v4522 = vpop.f32.mrb[0].mxu0
  %v4523 = vadd.f32 0.0, %v4522
  %v4524 = vpop.f32.mrb[0].mxu0
  %4525 = vmatprep.mubr.bf16.mxu0 0
  %4526 = vmatmul.mubr.bf16.gmra.mrb[0].mxu0 %v4480
  %v4527 = vpop.f32.mrb[0].mxu0
  %v4528 = vadd.f32 0.0, %v4527
  %v4529 = vpop.f32.mrb[0].mxu0
  %v4530 = vpop.f32.mrb[0].mxu0
  %v4531 = vpop.f32.mrb[0].mxu0
  %4532 = vdwg.mxu0
  %4536 = vrot.lane.b32.xlu0 %v4190, 32
  %v4537 = vpop.permute.xlu0 %4536
  %4538 = vrot.lane.b32.xlu0 %v4193, 32
  %v4539 = vpop.permute.xlu0 %4538
  %4540 = vrot.lane.b32.xlu0 %v4198, 32
  %v4541 = vpop.permute.xlu0 %4540
  %4548 = vrot.lane.b32.xlu0 %v4355, 64
  %v4549 = vpop.permute.xlu0 %4548
  %4550 = vrot.lane.b32.xlu0 %v4358, 64
  %v4551 = vpop.permute.xlu0 %4550
  %4552 = vrot.lane.b32.xlu0 %v4363, 64
  %v4553 = vpop.permute.xlu0 %4552
  %4560 = vrot.lane.b32.xlu0 %v4520, 96
  %v4561 = vpop.permute.xlu0 %4560
  %4562 = vrot.lane.b32.xlu0 %v4523, 96
  %v4563 = vpop.permute.xlu0 %4562
  %4564 = vrot.lane.b32.xlu0 %v4528, 96
  %v4565 = vpop.permute.xlu0 %4564
  %v4569 = vsel %vm621, %v4025, %v4537
  %v4570 = vsel %vm621, %v4028, %v4539
  %v4571 = vsel %vm621, %v4033, %v4541
  %v4572 = vsel %vm163, %v4569, %v4549
  %v4573 = vsel %vm163, %v4570, %v4551
  %v4574 = vsel %vm163, %v4571, %v4553
  %v4575 = vsel %vm1321, %v4572, %v4561
  %v4576 = vsel %vm1321, %v4573, %v4563
  %v4577 = vsel %vm1321, %v4574, %v4565
  %v4581 = vrot.slane %v4575, 7
  %v4582 = vrot.slane %v4576, 7
  %v4583 = vsel %vm221, %v4581, %v4582
  %v4584 = vrot.slane %v4577, 7
  %v4585 = vsel %vm221, %v4582, %v4584
  %v4589 = vsel %vm221, %v3836, %v4581
  %v4590 = vpack.c.bf16 %v3835, %v3834
  %v4591 = vpack.c.bf16 %v4583, %v4589
  %v4592 = vpack.c.bf16 %v4585, %v4585
  %s4593 = scalar_lea.vmem %s5, 64
  %v4594 = vld [vmem:[%s4593] sm:$0xf]
  %v4595 = vld [vmem:[%s4593 + $0x4] sm:$0xf]
  %v4596 = vld [vmem:[%s4593 + $0x8] sm:$0xf]
  %v4597 = vld [vmem:[%s4593 + $0xc] sm:$0xf]
  %v4598 = vld [vmem:[%s4593 + $0x10] sm:$0xf]
  %v4599 = vld [vmem:[%s4593 + $0x14] sm:$0xf]
  %v4600 = vld [vmem:[%s4593 + $0x18] sm:$0xf]
  %v4601 = vld [vmem:[%s4593 + $0x1c] sm:$0xf]
  %v4602 = vld [vmem:[%s4593 + $0x20] sm:$0xf]
  %v4603 = vld [vmem:[%s4593 + $0x24] sm:$0xf]
  %v4604 = vld [vmem:[%s4593 + $0x28] sm:$0xf]
  %v4605 = vld [vmem:[%s4593 + $0x2c] sm:$0xf]
  %v4606 = vld [vmem:[%s4593 + $0x30] sm:$0xf]
  %v4607 = vld [vmem:[%s4593 + $0x34] sm:$0xf]
  %v4608 = vld [vmem:[%s4593 + $0x38] sm:$0xf]
  %v4609 = vld [vmem:[%s4593 + $0x3c] sm:$0xf]
  %v4626 = vunpack.c.l.b16 %v4594
  %v4627 = vunpack.c.l.b16 %v4595
  %v4628 = vunpack.c.l.b16 %v4596
  %v4629 = vunpack.c.l.b16 %v4597
  %v4630 = vunpack.c.l.b16 %v4598
  %v4631 = vunpack.c.l.b16 %v4599
  %v4632 = vunpack.c.l.b16 %v4600
  %v4633 = vunpack.c.l.b16 %v4601
  %v4634 = vunpack.c.l.b16 %v4602
  %v4635 = vunpack.c.l.b16 %v4603
  %v4636 = vunpack.c.l.b16 %v4604
  %v4637 = vunpack.c.l.b16 %v4605
  %v4638 = vunpack.c.l.b16 %v4606
  %v4639 = vunpack.c.l.b16 %v4607
  %v4640 = vunpack.c.l.b16 %v4608
  %v4641 = vunpack.c.l.b16 %v4609
  %v4642 = vpack.c.b16 %v4627, %v4626
  %v4643 = vpack.c.b16 %v4629, %v4628
  %v4644 = vpack.c.b16 %v4631, %v4630
  %v4645 = vpack.c.b16 %v4633, %v4632
  %v4646 = vpack.c.b16 %v4635, %v4634
  %v4647 = vpack.c.b16 %v4637, %v4636
  %v4648 = vpack.c.b16 %v4639, %v4638
  %v4649 = vpack.c.b16 %v4641, %v4640
  %4658 = vmatprep.subr.bf16.mxu0 0
  %4659 = vmatpush1.bf16.msra.mxu0 %v4642
  %4660 = vmatprep.subr.bf16.mxu0 0
  %4661 = vmatpush1.bf16.msra.mxu0 %v4643
  %4662 = vmatprep.subr.bf16.mxu0 0
  %4663 = vmatpush1.bf16.msra.mxu0 %v4644
  %4664 = vmatprep.subr.bf16.mxu0 0
  %4665 = vmatpush1.bf16.msra.mxu0 %v4645
  %4666 = vmatprep.subr.bf16.mxu0 0
  %4667 = vmatpush1.bf16.msra.mxu0 %v4646
  %4668 = vmatprep.subr.bf16.mxu0 0
  %4669 = vmatpush1.bf16.msra.mxu0 %v4647
  %4670 = vmatprep.subr.bf16.mxu0 0
  %4671 = vmatpush1.bf16.msra.mxu0 %v4648
  %4672 = vmatprep.subr.bf16.mxu0 0
  %4673 = vmatpush1.bf16.msra.mxu0 %v4649
  %4674 = vmatprep.subr.bf16.mxu0 0
  %4675 = vmatpush1.bf16.msra.mxu0 0
  %4676 = vmatprep.subr.bf16.mxu0 0
  %4677 = vmatpush1.bf16.msra.mxu0 0
  %4678 = vmatprep.subr.bf16.mxu0 0
  %4679 = vmatpush1.bf16.msra.mxu0 0
  %4680 = vmatprep.subr.bf16.mxu0 0
  %4681 = vmatpush1.bf16.msra.mxu0 0
  %4682 = vmatprep.subr.bf16.mxu0 0
  %4683 = vmatpush1.bf16.msra.mxu0 0
  %4684 = vmatprep.subr.bf16.mxu0 0
  %4685 = vmatpush1.bf16.msra.mxu0 0
  %4686 = vmatprep.subr.bf16.mxu0 0
  %4687 = vmatpush1.bf16.msra.mxu0 0
  %4688 = vmatprep.subr.bf16.mxu0 0
  %4689 = vmatpush1.bf16.msra.mxu0 0
  %4690 = vmatprep.mubr.bf16.mxu0 0
  %4691 = vmatmul.mubr.bf16.gmra.mrb[0].mxu0 %v4590
  %v4692 = vpop.f32.mrb[0].mxu0
  %v4693 = vadd.f32 0.0, %v4692
  %v4694 = vpop.f32.mrb[0].mxu0
  %v4695 = vpop.f32.mrb[0].mxu0
  %v4696 = vadd.f32 0.0, %v4695
  %v4697 = vpop.f32.mrb[0].mxu0
  %4698 = vmatprep.mubr.bf16.mxu0 0
  %4699 = vmatmul.mubr.bf16.gmra.mrb[0].mxu0 %v4591
  %v4700 = vpop.f32.mrb[0].mxu0
  %v4701 = vadd.f32 0.0, %v4700
  %v4702 = vpop.f32.mrb[0].mxu0
  %v4703 = vpop.f32.mrb[0].mxu0
  %v4704 = vadd.f32 0.0, %v4703
  %v4705 = vpop.f32.mrb[0].mxu0
  %4706 = vmatprep.mubr.bf16.mxu0 0
  %4707 = vmatmul.mubr.bf16.gmra.mrb[0].mxu0 %v4592
  %v4708 = vpop.f32.mrb[0].mxu0
  %v4709 = vadd.f32 0.0, %v4708
  %v4710 = vpop.f32.mrb[0].mxu0
  %v4711 = vpop.f32.mrb[0].mxu0
  %v4712 = vpop.f32.mrb[0].mxu0
  %4713 = vdwg.mxu0
  %v4714 = vadd.f32 %v2752, %v4693
  %v4715 = vadd.f32 %v2753, %v4696
  %v4716 = vadd.f32 %v2754, %v4701
  %v4717 = vadd.f32 %v2755, %v4704
  %v4718 = vadd.f32 %v2756, %v4709
  %v4719 = vlaneseq
  %v4720 = vshrl.u32 %v4719, 7
  %v4721 = vsub.s32 4, %v4720
  %v4722 = vrot.slane %v2758, %v4721
  %v4723 = vadd.f32 %v4714, %v4722
  %v4724 = vadd.f32 %v4715, %v4722
  %v4725 = vadd.f32 %v4716, %v4722
  %v4726 = vadd.f32 %v4717, %v4722
  %v4727 = vadd.f32 %v4718, %v4722
  %4728 = vadd.xlane.f32.xlu0 %v4723
  %v4729 = vpop.xlane.xlu0 %4728
  %4730 = vadd.xlane.f32.xlu0 %v4724
  %v4731 = vpop.xlane.xlu0 %4730
  %4732 = vadd.xlane.f32.xlu0 %v4725
  %v4733 = vpop.xlane.xlu0 %4732
  %4734 = vadd.xlane.f32.xlu0 %v4726
  %v4735 = vpop.xlane.xlu0 %4734
  %v4736 = vsel %vm249, %v4727, 0.0
  %4737 = vadd.xlane.f32.xlu0 %v4736
  %v4738 = vpop.xlane.xlu0 %4737
  %v4739 = vmul.f32 %v4729, %v253
  %v4740 = vmul.f32 %v4731, %v253
  %v4741 = vmul.f32 %v4733, %v253
  %v4742 = vmul.f32 %v4735, %v253
  %v4743 = vmul.f32 %v4738, %v253
  %v4744 = vsub.f32 %v4723, %v4739
  %v4745 = vsub.f32 %v4724, %v4740
  %v4746 = vsub.f32 %v4725, %v4741
  %v4747 = vsub.f32 %v4726, %v4742
  %v4748 = vsub.f32 %v4727, %v4743
  %v4749 = vmul.f32 %v4744, %v4744
  %v4750 = vmul.f32 %v4745, %v4745
  %v4751 = vmul.f32 %v4746, %v4746
  %v4752 = vmul.f32 %v4747, %v4747
  %v4753 = vmul.f32 %v4748, %v4748
  %4754 = vadd.xlane.f32.xlu0 %v4749
  %v4755 = vpop.xlane.xlu0 %4754
  %4756 = vadd.xlane.f32.xlu0 %v4750
  %v4757 = vpop.xlane.xlu0 %4756
  %4758 = vadd.xlane.f32.xlu0 %v4751
  %v4759 = vpop.xlane.xlu0 %4758
  %4760 = vadd.xlane.f32.xlu0 %v4752
  %v4761 = vpop.xlane.xlu0 %4760
  %v4762 = vsel %vm249, %v4753, 0.0
  %4763 = vadd.xlane.f32.xlu0 %v4762
  %v4764 = vpop.xlane.xlu0 %4763
  %v4765 = vmul.f32 %v4755, %v253
  %v4766 = vmul.f32 %v4757, %v253
  %v4767 = vmul.f32 %v4759, %v253
  %v4768 = vmul.f32 %v4761, %v253
  %v4769 = vmul.f32 %v4764, %v253
  %v4770 = vadd.f32 %v4765, 1e-06
  %v4771 = vadd.f32 %v4766, 1e-06
  %v4772 = vadd.f32 %v4767, 1e-06
  %v4773 = vadd.f32 %v4768, 1e-06
  %v4774 = vadd.f32 %v4769, 1e-06
  %v4775 = vrsqrt.pop %v4770
  %v4776 = vrsqrt.pop %v4771
  %v4777 = vrsqrt.pop %v4772
  %v4778 = vrsqrt.pop %v4773
  %v4779 = vrsqrt.pop %v4774
  %v4780 = vmul.f32 %v4744, %v4775
  %v4781 = vmul.f32 %v4745, %v4776
  %v4782 = vmul.f32 %v4746, %v4777
  %v4783 = vmul.f32 %v4747, %v4778
  %v4784 = vmul.f32 %v4748, %v4779
  %v4785 = vlaneseq
  %v4786 = vshrl.u32 %v4785, 7
  %v4787 = vsub.s32 2, %v4786
  %v4788 = vrot.slane %v2758, %v4787
  %v4789 = vmul.f32 %v4780, %v4788
  %v4790 = vmul.f32 %v4781, %v4788
  %v4791 = vmul.f32 %v4782, %v4788
  %v4792 = vmul.f32 %v4783, %v4788
  %v4793 = vmul.f32 %v4784, %v4788
  %v4794 = vlaneseq
  %v4795 = vshrl.u32 %v4794, 7
  %v4796 = vsub.s32 3, %v4795
  %v4797 = vrot.slane %v2758, %v4796
  %v4798 = vadd.f32 %v4789, %v4797
  %v4799 = vadd.f32 %v4790, %v4797
  %v4800 = vadd.f32 %v4791, %v4797
  %v4801 = vadd.f32 %v4792, %v4797
  %v4802 = vadd.f32 %v4793, %v4797
  %v4803 = vpack.c.bf16 %v4799, %v4798
  %v4804 = vpack.c.bf16 %v4801, %v4800
  %v4805 = vpack.c.bf16 %v4802, %v4802
  %s4806 = scalar_lea.vmem %s6, 128
  %v4807 = vld [vmem:[%s4806] sm:$0xff]
  %v4808 = vld [vmem:[%s4806 + $0x8] sm:$0xff]
  %v4809 = vld [vmem:[%s4806 + $0x10] sm:$0xff]
  %v4810 = vld [vmem:[%s4806 + $0x18] sm:$0xff]
  %v4811 = vld [vmem:[%s4806 + $0x20] sm:$0xff]
  %v4812 = vld [vmem:[%s4806 + $0x28] sm:$0xff]
  %v4813 = vld [vmem:[%s4806 + $0x30] sm:$0xff]
  %v4814 = vld [vmem:[%s4806 + $0x38] sm:$0xff]
  %v4815 = vld [vmem:[%s4806 + $0x40] sm:$0xff]
  %v4816 = vld [vmem:[%s4806 + $0x48] sm:$0xff]
  %v4817 = vld [vmem:[%s4806 + $0x50] sm:$0xff]
  %v4818 = vld [vmem:[%s4806 + $0x58] sm:$0xff]
  %v4819 = vld [vmem:[%s4806 + $0x60] sm:$0xff]
  %v4820 = vld [vmem:[%s4806 + $0x68] sm:$0xff]
  %v4821 = vld [vmem:[%s4806 + $0x70] sm:$0xff]
  %v4822 = vld [vmem:[%s4806 + $0x78] sm:$0xff]
  %s4823 = scalar_lea.vmem %s7, 2
  %v4824 = vld [vmem:[%s4823] sm:$0x3]
  %v4826 = vlaneseq
  %v4827 = vshrl.u32 %v4826, 7
  %v4828 = vsub.s32 0, %v4827
  %v4829 = vrot.slane %v4824, %v4828
  %v4830 = vlaneseq
  %v4831 = vshrl.u32 %v4830, 7
  %v4832 = vsub.s32 1, %v4831
  %v4833 = vrot.slane %v4824, %v4832
  %v4852 = vunpack.c.l.b16 %v4807
  %v4853 = vunpack.c.h.b16 %v4807
  %v4854 = vunpack.c.l.b16 %v4808
  %v4855 = vunpack.c.h.b16 %v4808
  %v4856 = vunpack.c.l.b16 %v4809
  %v4857 = vunpack.c.h.b16 %v4809
  %v4858 = vunpack.c.l.b16 %v4810
  %v4859 = vunpack.c.h.b16 %v4810
  %v4860 = vunpack.c.l.b16 %v4811
  %v4861 = vunpack.c.h.b16 %v4811
  %v4862 = vunpack.c.l.b16 %v4812
  %v4863 = vunpack.c.h.b16 %v4812
  %v4864 = vunpack.c.l.b16 %v4813
  %v4865 = vunpack.c.h.b16 %v4813
  %v4866 = vunpack.c.l.b16 %v4814
  %v4867 = vunpack.c.h.b16 %v4814
  %v4868 = vunpack.c.l.b16 %v4815
  %v4869 = vunpack.c.h.b16 %v4815
  %v4870 = vunpack.c.l.b16 %v4816
  %v4871 = vunpack.c.h.b16 %v4816
  %v4872 = vunpack.c.l.b16 %v4817
  %v4873 = vunpack.c.h.b16 %v4817
  %v4874 = vunpack.c.l.b16 %v4818
  %v4875 = vunpack.c.h.b16 %v4818
  %v4876 = vunpack.c.l.b16 %v4819
  %v4877 = vunpack.c.h.b16 %v4819
  %v4878 = vunpack.c.l.b16 %v4820
  %v4879 = vunpack.c.h.b16 %v4820
  %v4880 = vunpack.c.l.b16 %v4821
  %v4881 = vunpack.c.h.b16 %v4821
  %v4882 = vunpack.c.l.b16 %v4822
  %v4883 = vunpack.c.h.b16 %v4822
  %v4884 = vpack.c.b16 %v4854, %v4852
  %v4885 = vpack.c.b16 %v4855, %v4853
  %v4886 = vpack.c.b16 %v4858, %v4856
  %v4887 = vpack.c.b16 %v4859, %v4857
  %v4888 = vpack.c.b16 %v4862, %v4860
  %v4889 = vpack.c.b16 %v4863, %v4861
  %v4890 = vpack.c.b16 %v4866, %v4864
  %v4891 = vpack.c.b16 %v4867, %v4865
  %v4892 = vpack.c.b16 %v4870, %v4868
  %v4893 = vpack.c.b16 %v4871, %v4869
  %v4894 = vpack.c.b16 %v4874, %v4872
  %v4895 = vpack.c.b16 %v4875, %v4873
  %v4896 = vpack.c.b16 %v4878, %v4876
  %v4897 = vpack.c.b16 %v4879, %v4877
  %v4898 = vpack.c.b16 %v4882, %v4880
  %v4899 = vpack.c.b16 %v4883, %v4881
  %4916 = vmatprep.subr.bf16.mxu0 %v4885
  %4917 = vmatpush1.bf16.msra.mxu0 %v4884
  %4918 = vmatprep.subr.bf16.mxu0 %v4887
  %4919 = vmatpush1.bf16.msra.mxu0 %v4886
  %4920 = vmatprep.subr.bf16.mxu0 %v4889
  %4921 = vmatpush1.bf16.msra.mxu0 %v4888
  %4922 = vmatprep.subr.bf16.mxu0 %v4891
  %4923 = vmatpush1.bf16.msra.mxu0 %v4890
  %4924 = vmatprep.subr.bf16.mxu0 %v4893
  %4925 = vmatpush1.bf16.msra.mxu0 %v4892
  %4926 = vmatprep.subr.bf16.mxu0 %v4895
  %4927 = vmatpush1.bf16.msra.mxu0 %v4894
  %4928 = vmatprep.subr.bf16.mxu0 %v4897
  %4929 = vmatpush1.bf16.msra.mxu0 %v4896
  %4930 = vmatprep.subr.bf16.mxu0 %v4899
  %4931 = vmatpush1.bf16.msra.mxu0 %v4898
  %4932 = vmatprep.subr.bf16.mxu0 0
  %4933 = vmatpush1.bf16.msra.mxu0 0
  %4934 = vmatprep.subr.bf16.mxu0 0
  %4935 = vmatpush1.bf16.msra.mxu0 0
  %4936 = vmatprep.subr.bf16.mxu0 0
  %4937 = vmatpush1.bf16.msra.mxu0 0
  %4938 = vmatprep.subr.bf16.mxu0 0
  %4939 = vmatpush1.bf16.msra.mxu0 0
  %4940 = vmatprep.subr.bf16.mxu0 0
  %4941 = vmatpush1.bf16.msra.mxu0 0
  %4942 = vmatprep.subr.bf16.mxu0 0
  %4943 = vmatpush1.bf16.msra.mxu0 0
  %4944 = vmatprep.subr.bf16.mxu0 0
  %4945 = vmatpush1.bf16.msra.mxu0 0
  %4946 = vmatprep.subr.bf16.mxu0 0
  %4947 = vmatpush1.bf16.msra.mxu0 0
  %4948 = vmatprep.mubr.bf16.mxu0 0
  %4949 = vmatmul.mubr.bf16.gmra.mrb[0].mxu0 %v4803
  %v4950 = vpop.f32.mrb[0].mxu0
  %v4951 = vadd.f32 %v4829, %v4950
  %v4952 = vpop.f32.mrb[0].mxu0
  %v4953 = vadd.f32 %v4833, %v4952
  %v4954 = vpop.f32.mrb[0].mxu0
  %v4955 = vadd.f32 %v4829, %v4954
  %v4956 = vpop.f32.mrb[0].mxu0
  %v4957 = vadd.f32 %v4833, %v4956
  %4958 = vmatprep.mubr.bf16.mxu0 0
  %4959 = vmatmul.mubr.bf16.gmra.mrb[0].mxu0 %v4804
  %v4960 = vpop.f32.mrb[0].mxu0
  %v4961 = vadd.f32 %v4829, %v4960
  %v4962 = vpop.f32.mrb[0].mxu0
  %v4963 = vadd.f32 %v4833, %v4962
  %v4964 = vpop.f32.mrb[0].mxu0
  %v4965 = vadd.f32 %v4829, %v4964
  %v4966 = vpop.f32.mrb[0].mxu0
  %v4967 = vadd.f32 %v4833, %v4966
  %4968 = vmatprep.mubr.bf16.mxu0 0
  %4969 = vmatmul.mubr.bf16.gmra.mrb[0].mxu0 %v4805
  %v4970 = vpop.f32.mrb[0].mxu0
  %v4971 = vadd.f32 %v4829, %v4970
  %v4972 = vpop.f32.mrb[0].mxu0
  %v4973 = vadd.f32 %v4833, %v4972
  %v4974 = vpop.f32.mrb[0].mxu0
  %v4975 = vpop.f32.mrb[0].mxu0
  %4976 = vdwg.mxu0
  %v4977 = vmul.f32 %v4951, 0.5
  %v4978 = vmul.f32 %v4953, 0.5
  %v4979 = vmul.f32 %v4955, 0.5
  %v4980 = vmul.f32 %v4957, 0.5
  %v4981 = vmul.f32 %v4961, 0.5
  %v4982 = vmul.f32 %v4963, 0.5
  %v4983 = vmul.f32 %v4965, 0.5
  %v4984 = vmul.f32 %v4967, 0.5
  %v4985 = vmul.f32 %v4971, 0.5
  %v4986 = vmul.f32 %v4973, 0.5
  %v4987 = vmul.f32 %v4951, 0.044715
  %v4988 = vmul.f32 %v4953, 0.044715
  %v4989 = vmul.f32 %v4955, 0.044715
  %v4990 = vmul.f32 %v4957, 0.044715
  %v4991 = vmul.f32 %v4961, 0.044715
  %v4992 = vmul.f32 %v4963, 0.044715
  %v4993 = vmul.f32 %v4965, 0.044715
  %v4994 = vmul.f32 %v4967, 0.044715
  %v4995 = vmul.f32 %v4971, 0.044715
  %v4996 = vmul.f32 %v4973, 0.044715
  %v4997 = vmul.f32 %v4987, %v4951
  %v4998 = vmul.f32 %v4988, %v4953
  %v4999 = vmul.f32 %v4989, %v4955
  %v5000 = vmul.f32 %v4990, %v4957
  %v5001 = vmul.f32 %v4991, %v4961
  %v5002 = vmul.f32 %v4992, %v4963
  %v5003 = vmul.f32 %v4993, %v4965
  %v5004 = vmul.f32 %v4994, %v4967
  %v5005 = vmul.f32 %v4995, %v4971
  %v5006 = vmul.f32 %v4996, %v4973
  %v5007 = vmul.f32 %v4997, %v4951
  %v5008 = vmul.f32 %v4998, %v4953
  %v5009 = vmul.f32 %v4999, %v4955
  %v5010 = vmul.f32 %v5000, %v4957
  %v5011 = vmul.f32 %v5001, %v4961
  %v5012 = vmul.f32 %v5002, %v4963
  %v5013 = vmul.f32 %v5003, %v4965
  %v5014 = vmul.f32 %v5004, %v4967
  %v5015 = vmul.f32 %v5005, %v4971
  %v5016 = vmul.f32 %v5006, %v4973
  %v5017 = vadd.f32 %v4951, %v5007
  %v5018 = vadd.f32 %v4953, %v5008
  %v5019 = vadd.f32 %v4955, %v5009
  %v5020 = vadd.f32 %v4957, %v5010
  %v5021 = vadd.f32 %v4961, %v5011
  %v5022 = vadd.f32 %v4963, %v5012
  %v5023 = vadd.f32 %v4965, %v5013
  %v5024 = vadd.f32 %v4967, %v5014
  %v5025 = vadd.f32 %v4971, %v5015
  %v5026 = vadd.f32 %v4973, %v5016
  %v5027 = vmul.f32 %v5017, 0.7978846
  %v5028 = vmul.f32 %v5018, 0.7978846
  %v5029 = vmul.f32 %v5019, 0.7978846
  %v5030 = vmul.f32 %v5020, 0.7978846
  %v5031 = vmul.f32 %v5021, 0.7978846
  %v5032 = vmul.f32 %v5022, 0.7978846
  %v5033 = vmul.f32 %v5023, 0.7978846
  %v5034 = vmul.f32 %v5024, 0.7978846
  %v5035 = vmul.f32 %v5025, 0.7978846
  %v5036 = vmul.f32 %v5026, 0.7978846
  %v5037 = vtanh.pop %v5027
  %v5038 = vtanh.pop %v5028
  %v5039 = vtanh.pop %v5029
  %v5040 = vtanh.pop %v5030
  %v5041 = vtanh.pop %v5031
  %v5042 = vtanh.pop %v5032
  %v5043 = vtanh.pop %v5033
  %v5044 = vtanh.pop %v5034
  %v5045 = vtanh.pop %v5035
  %v5046 = vtanh.pop %v5036
  %v5047 = vadd.f32 %v5037, 1.0
  %v5048 = vadd.f32 %v5038, 1.0
  %v5049 = vadd.f32 %v5039, 1.0
  %v5050 = vadd.f32 %v5040, 1.0
  %v5051 = vadd.f32 %v5041, 1.0
  %v5052 = vadd.f32 %v5042, 1.0
  %v5053 = vadd.f32 %v5043, 1.0
  %v5054 = vadd.f32 %v5044, 1.0
  %v5055 = vadd.f32 %v5045, 1.0
  %v5056 = vadd.f32 %v5046, 1.0
  %v5057 = vmul.f32 %v4977, %v5047
  %v5058 = vmul.f32 %v4978, %v5048
  %v5059 = vmul.f32 %v4979, %v5049
  %v5060 = vmul.f32 %v4980, %v5050
  %v5061 = vmul.f32 %v4981, %v5051
  %v5062 = vmul.f32 %v4982, %v5052
  %v5063 = vmul.f32 %v4983, %v5053
  %v5064 = vmul.f32 %v4984, %v5054
  %v5065 = vmul.f32 %v4985, %v5055
  %v5066 = vmul.f32 %v4986, %v5056
  %v5067 = vpack.c.bf16 %v5059, %v5057
  %v5068 = vpack.c.bf16 %v5060, %v5058
  %v5069 = vpack.c.bf16 %v5063, %v5061
  %v5070 = vpack.c.bf16 %v5064, %v5062
  %v5071 = vpack.c.bf16 %v5065, %v5065
  %v5072 = vpack.c.bf16 %v5066, %v5066
  %s5073 = scalar_lea.vmem %s8, 128
  %v5074 = vld [vmem:[%s5073] sm:$0xf]
  %v5075 = vld [vmem:[%s5073 + $0x4] sm:$0xf]
  %v5076 = vld [vmem:[%s5073 + $0x8] sm:$0xf]
  %v5077 = vld [vmem:[%s5073 + $0xc] sm:$0xf]
  %v5078 = vld [vmem:[%s5073 + $0x10] sm:$0xf]
  %v5079 = vld [vmem:[%s5073 + $0x14] sm:$0xf]
  %v5080 = vld [vmem:[%s5073 + $0x18] sm:$0xf]
  %v5081 = vld [vmem:[%s5073 + $0x1c] sm:$0xf]
  %v5082 = vld [vmem:[%s5073 + $0x20] sm:$0xf]
  %v5083 = vld [vmem:[%s5073 + $0x24] sm:$0xf]
  %v5084 = vld [vmem:[%s5073 + $0x28] sm:$0xf]
  %v5085 = vld [vmem:[%s5073 + $0x2c] sm:$0xf]
  %v5086 = vld [vmem:[%s5073 + $0x30] sm:$0xf]
  %v5087 = vld [vmem:[%s5073 + $0x34] sm:$0xf]
  %v5088 = vld [vmem:[%s5073 + $0x38] sm:$0xf]
  %v5089 = vld [vmem:[%s5073 + $0x3c] sm:$0xf]
  %v5090 = vld [vmem:[%s5073 + $0x40] sm:$0xf]
  %v5091 = vld [vmem:[%s5073 + $0x44] sm:$0xf]
  %v5092 = vld [vmem:[%s5073 + $0x48] sm:$0xf]
  %v5093 = vld [vmem:[%s5073 + $0x4c] sm:$0xf]
  %v5094 = vld [vmem:[%s5073 + $0x50] sm:$0xf]
  %v5095 = vld [vmem:[%s5073 + $0x54] sm:$0xf]
  %v5096 = vld [vmem:[%s5073 + $0x58] sm:$0xf]
  %v5097 = vld [vmem:[%s5073 + $0x5c] sm:$0xf]
  %v5098 = vld [vmem:[%s5073 + $0x60] sm:$0xf]
  %v5099 = vld [vmem:[%s5073 + $0x64] sm:$0xf]
  %v5100 = vld [vmem:[%s5073 + $0x68] sm:$0xf]
  %v5101 = vld [vmem:[%s5073 + $0x6c] sm:$0xf]
  %v5102 = vld [vmem:[%s5073 + $0x70] sm:$0xf]
  %v5103 = vld [vmem:[%s5073 + $0x74] sm:$0xf]
  %v5104 = vld [vmem:[%s5073 + $0x78] sm:$0xf]
  %v5105 = vld [vmem:[%s5073 + $0x7c] sm:$0xf]
  %v5138 = vunpack.c.l.b16 %v5074
  %v5139 = vunpack.c.l.b16 %v5075
  %v5140 = vunpack.c.l.b16 %v5076
  %v5141 = vunpack.c.l.b16 %v5077
  %v5142 = vunpack.c.l.b16 %v5078
  %v5143 = vunpack.c.l.b16 %v5079
  %v5144 = vunpack.c.l.b16 %v5080
  %v5145 = vunpack.c.l.b16 %v5081
  %v5146 = vunpack.c.l.b16 %v5082
  %v5147 = vunpack.c.l.b16 %v5083
  %v5148 = vunpack.c.l.b16 %v5084
  %v5149 = vunpack.c.l.b16 %v5085
  %v5150 = vunpack.c.l.b16 %v5086
  %v5151 = vunpack.c.l.b16 %v5087
  %v5152 = vunpack.c.l.b16 %v5088
  %v5153 = vunpack.c.l.b16 %v5089
  %v5154 = vunpack.c.l.b16 %v5090
  %v5155 = vunpack.c.l.b16 %v5091
  %v5156 = vunpack.c.l.b16 %v5092
  %v5157 = vunpack.c.l.b16 %v5093
  %v5158 = vunpack.c.l.b16 %v5094
  %v5159 = vunpack.c.l.b16 %v5095
  %v5160 = vunpack.c.l.b16 %v5096
  %v5161 = vunpack.c.l.b16 %v5097
  %v5162 = vunpack.c.l.b16 %v5098
  %v5163 = vunpack.c.l.b16 %v5099
  %v5164 = vunpack.c.l.b16 %v5100
  %v5165 = vunpack.c.l.b16 %v5101
  %v5166 = vunpack.c.l.b16 %v5102
  %v5167 = vunpack.c.l.b16 %v5103
  %v5168 = vunpack.c.l.b16 %v5104
  %v5169 = vunpack.c.l.b16 %v5105
  %v5170 = vpack.c.b16 %v5139, %v5138
  %v5171 = vpack.c.b16 %v5141, %v5140
  %v5172 = vpack.c.b16 %v5143, %v5142
  %v5173 = vpack.c.b16 %v5145, %v5144
  %v5174 = vpack.c.b16 %v5147, %v5146
  %v5175 = vpack.c.b16 %v5149, %v5148
  %v5176 = vpack.c.b16 %v5151, %v5150
  %v5177 = vpack.c.b16 %v5153, %v5152
  %v5178 = vpack.c.b16 %v5155, %v5154
  %v5179 = vpack.c.b16 %v5157, %v5156
  %v5180 = vpack.c.b16 %v5159, %v5158
  %v5181 = vpack.c.b16 %v5161, %v5160
  %v5182 = vpack.c.b16 %v5163, %v5162
  %v5183 = vpack.c.b16 %v5165, %v5164
  %v5184 = vpack.c.b16 %v5167, %v5166
  %v5185 = vpack.c.b16 %v5169, %v5168
  %5202 = vmatprep.subr.bf16.mxu0 0
  %5203 = vmatpush1.bf16.msra.mxu0 %v5170
  %5204 = vmatprep.subr.bf16.mxu0 0
  %5205 = vmatpush1.bf16.msra.mxu0 %v5171
  %5206 = vmatprep.subr.bf16.mxu0 0
  %5207 = vmatpush1.bf16.msra.mxu0 %v5172
  %5208 = vmatprep.subr.bf16.mxu0 0
  %5209 = vmatpush1.bf16.msra.mxu0 %v5173
  %5210 = vmatprep.subr.bf16.mxu0 0
  %5211 = vmatpush1.bf16.msra.mxu0 %v5174
  %5212 = vmatprep.subr.bf16.mxu0 0
  %5213 = vmatpush1.bf16.msra.mxu0 %v5175
  %5214 = vmatprep.subr.bf16.mxu0 0
  %5215 = vmatpush1.bf16.msra.mxu0 %v5176
  %5216 = vmatprep.subr.bf16.mxu0 0
  %5217 = vmatpush1.bf16.msra.mxu0 %v5177
  %5218 = vmatprep.subr.bf16.mxu0 0
  %5219 = vmatpush1.bf16.msra.mxu0 %v5178
  %5220 = vmatprep.subr.bf16.mxu0 0
  %5221 = vmatpush1.bf16.msra.mxu0 %v5179
  %5222 = vmatprep.subr.bf16.mxu0 0
  %5223 = vmatpush1.bf16.msra.mxu0 %v5180
  %5224 = vmatprep.subr.bf16.mxu0 0
  %5225 = vmatpush1.bf16.msra.mxu0 %v5181
  %5226 = vmatprep.subr.bf16.mxu0 0
  %5227 = vmatpush1.bf16.msra.mxu0 %v5182
  %5228 = vmatprep.subr.bf16.mxu0 0
  %5229 = vmatpush1.bf16.msra.mxu0 %v5183
  %5230 = vmatprep.subr.bf16.mxu0 0
  %5231 = vmatpush1.bf16.msra.mxu0 %v5184
  %5232 = vmatprep.subr.bf16.mxu0 0
  %5233 = vmatpush1.bf16.msra.mxu0 %v5185
  %5234 = vmatprep.mubr.bf16.mxu0 %v5068
  %5235 = vmatmul.mubr.bf16.gmra.mrb[0].mxu0 %v5067
  %v5236 = vpop.f32.mrb[0].mxu0
  %v5237 = vpop.f32.mrb[0].mxu0
  %v5238 = vpop.f32.mrb[0].mxu0
  %v5239 = vpop.f32.mrb[0].mxu0
  %5240 = vmatprep.mubr.bf16.mxu0 %v5070
  %5241 = vmatmul.mubr.bf16.gmra.mrb[0].mxu0 %v5069
  %v5242 = vpop.f32.mrb[0].mxu0
  %v5243 = vadd.f32 0.0, %v5242
  %v5244 = vpop.f32.mrb[0].mxu0
  %v5245 = vpop.f32.mrb[0].mxu0
  %v5246 = vpop.f32.mrb[0].mxu0
  %5247 = vmatprep.mubr.bf16.mxu0 %v5072
  %5248 = vmatmul.mubr.bf16.gmra.mrb[0].mxu0 %v5071
  %v5249 = vpop.f32.mrb[0].mxu0
  %v5250 = vadd.f32 0.0, %v5249
  %v5251 = vpop.f32.mrb[0].mxu0
  %v5252 = vpop.f32.mrb[0].mxu0
  %v5253 = vpop.f32.mrb[0].mxu0
  %5254 = vdwg.mxu0
  %v5255 = vadd.f32 %v4725, %v5243
  %v5256 = vadd.f32 %v4727, %v5250
  %v5257 = vlaneseq
  %v5258 = vshrl.u32 %v5257, 7
  %v5259 = vsub.s32 5, %v5258
  %v5260 = vrot.slane %v2758, %v5259
  %v5261 = vadd.f32 %v5255, %v5260
  %v5262 = vadd.f32 %v5256, %v5260
  %v5263 = vsel %vm221, %v5261, %v5262
  %v5264 = vld [vmem:[%s10] sm:$0x1]
  %v5265 = vld [vmem:[%s10 + $0x1] sm:$0x1]
  %v5266 = vsel %vm249, %v5263, 0.0
  %5267 = vadd.xlane.f32.xlu0 %v5266
  %v5268 = vpop.xlane.xlu0 %5267
  %v5269 = vmul.f32 %v5268, %v253
  %v5270 = vsub.f32 %v5263, %v5269
  %v5271 = vmul.f32 %v5270, %v5270
  %v5272 = vsel %vm249, %v5271, 0.0
  %5273 = vadd.xlane.f32.xlu0 %v5272
  %v5274 = vpop.xlane.xlu0 %5273
  %v5275 = vmul.f32 %v5274, %v253
  %v5276 = vadd.f32 %v5275, 1e-06
  %v5277 = vrsqrt.pop %v5276
  %v5278 = vmul.f32 %v5270, %v5277
  %v5279 = vlaneseq
  %v5280 = vshrl.u32 %v5279, 7
  %v5281 = vsub.s32 0, %v5280
  %v5282 = vrot.slane %v5264, %v5281
  %v5283 = vmul.f32 %v5278, %v5282
  %v5284 = vlaneseq
  %v5285 = vshrl.u32 %v5284, 7
  %v5286 = vsub.s32 0, %v5285
  %v5287 = vrot.slane %v5265, %v5286
  %v5288 = vadd.f32 %v5283, %v5287
  %v5289 = vpack.c.bf16 %v5288, %v5288
  %v5290 = vld [vmem:[%s11] sm:$0xff]
  %v5291 = vld [vmem:[%s11 + $0x8] sm:$0xff]
  %v5292 = vld [vmem:[%s11 + $0x10] sm:$0xff]
  %v5293 = vld [vmem:[%s11 + $0x18] sm:$0xff]
  %v5294 = vld [vmem:[%s11 + $0x20] sm:$0xff]
  %v5295 = vld [vmem:[%s11 + $0x28] sm:$0xff]
  %v5296 = vld [vmem:[%s11 + $0x30] sm:$0xff]
  %v5297 = vld [vmem:[%s11 + $0x38] sm:$0xff]
  %v5298 = vld [vmem:[%s11 + $0x40] sm:$0xff]
  %v5299 = vld [vmem:[%s11 + $0x48] sm:$0xff]
  %v5300 = vld [vmem:[%s11 + $0x50] sm:$0xff]
  %v5301 = vld [vmem:[%s11 + $0x58] sm:$0xff]
  %v5302 = vld [vmem:[%s11 + $0x60] sm:$0xff]
  %v5303 = vld [vmem:[%s11 + $0x68] sm:$0xff]
  %v5304 = vld [vmem:[%s11 + $0x70] sm:$0xff]
  %v5305 = vld [vmem:[%s11 + $0x78] sm:$0xff]
  %v5306 = vld [vmem:[%s11 + $0x80] sm:$0xff]
  %v5307 = vld [vmem:[%s11 + $0x88] sm:$0xff]
  %v5308 = vld [vmem:[%s11 + $0x90] sm:$0xff]
  %v5309 = vld [vmem:[%s11 + $0x98] sm:$0xff]
  %v5310 = vld [vmem:[%s11 + $0xa0] sm:$0xff]
  %v5311 = vld [vmem:[%s11 + $0xa8] sm:$0xff]
  %v5312 = vld [vmem:[%s11 + $0xb0] sm:$0xff]
  %v5313 = vld [vmem:[%s11 + $0xb8] sm:$0xff]
  %v5314 = vld [vmem:[%s11 + $0xc0] sm:$0xff]
  %v5315 = vld [vmem:[%s11 + $0xc8] sm:$0xff]
  %v5316 = vld [vmem:[%s11 + $0xd0] sm:$0xff]
  %v5317 = vld [vmem:[%s11 + $0xd8] sm:$0xff]
  %v5318 = vld [vmem:[%s11 + $0xe0] sm:$0xff]
  %v5319 = vld [vmem:[%s11 + $0xe8] sm:$0xff]
  %v5320 = vld [vmem:[%s11 + $0xf0] sm:$0xff]
  %v5321 = vld [vmem:[%s11 + $0xf8] sm:$0xff]
  %v5322 = vld [vmem:[%s12] ss:$4 sm:$0xf]
  %v5324 = vlaneseq
  %v5325 = vshrl.u32 %v5324, 7
  %v5326 = vsub.s32 0, %v5325
  %v5327 = vrot.slane %v5322, %v5326
  %v5328 = vlaneseq
  %v5329 = vshrl.u32 %v5328, 7
  %v5330 = vsub.s32 1, %v5329
  %v5331 = vrot.slane %v5322, %v5330
  %v5332 = vlaneseq
  %v5333 = vshrl.u32 %v5332, 7
  %v5334 = vsub.s32 2, %v5333
  %v5335 = vrot.slane %v5322, %v5334
  %v5336 = vlaneseq
  %v5337 = vshrl.u32 %v5336, 7
  %v5338 = vsub.s32 3, %v5337
  %v5339 = vrot.slane %v5322, %v5338
  %v5376 = vunpack.c.l.b16 %v5290
  %v5377 = vunpack.c.h.b16 %v5290
  %v5378 = vunpack.c.l.b16 %v5291
  %v5379 = vunpack.c.h.b16 %v5291
  %v5380 = vunpack.c.l.b16 %v5292
  %v5381 = vunpack.c.h.b16 %v5292
  %v5382 = vunpack.c.l.b16 %v5293
  %v5383 = vunpack.c.h.b16 %v5293
  %v5384 = vunpack.c.l.b16 %v5294
  %v5385 = vunpack.c.h.b16 %v5294
  %v5386 = vunpack.c.l.b16 %v5295
  %v5387 = vunpack.c.h.b16 %v5295
  %v5388 = vunpack.c.l.b16 %v5296
  %v5389 = vunpack.c.h.b16 %v5296
  %v5390 = vunpack.c.l.b16 %v5297
  %v5391 = vunpack.c.h.b16 %v5297
  %v5392 = vunpack.c.l.b16 %v5298
  %v5393 = vunpack.c.h.b16 %v5298
  %v5394 = vunpack.c.l.b16 %v5299
  %v5395 = vunpack.c.h.b16 %v5299
  %v5396 = vunpack.c.l.b16 %v5300
  %v5397 = vunpack.c.h.b16 %v5300
  %v5398 = vunpack.c.l.b16 %v5301
  %v5399 = vunpack.c.h.b16 %v5301
  %v5400 = vunpack.c.l.b16 %v5302
  %v5401 = vunpack.c.h.b16 %v5302
  %v5402 = vunpack.c.l.b16 %v5303
  %v5403 = vunpack.c.h.b16 %v5303
  %v5404 = vunpack.c.l.b16 %v5304
  %v5405 = vunpack.c.h.b16 %v5304
  %v5406 = vunpack.c.l.b16 %v5305
  %v5407 = vunpack.c.h.b16 %v5305
  %v5408 = vunpack.c.l.b16 %v5306
  %v5409 = vunpack.c.h.b16 %v5306
  %v5410 = vunpack.c.l.b16 %v5307
  %v5411 = vunpack.c.h.b16 %v5307
  %v5412 = vunpack.c.l.b16 %v5308
  %v5413 = vunpack.c.h.b16 %v5308
  %v5414 = vunpack.c.l.b16 %v5309
  %v5415 = vunpack.c.h.b16 %v5309
  %v5416 = vunpack.c.l.b16 %v5310
  %v5417 = vunpack.c.h.b16 %v5310
  %v5418 = vunpack.c.l.b16 %v5311
  %v5419 = vunpack.c.h.b16 %v5311
  %v5420 = vunpack.c.l.b16 %v5312
  %v5421 = vunpack.c.h.b16 %v5312
  %v5422 = vunpack.c.l.b16 %v5313
  %v5423 = vunpack.c.h.b16 %v5313
  %v5424 = vunpack.c.l.b16 %v5314
  %v5425 = vunpack.c.h.b16 %v5314
  %v5426 = vunpack.c.l.b16 %v5315
  %v5427 = vunpack.c.h.b16 %v5315
  %v5428 = vunpack.c.l.b16 %v5316
  %v5429 = vunpack.c.h.b16 %v5316
  %v5430 = vunpack.c.l.b16 %v5317
  %v5431 = vunpack.c.h.b16 %v5317
  %v5432 = vunpack.c.l.b16 %v5318
  %v5433 = vunpack.c.h.b16 %v5318
  %v5434 = vunpack.c.l.b16 %v5319
  %v5435 = vunpack.c.h.b16 %v5319
  %v5436 = vunpack.c.l.b16 %v5320
  %v5437 = vunpack.c.h.b16 %v5320
  %v5438 = vunpack.c.l.b16 %v5321
  %v5439 = vunpack.c.h.b16 %v5321
  %v5440 = vpack.c.b16 %v5380, %v5376
  %v5441 = vpack.c.b16 %v5381, %v5377
  %v5442 = vpack.c.b16 %v5382, %v5378
  %v5443 = vpack.c.b16 %v5383, %v5379
  %v5444 = vpack.c.b16 %v5388, %v5384
  %v5445 = vpack.c.b16 %v5389, %v5385
  %v5446 = vpack.c.b16 %v5390, %v5386
  %v5447 = vpack.c.b16 %v5391, %v5387
  %v5448 = vpack.c.b16 %v5396, %v5392
  %v5449 = vpack.c.b16 %v5397, %v5393
  %v5450 = vpack.c.b16 %v5398, %v5394
  %v5451 = vpack.c.b16 %v5399, %v5395
  %v5452 = vpack.c.b16 %v5404, %v5400
  %v5453 = vpack.c.b16 %v5405, %v5401
  %v5454 = vpack.c.b16 %v5406, %v5402
  %v5455 = vpack.c.b16 %v5407, %v5403
  %v5456 = vpack.c.b16 %v5412, %v5408
  %v5457 = vpack.c.b16 %v5413, %v5409
  %v5458 = vpack.c.b16 %v5414, %v5410
  %v5459 = vpack.c.b16 %v5415, %v5411
  %v5460 = vpack.c.b16 %v5420, %v5416
  %v5461 = vpack.c.b16 %v5421, %v5417
  %v5462 = vpack.c.b16 %v5422, %v5418
  %v5463 = vpack.c.b16 %v5423, %v5419
  %v5464 = vpack.c.b16 %v5428, %v5424
  %v5465 = vpack.c.b16 %v5429, %v5425
  %v5466 = vpack.c.b16 %v5430, %v5426
  %v5467 = vpack.c.b16 %v5431, %v5427
  %v5468 = vpack.c.b16 %v5436, %v5432
  %v5469 = vpack.c.b16 %v5437, %v5433
  %v5470 = vpack.c.b16 %v5438, %v5434
  %v5471 = vpack.c.b16 %v5439, %v5435
  %5504 = vmatprep.subr.bf16.mxu0 %v5441
  %5505 = vmatpush1.bf16.msra.mxu0 %v5440
  %5506 = vmatprep.subr.bf16.mxu0 %v5445
  %5507 = vmatpush1.bf16.msra.mxu0 %v5444
  %5508 = vmatprep.subr.bf16.mxu0 %v5449
  %5509 = vmatpush1.bf16.msra.mxu0 %v5448
  %5510 = vmatprep.subr.bf16.mxu0 %v5453
  %5511 = vmatpush1.bf16.msra.mxu0 %v5452
  %5512 = vmatprep.subr.bf16.mxu0 %v5457
  %5513 = vmatpush1.bf16.msra.mxu0 %v5456
  %5514 = vmatprep.subr.bf16.mxu0 %v5461
  %5515 = vmatpush1.bf16.msra.mxu0 %v5460
  %5516 = vmatprep.subr.bf16.mxu0 %v5465
  %5517 = vmatpush1.bf16.msra.mxu0 %v5464
  %5518 = vmatprep.subr.bf16.mxu0 %v5469
  %5519 = vmatpush1.bf16.msra.mxu0 %v5468
  %5520 = vmatprep.subr.bf16.mxu0 0
  %5521 = vmatpush1.bf16.msra.mxu0 0
  %5522 = vmatprep.subr.bf16.mxu0 0
  %5523 = vmatpush1.bf16.msra.mxu0 0
  %5524 = vmatprep.subr.bf16.mxu0 0
  %5525 = vmatpush1.bf16.msra.mxu0 0
  %5526 = vmatprep.subr.bf16.mxu0 0
  %5527 = vmatpush1.bf16.msra.mxu0 0
  %5528 = vmatprep.subr.bf16.mxu0 0
  %5529 = vmatpush1.bf16.msra.mxu0 0
  %5530 = vmatprep.subr.bf16.mxu0 0
  %5531 = vmatpush1.bf16.msra.mxu0 0
  %5532 = vmatprep.subr.bf16.mxu0 0
  %5533 = vmatpush1.bf16.msra.mxu0 0
  %5534 = vmatprep.subr.bf16.mxu0 0
  %5535 = vmatpush1.bf16.msra.mxu0 0
  %5536 = vmatprep.mubr.bf16.mxu0 0
  %5537 = vmatmul.mubr.bf16.gmra.mrb[0].mxu0 %v5289
  %v5538 = vpop.f32.mrb[0].mxu0
  %v5539 = vadd.f32 %v5327, %v5538
  %v5540 = vpop.f32.mrb[0].mxu0
  %v5541 = vadd.f32 %v5331, %v5540
  %v5542 = vpop.f32.mrb[0].mxu0
  %v5543 = vpop.f32.mrb[0].mxu0
  %5544 = vdwg.mxu0
  %5545 = vmatprep.subr.bf16.mxu0 %v5443
  %5546 = vmatpush1.bf16.msra.mxu0 %v5442
  %5547 = vmatprep.subr.bf16.mxu0 %v5447
  %5548 = vmatpush1.bf16.msra.mxu0 %v5446
  %5549 = vmatprep.subr.bf16.mxu0 %v5451
  %5550 = vmatpush1.bf16.msra.mxu0 %v5450
  %5551 = vmatprep.subr.bf16.mxu0 %v5455
  %5552 = vmatpush1.bf16.msra.mxu0 %v5454
  %5553 = vmatprep.subr.bf16.mxu0 %v5459
  %5554 = vmatpush1.bf16.msra.mxu0 %v5458
  %5555 = vmatprep.subr.bf16.mxu0 %v5463
  %5556 = vmatpush1.bf16.msra.mxu0 %v5462
  %5557 = vmatprep.subr.bf16.mxu0 %v5467
  %5558 = vmatpush1.bf16.msra.mxu0 %v5466
  %5559 = vmatprep.subr.bf16.mxu0 %v5471
  %5560 = vmatpush1.bf16.msra.mxu0 %v5470
  %5561 = vmatprep.subr.bf16.mxu0 0
  %5562 = vmatpush1.bf16.msra.mxu0 0
  %5563 = vmatprep.subr.bf16.mxu0 0
  %5564 = vmatpush1.bf16.msra.mxu0 0
  %5565 = vmatprep.subr.bf16.mxu0 0
  %5566 = vmatpush1.bf16.msra.mxu0 0
  %5567 = vmatprep.subr.bf16.mxu0 0
  %5568 = vmatpush1.bf16.msra.mxu0 0
  %5569 = vmatprep.subr.bf16.mxu0 0
  %5570 = vmatpush1.bf16.msra.mxu0 0
  %5571 = vmatprep.subr.bf16.mxu0 0
  %5572 = vmatpush1.bf16.msra.mxu0 0
  %5573 = vmatprep.subr.bf16.mxu0 0
  %5574 = vmatpush1.bf16.msra.mxu0 0
  %5575 = vmatprep.subr.bf16.mxu0 0
  %5576 = vmatpush1.bf16.msra.mxu0 0
  %5577 = vmatprep.mubr.bf16.mxu0 0
  %5578 = vmatmul.mubr.bf16.gmra.mrb[0].mxu0 %v5289
  %v5579 = vpop.f32.mrb[0].mxu0
  %v5580 = vadd.f32 %v5335, %v5579
  %v5581 = vpop.f32.mrb[0].mxu0
  %v5582 = vadd.f32 %v5339, %v5581
  %v5583 = vpop.f32.mrb[0].mxu0
  %v5584 = vpop.f32.mrb[0].mxu0
  %5585 = vdwg.mxu0
  %v5586 = vmax.f32 %v5539, 0.0
  %v5587 = vmax.f32 %v5541, 0.0
  %v5588 = vmax.f32 %v5580, 0.0
  %v5589 = vmax.f32 %v5582, 0.0
  %s5590 = scalar_lea.vmem %s12, 1
  %v5591 = vld [vmem:[%s5590] ss:$4 sm:$0xf]
  %v5593 = vlaneseq
  %v5594 = vshrl.u32 %v5593, 7
  %v5595 = vsub.s32 0, %v5594
  %v5596 = vrot.slane %v5591, %v5595
  %v5597 = vlaneseq
  %v5598 = vshrl.u32 %v5597, 7
  %v5599 = vsub.s32 1, %v5598
  %v5600 = vrot.slane %v5591, %v5599
  %v5601 = vlaneseq
  %v5602 = vshrl.u32 %v5601, 7
  %v5603 = vsub.s32 2, %v5602
  %v5604 = vrot.slane %v5591, %v5603
  %v5605 = vlaneseq
  %v5606 = vshrl.u32 %v5605, 7
  %v5607 = vsub.s32 3, %v5606
  %v5608 = vrot.slane %v5591, %v5607
  %v5613 = vmul.f32 %v5586, %v5596
  %v5614 = vmul.f32 %v5587, %v5600
  %v5615 = vmul.f32 %v5588, %v5604
  %v5616 = vmul.f32 %v5589, %v5608
  %v5617 = vsel %vm249, %v5613, 0.0
  %v5618 = vsel %vm249, %v5614, 0.0
  %v5619 = vadd.f32 %v5617, %v5618
  %v5620 = vsel %vm249, %v5615, 0.0
  %v5621 = vadd.f32 %v5619, %v5620
  %v5622 = vsel %vm249, %v5616, 0.0
  %v5623 = vadd.f32 %v5621, %v5622
  %5624 = vadd.xlane.f32.xlu0 %v5623
  %v5625 = vpop.xlane.xlu0 %5624
  %v5626 = vld [vmem:[%s12 + $0x2] sm:$0x1]
  %v5627 = vlaneseq
  %v5628 = vshrl.u32 %v5627, 7
  %v5629 = vsub.s32 0, %v5628
  %v5630 = vrot.slane %v5626, %v5629
  %v5631 = vadd.f32 %v5625, %v5630
  %v5632 = vmul.f32 %v5631, 0.5
  %v5633 = vtanh.pop %v5632
  %v5634 = vadd.f32 %v5633, 1.0
  %v5635 = vmul.f32 %v5634, 0.5
  %vm5636 = vcmask 1024
  %5637 = vst.msk [vmem:[%s13] sm:$0x3] %vm5636, %v5635
  // Predicated region
  $region54: #{cataract_forward.1} parent=0 // pred_check
    _
  $region55: #{cataract_forward.1} parent=0 // pred_check_branch
    %5639 = sbr.rel (0) target = $region57
  $region56: #{cataract_forward.1} parent=0 // pred_region
    _
  $region57: #{cataract_forward.1} parent=0 // pred_fallthru
    _
  // Predicated region
  $region58: #{cataract_forward.1} parent=0 // pred_check
    _
  $region59: #{cataract_forward.1} parent=0 // pred_check_branch
    %5641 = sbr.rel (0) target = $region61
  $region60: #{cataract_forward.1} parent=0 // pred_region
    _
  $region61: #{cataract_forward.1} parent=0 // pred_fallthru
    _

</llo_original>
